<compile_context>
chip_gen: v7x
topology: tpu7x:2x2x1
jax: 0.10.0
libtpu: 0.0.40
codegen_flags: <defaults>
</compile_context>

<pallas_src>
import math

import numpy as np
import jax
import jax.numpy as jnp
from jax.experimental import pallas as pl
from jax.experimental.pallas import tpu as pltpu

EMBEDF = 6                      # number of frequency bands
WIDTH = 64                      # hidden width
OUT_DIM = 4                     # RGBA output
OUT_PAD = 8                     # output rows padded to a full sublane group
EMB_DIM = 1 + 2 * EMBEDF        # 13 = include_input + sin/cos per band
EMB_PAD = 16                    # embedding rows padded to a multiple of 8
CVEC_COLS = 16                  # packed column-parameter array width
LN_EPS = 1e-5                   # PyTorch LayerNorm default eps

# Column layout of the packed (WIDTH, CVEC_COLS) feature-major parameter array.
C_B1, C_G1, C_BE1 = 0, 1, 2
C_B2, C_G2, C_BE2 = 3, 4, 5
C_B3, C_G3, C_BE3 = 6, 7, 8
C_B4 = 9                        # rows 0:OUT_DIM
C_FREQ = 10                     # rows 0:EMB_PAD
C_PHASE = 11                    # rows 0:EMB_PAD
C_MASK = 12                     # rows 0:EMB_PAD (1.0 only at the identity row)


def tf_kernel(x_ref, w1_ref, w23_ref, w4_ref, cvec_ref, o_ref):
    x = x_ref[...]                                       # (1, T) lane-dense
    T = x.shape[1]

    # ---- Fused, lane-dense positional embedding (feature-major) ----------
    # rows: [x, sin(x), cos(x), sin(2x), cos(2x), ..., sin(32x), cos(32x), 0,0,0]
    # cos(f*x) = sin(f*x + pi/2); identity row restored via the mask column
    # (freq=phase=0 there, so sin term is exactly 0).  No iota / where.
    freq = cvec_ref[0:EMB_PAD, C_FREQ:C_FREQ + 1]        # (16, 1)
    phase = cvec_ref[0:EMB_PAD, C_PHASE:C_PHASE + 1]     # (16, 1)
    mask = cvec_ref[0:EMB_PAD, C_MASK:C_MASK + 1]        # (16, 1)
    xb = jnp.broadcast_to(x, (EMB_PAD, T))               # hoisted sublane-broadcast
    emb = jnp.sin(xb * freq + phase) + xb * mask         # (16, T)

    def col(c):
        return cvec_ref[:, c:c + 1]                      # (64, 1) feature column

    # ---- Linear -> LayerNorm -> ReLU (exact f32 two-pass LN over features) -
    def ln_relu(h, g, be):
        mu = jnp.mean(h, axis=0, keepdims=True)          # (1, T)
        d = h - mu
        var = jnp.mean(d * d, axis=0, keepdims=True)     # (1, T)
        y = d * jax.lax.rsqrt(var + LN_EPS) * g + be
        return jnp.maximum(y, 0.0)

    h = jnp.dot(w1_ref[...], emb, preferred_element_type=jnp.float32) + col(C_B1)
    h = ln_relu(h, col(C_G1), col(C_BE1))
    h = jnp.dot(w23_ref[0], h, preferred_element_type=jnp.float32) + col(C_B2)
    h = ln_relu(h, col(C_G2), col(C_BE2))
    h = jnp.dot(w23_ref[1], h, preferred_element_type=jnp.float32) + col(C_B3)
    h = ln_relu(h, col(C_G3), col(C_BE3))

    # Final linear: W4^T padded to 8 output rows (rows 4..7 are zero weights
    # and zero bias), so the store stays a full (8, tile) lane-dense block.
    out = jnp.dot(w4_ref[...], h, preferred_element_type=jnp.float32) \
        + cvec_ref[0:OUT_PAD, C_B4:C_B4 + 1]
    o_ref[...] = jax.nn.sigmoid(out)                     # (8, T)


def init_params(key):
    """Raw per-layer params mimicking PyTorch defaults (U(-1/sqrt(fan_in), ...) for
    Linear, gamma=1 / beta=0 for LayerNorm)."""
    def linear(k, fan_in, fan_out):
        k1, k2 = jax.random.split(k)
        bound = 1.0 / math.sqrt(fan_in)
        w = jax.random.uniform(k1, (fan_in, fan_out), jnp.float32, -bound, bound)
        b = jax.random.uniform(k2, (fan_out,), jnp.float32, -bound, bound)
        return w, b

    keys = jax.random.split(key, 4)
    w1, b1 = linear(keys[0], EMB_DIM, WIDTH)
    w2, b2 = linear(keys[1], WIDTH, WIDTH)
    w3, b3 = linear(keys[2], WIDTH, WIDTH)
    w4, b4 = linear(keys[3], WIDTH, OUT_DIM)
    ones = jnp.ones((WIDTH,), jnp.float32)
    zeros = jnp.zeros((WIDTH,), jnp.float32)
    return [w1, b1, ones, zeros,
            w2, b2, ones, zeros,
            w3, b3, ones, zeros,
            w4, b4]


def pack_params(params):
    """Pack raw params into 4 feature-major kernel inputs:
    W1^T (64,16 padded), stacked W2^T/W3^T, W4^T (8,64 padded), cvec (64,16)."""
    (w1, b1, g1, be1, w2, b2, g2, be2, w3, b3, g3, be3, w4, b4) = params

    w1t = jnp.zeros((WIDTH, EMB_PAD), jnp.float32).at[:, :EMB_DIM].set(w1.T)
    w23t = jnp.stack([w2.T, w3.T], axis=0)               # (2, 64, 64)
    w4t = jnp.zeros((OUT_PAD, WIDTH), jnp.float32).at[:OUT_DIM, :].set(w4.T)

    freq = np.zeros((EMB_PAD,), np.float32)
    phase = np.zeros((EMB_PAD,), np.float32)
    mask = np.zeros((EMB_PAD,), np.float32)
    mask[0] = 1.0                                        # include_input row
    for k in range(EMBEDF):
        f = float(2 ** k)
        freq[1 + 2 * k] = f                              # sin row
        freq[2 + 2 * k] = f                              # cos row
        phase[2 + 2 * k] = math.pi / 2.0
    # pad rows 13..15: freq = phase = mask = 0 -> emb rows are exactly 0,
    # and the matching W1^T columns are 0.

    cvec = jnp.zeros((WIDTH, CVEC_COLS), jnp.float32)
    cvec = cvec.at[:, C_B1].set(b1).at[:, C_G1].set(g1).at[:, C_BE1].set(be1)
    cvec = cvec.at[:, C_B2].set(b2).at[:, C_G2].set(g2).at[:, C_BE2].set(be2)
    cvec = cvec.at[:, C_B3].set(b3).at[:, C_G3].set(g3).at[:, C_BE3].set(be3)
    cvec = cvec.at[:OUT_DIM, C_B4].set(b4)
    cvec = cvec.at[:EMB_PAD, C_FREQ].set(jnp.asarray(freq))
    cvec = cvec.at[:EMB_PAD, C_PHASE].set(jnp.asarray(phase))
    cvec = cvec.at[:EMB_PAD, C_MASK].set(jnp.asarray(mask))
    return w1t, w23t, w4t, cvec


def _round_up(a, b):
    return (a + b - 1) // b * b


def tf_for_vr2_forward(x_input, packed, tile_n=4096):
    """Forward pass for dim_in=1: returns sigmoid MLP output of shape (N, 4)."""
    # TODO(synk): dim_in=2 branch (second `grad_opc` MLP + opacity product + concat)
    # and the inspect.stack() caller assertion are not reproduced here.
    assert tile_n % 128 == 0 and tile_n >= 128
    w1t, w23t, w4t, cvec = packed

    N = x_input.shape[0]
    x = x_input[:, 0].astype(jnp.float32)                # x_input[:, [0]] as a row

    # Lane-aligned tile (multiple of 128); guarantee >=4 grid steps for
    # moderate N so both v7x TensorCores get >=2 pipelined steps each.
    tile = min(tile_n, _round_up((N + 3) // 4, 128))
    Np = _round_up(N, tile)
    if Np != N:
        x = jnp.pad(x, (0, Np - N))                      # pad batch, sliced off below
    x = x.reshape(1, Np)                                 # lane-dense (1, Np)

    out = pl.pallas_call(
        tf_kernel,
        out_shape=jax.ShapeDtypeStruct((OUT_PAD, Np), jnp.float32),
        grid=(Np // tile,),
        in_specs=[
            pl.BlockSpec((1, tile), lambda i: (0, i)),
            # grid-invariant parameters: constant block index -> loaded once, kept resident
            pl.BlockSpec((WIDTH, EMB_PAD), lambda i: (0, 0)),
            pl.BlockSpec((2, WIDTH, WIDTH), lambda i: (0, 0, 0)),
            pl.BlockSpec((OUT_PAD, WIDTH), lambda i: (0, 0)),
            pl.BlockSpec((WIDTH, CVEC_COLS), lambda i: (0, 0)),
        ],
        out_specs=pl.BlockSpec((OUT_PAD, tile), lambda i: (0, i)),
        # ~5 MiB VMEM at tile=4096: fits the default scoped limit on v5e/v6e/v7x.
        # To push tile_n to 8192-16384, add vmem_limit_bytes via CompilerParams.
        compiler_params=pltpu.CompilerParams(dimension_semantics=("parallel",)),
    )(x, w1t, w23t, w4t, cvec)

    return out[:OUT_DIM, :N].T                           # back to (N, 4)


def _reference(x_input, params):
    """Pure-JAX reference matching PyTorch semantics (separate sin/cos, two-pass LN)."""
    (w1, b1, g1, be1, w2, b2, g2, be2, w3, b3, g3, be3, w4, b4) = params
    x = x_input[:, 0:1].astype(jnp.float32)
    cols = [x]
    for k in range(EMBEDF):
        f = float(2 ** k)
        cols += [jnp.sin(f * x), jnp.cos(f * x)]
    emb = jnp.concatenate(cols, axis=-1)                 # (N, 13)

    def ln(h, g, b):
        mu = jnp.mean(h, axis=-1, keepdims=True)
        var = jnp.mean((h - mu) ** 2, axis=-1, keepdims=True)
        return (h - mu) / jnp.sqrt(var + LN_EPS) * g + b

    h = jnp.maximum(ln(emb @ w1 + b1, g1, be1), 0.0)
    h = jnp.maximum(ln(h @ w2 + b2, g2, be2), 0.0)
    h = jnp.maximum(ln(h @ w3 + b3, g3, be3), 0.0)
    return jax.nn.sigmoid(h @ w4 + b4)


if __name__ == "__main__":
    key = jax.random.PRNGKey(0)
    k_param, k_x = jax.random.split(key)

    params = init_params(k_param)
    packed = pack_params(params)

    # dim_in=1: x_input has a single feature column (e.g. scalar density in [0, 1]).
    # N deliberately not a multiple of 128 to exercise padding; the tile-shrink
    # logic yields 4 grid steps (tile=512, Np=2048).
    N = 2000
    x_input = jax.random.uniform(k_x, (N, 1), jnp.float32)

    out = tf_for_vr2_forward(x_input, packed)
    out = jax.block_until_ready(out)

    ref = _reference(x_input, params)
    assert out.shape == (N, OUT_DIM)
    # Small deviations vs the reference come from cos computed as sin(x + pi/2)
    # and differing f32 reduction orders; LayerNorm itself is exact two-pass f32.
    err = float(jnp.max(jnp.abs(out - ref)))
    assert jnp.allclose(out, ref, atol=1e-4, rtol=1e-4), f"max abs err {err}"

    print("KERNEL_OK")
</pallas_src>

<mosaic_0001>
module attributes {stable_mosaic.version = 11 : i64} {
  func.func @tf_kernel(%arg0: i32, %arg1: memref<1x512xf32, #tpu.memory_space<vmem>>, %arg2: memref<64x16xf32, #tpu.memory_space<vmem>>, %arg3: memref<2x64x64xf32, #tpu.memory_space<vmem>>, %arg4: memref<8x64xf32, #tpu.memory_space<vmem>>, %arg5: memref<64x16xf32, #tpu.memory_space<vmem>>, %arg6: memref<8x512xf32, #tpu.memory_space<vmem>>) attributes {dimension_semantics = [#tpu.dimension_semantics<parallel>], iteration_bounds = array<i64: 4>, scalar_prefetch = 0 : i64, scratch_operands = 0 : i64, tpu.core_type = #tpu.core_type<tc>, window_params = [{transform_indices = @transform_0, window_bounds = array<i64: 1, 512>}, {pipeline_mode = #tpu.pipeline_mode<synchronous>, transform_indices = @transform_1, window_bounds = array<i64: 64, 16>}, {pipeline_mode = #tpu.pipeline_mode<synchronous>, transform_indices = @transform_2, window_bounds = array<i64: 2, 64, 64>}, {pipeline_mode = #tpu.pipeline_mode<synchronous>, transform_indices = @transform_3, window_bounds = array<i64: 8, 64>}, {pipeline_mode = #tpu.pipeline_mode<synchronous>, transform_indices = @transform_4, window_bounds = array<i64: 64, 16>}, {transform_indices = @transform_5, window_bounds = array<i64: 8, 512>}]} {
    %c0 = arith.constant 0 : index
    %c0_0 = arith.constant 0 : index
    %0 = vector.load %arg1[%c0, %c0_0] : memref<1x512xf32, #tpu.memory_space<vmem>>, vector<1x512xf32>
    %c0_1 = arith.constant 0 : index
    %c10 = arith.constant 10 : index
    %1 = vector.load %arg5[%c0_1, %c10] : memref<64x16xf32, #tpu.memory_space<vmem>>, vector<16x1xf32>
    %c0_2 = arith.constant 0 : index
    %c11 = arith.constant 11 : index
    %2 = vector.load %arg5[%c0_2, %c11] : memref<64x16xf32, #tpu.memory_space<vmem>>, vector<16x1xf32>
    %c0_3 = arith.constant 0 : index
    %c12 = arith.constant 12 : index
    %3 = vector.load %arg5[%c0_3, %c12] : memref<64x16xf32, #tpu.memory_space<vmem>>, vector<16x1xf32>
    %4 = vector.shape_cast %0 : vector<1x512xf32> to vector<1x512xf32>
    %5 = vector.broadcast %4 : vector<1x512xf32> to vector<16x512xf32>
    %6 = vector.broadcast %1 : vector<16x1xf32> to vector<16x512xf32>
    %7 = arith.mulf %5, %6 : vector<16x512xf32>
    %8 = vector.broadcast %2 : vector<16x1xf32> to vector<16x512xf32>
    %9 = arith.addf %7, %8 : vector<16x512xf32>
    %10 = math.sin %9 : vector<16x512xf32>
    %11 = vector.broadcast %3 : vector<16x1xf32> to vector<16x512xf32>
    %12 = arith.mulf %5, %11 : vector<16x512xf32>
    %13 = arith.addf %10, %12 : vector<16x512xf32>
    %c0_4 = arith.constant 0 : index
    %c0_5 = arith.constant 0 : index
    %14 = vector.load %arg2[%c0_4, %c0_5] : memref<64x16xf32, #tpu.memory_space<vmem>>, vector<64x16xf32>
    %cst = arith.constant dense<0.000000e+00> : vector<64x512xf32>
    %15 = tpu.matmul %14, %13, %cst {dimension_numbers = #tpu.dot_dimension_numbers<[1], [0], [0], [1], [0, 0, 1, 1], [], []>} : vector<64x16xf32>, vector<16x512xf32>, vector<64x512xf32> -> vector<64x512xf32>
    %c0_6 = arith.constant 0 : index
    %c0_7 = arith.constant 0 : index
    %16 = vector.load %arg5[%c0_6, %c0_7] : memref<64x16xf32, #tpu.memory_space<vmem>>, vector<64x1xf32>
    %17 = vector.broadcast %16 : vector<64x1xf32> to vector<64x512xf32>
    %18 = arith.addf %15, %17 : vector<64x512xf32>
    %c0_8 = arith.constant 0 : index
    %c1 = arith.constant 1 : index
    %19 = vector.load %arg5[%c0_8, %c1] : memref<64x16xf32, #tpu.memory_space<vmem>>, vector<64x1xf32>
    %c0_9 = arith.constant 0 : index
    %c2 = arith.constant 2 : index
    %20 = vector.load %arg5[%c0_9, %c2] : memref<64x16xf32, #tpu.memory_space<vmem>>, vector<64x1xf32>
    %cst_10 = arith.constant dense<0.000000e+00> : vector<512xf32>
    %21 = vector.multi_reduction <add>, %18, %cst_10 [0] : vector<64x512xf32> to vector<512xf32>
    %22 = vector.shape_cast %21 : vector<512xf32> to vector<1x512xf32>
    %cst_11 = arith.constant 6.400000e+01 : f32
    %23 = vector.broadcast %cst_11 : f32 to vector<1x512xf32>
    %24 = arith.divf %22, %23 : vector<1x512xf32>
    %25 = vector.broadcast %24 : vector<1x512xf32> to vector<64x512xf32>
    %26 = arith.subf %18, %25 : vector<64x512xf32>
    %27 = arith.mulf %26, %26 : vector<64x512xf32>
    %cst_12 = arith.constant dense<0.000000e+00> : vector<512xf32>
    %28 = vector.multi_reduction <add>, %27, %cst_12 [0] : vector<64x512xf32> to vector<512xf32>
    %29 = vector.shape_cast %28 : vector<512xf32> to vector<1x512xf32>
    %cst_13 = arith.constant 6.400000e+01 : f32
    %30 = vector.broadcast %cst_13 : f32 to vector<1x512xf32>
    %31 = arith.divf %29, %30 : vector<1x512xf32>
    %cst_14 = arith.constant 9.99999974E-6 : f32
    %32 = vector.broadcast %cst_14 : f32 to vector<1x512xf32>
    %33 = arith.addf %31, %32 : vector<1x512xf32>
    %34 = math.rsqrt %33 : vector<1x512xf32>
    %35 = vector.broadcast %34 : vector<1x512xf32> to vector<64x512xf32>
    %36 = arith.mulf %26, %35 : vector<64x512xf32>
    %37 = vector.broadcast %19 : vector<64x1xf32> to vector<64x512xf32>
    %38 = arith.mulf %36, %37 : vector<64x512xf32>
    %39 = vector.broadcast %20 : vector<64x1xf32> to vector<64x512xf32>
    %40 = arith.addf %38, %39 : vector<64x512xf32>
    %cst_15 = arith.constant 0.000000e+00 : f32
    %41 = vector.broadcast %cst_15 : f32 to vector<64x512xf32>
    %42 = arith.maximumf %40, %41 : vector<64x512xf32>
    %c0_16 = arith.constant 0 : index
    %c0_17 = arith.constant 0 : index
    %c0_18 = arith.constant 0 : index
    %43 = vector.load %arg3[%c0_16, %c0_17, %c0_18] : memref<2x64x64xf32, #tpu.memory_space<vmem>>, vector<1x64x64xf32>
    %44 = vector.shape_cast %43 : vector<1x64x64xf32> to vector<64x64xf32>
    %cst_19 = arith.constant dense<0.000000e+00> : vector<64x512xf32>
    %45 = tpu.matmul %44, %42, %cst_19 {dimension_numbers = #tpu.dot_dimension_numbers<[1], [0], [0], [1], [0, 0, 1, 1], [], []>} : vector<64x64xf32>, vector<64x512xf32>, vector<64x512xf32> -> vector<64x512xf32>
    %c0_20 = arith.constant 0 : index
    %c3 = arith.constant 3 : index
    %46 = vector.load %arg5[%c0_20, %c3] : memref<64x16xf32, #tpu.memory_space<vmem>>, vector<64x1xf32>
    %47 = vector.broadcast %46 : vector<64x1xf32> to vector<64x512xf32>
    %48 = arith.addf %45, %47 : vector<64x512xf32>
    %c0_21 = arith.constant 0 : index
    %c4 = arith.constant 4 : index
    %49 = vector.load %arg5[%c0_21, %c4] : memref<64x16xf32, #tpu.memory_space<vmem>>, vector<64x1xf32>
    %c0_22 = arith.constant 0 : index
    %c5 = arith.constant 5 : index
    %50 = vector.load %arg5[%c0_22, %c5] : memref<64x16xf32, #tpu.memory_space<vmem>>, vector<64x1xf32>
    %cst_23 = arith.constant dense<0.000000e+00> : vector<512xf32>
    %51 = vector.multi_reduction <add>, %48, %cst_23 [0] : vector<64x512xf32> to vector<512xf32>
    %52 = vector.shape_cast %51 : vector<512xf32> to vector<1x512xf32>
    %cst_24 = arith.constant 6.400000e+01 : f32
    %53 = vector.broadcast %cst_24 : f32 to vector<1x512xf32>
    %54 = arith.divf %52, %53 : vector<1x512xf32>
    %55 = vector.broadcast %54 : vector<1x512xf32> to vector<64x512xf32>
    %56 = arith.subf %48, %55 : vector<64x512xf32>
    %57 = arith.mulf %56, %56 : vector<64x512xf32>
    %cst_25 = arith.constant dense<0.000000e+00> : vector<512xf32>
    %58 = vector.multi_reduction <add>, %57, %cst_25 [0] : vector<64x512xf32> to vector<512xf32>
    %59 = vector.shape_cast %58 : vector<512xf32> to vector<1x512xf32>
    %cst_26 = arith.constant 6.400000e+01 : f32
    %60 = vector.broadcast %cst_26 : f32 to vector<1x512xf32>
    %61 = arith.divf %59, %60 : vector<1x512xf32>
    %cst_27 = arith.constant 9.99999974E-6 : f32
    %62 = vector.broadcast %cst_27 : f32 to vector<1x512xf32>
    %63 = arith.addf %61, %62 : vector<1x512xf32>
    %64 = math.rsqrt %63 : vector<1x512xf32>
    %65 = vector.broadcast %64 : vector<1x512xf32> to vector<64x512xf32>
    %66 = arith.mulf %56, %65 : vector<64x512xf32>
    %67 = vector.broadcast %49 : vector<64x1xf32> to vector<64x512xf32>
    %68 = arith.mulf %66, %67 : vector<64x512xf32>
    %69 = vector.broadcast %50 : vector<64x1xf32> to vector<64x512xf32>
    %70 = arith.addf %68, %69 : vector<64x512xf32>
    %cst_28 = arith.constant 0.000000e+00 : f32
    %71 = vector.broadcast %cst_28 : f32 to vector<64x512xf32>
    %72 = arith.maximumf %70, %71 : vector<64x512xf32>
    %c1_29 = arith.constant 1 : index
    %c0_30 = arith.constant 0 : index
    %c0_31 = arith.constant 0 : index
    %73 = vector.load %arg3[%c1_29, %c0_30, %c0_31] : memref<2x64x64xf32, #tpu.memory_space<vmem>>, vector<1x64x64xf32>
    %74 = vector.shape_cast %73 : vector<1x64x64xf32> to vector<64x64xf32>
    %cst_32 = arith.constant dense<0.000000e+00> : vector<64x512xf32>
    %75 = tpu.matmul %74, %72, %cst_32 {dimension_numbers = #tpu.dot_dimension_numbers<[1], [0], [0], [1], [0, 0, 1, 1], [], []>} : vector<64x64xf32>, vector<64x512xf32>, vector<64x512xf32> -> vector<64x512xf32>
    %c0_33 = arith.constant 0 : index
    %c6 = arith.constant 6 : index
    %76 = vector.load %arg5[%c0_33, %c6] : memref<64x16xf32, #tpu.memory_space<vmem>>, vector<64x1xf32>
    %77 = vector.broadcast %76 : vector<64x1xf32> to vector<64x512xf32>
    %78 = arith.addf %75, %77 : vector<64x512xf32>
    %c0_34 = arith.constant 0 : index
    %c7 = arith.constant 7 : index
    %79 = vector.load %arg5[%c0_34, %c7] : memref<64x16xf32, #tpu.memory_space<vmem>>, vector<64x1xf32>
    %c0_35 = arith.constant 0 : index
    %c8 = arith.constant 8 : index
    %80 = vector.load %arg5[%c0_35, %c8] : memref<64x16xf32, #tpu.memory_space<vmem>>, vector<64x1xf32>
    %cst_36 = arith.constant dense<0.000000e+00> : vector<512xf32>
    %81 = vector.multi_reduction <add>, %78, %cst_36 [0] : vector<64x512xf32> to vector<512xf32>
    %82 = vector.shape_cast %81 : vector<512xf32> to vector<1x512xf32>
    %cst_37 = arith.constant 6.400000e+01 : f32
    %83 = vector.broadcast %cst_37 : f32 to vector<1x512xf32>
    %84 = arith.divf %82, %83 : vector<1x512xf32>
    %85 = vector.broadcast %84 : vector<1x512xf32> to vector<64x512xf32>
    %86 = arith.subf %78, %85 : vector<64x512xf32>
    %87 = arith.mulf %86, %86 : vector<64x512xf32>
    %cst_38 = arith.constant dense<0.000000e+00> : vector<512xf32>
    %88 = vector.multi_reduction <add>, %87, %cst_38 [0] : vector<64x512xf32> to vector<512xf32>
    %89 = vector.shape_cast %88 : vector<512xf32> to vector<1x512xf32>
    %cst_39 = arith.constant 6.400000e+01 : f32
    %90 = vector.broadcast %cst_39 : f32 to vector<1x512xf32>
    %91 = arith.divf %89, %90 : vector<1x512xf32>
    %cst_40 = arith.constant 9.99999974E-6 : f32
    %92 = vector.broadcast %cst_40 : f32 to vector<1x512xf32>
    %93 = arith.addf %91, %92 : vector<1x512xf32>
    %94 = math.rsqrt %93 : vector<1x512xf32>
    %95 = vector.broadcast %94 : vector<1x512xf32> to vector<64x512xf32>
    %96 = arith.mulf %86, %95 : vector<64x512xf32>
    %97 = vector.broadcast %79 : vector<64x1xf32> to vector<64x512xf32>
    %98 = arith.mulf %96, %97 : vector<64x512xf32>
    %99 = vector.broadcast %80 : vector<64x1xf32> to vector<64x512xf32>
    %100 = arith.addf %98, %99 : vector<64x512xf32>
    %cst_41 = arith.constant 0.000000e+00 : f32
    %101 = vector.broadcast %cst_41 : f32 to vector<64x512xf32>
    %102 = arith.maximumf %100, %101 : vector<64x512xf32>
    %c0_42 = arith.constant 0 : index
    %c0_43 = arith.constant 0 : index
    %103 = vector.load %arg4[%c0_42, %c0_43] : memref<8x64xf32, #tpu.memory_space<vmem>>, vector<8x64xf32>
    %cst_44 = arith.constant dense<0.000000e+00> : vector<8x512xf32>
    %104 = tpu.matmul %103, %102, %cst_44 {dimension_numbers = #tpu.dot_dimension_numbers<[1], [0], [0], [1], [0, 0, 1, 1], [], []>} : vector<8x64xf32>, vector<64x512xf32>, vector<8x512xf32> -> vector<8x512xf32>
    %c0_45 = arith.constant 0 : index
    %c9 = arith.constant 9 : index
    %105 = vector.load %arg5[%c0_45, %c9] : memref<64x16xf32, #tpu.memory_space<vmem>>, vector<8x1xf32>
    %106 = vector.broadcast %105 : vector<8x1xf32> to vector<8x512xf32>
    %107 = arith.addf %104, %106 : vector<8x512xf32>
    %108 = arith.negf %107 : vector<8x512xf32>
    %109 = math.exp %108 : vector<8x512xf32>
    %cst_46 = arith.constant 1.000000e+00 : f32
    %110 = vector.broadcast %cst_46 : f32 to vector<8x512xf32>
    %111 = arith.addf %110, %109 : vector<8x512xf32>
    %112 = arith.divf %110, %111 : vector<8x512xf32>
    %c0_47 = arith.constant 0 : index
    %c0_48 = arith.constant 0 : index
    %113 = vector.load %arg6[%c0_47, %c0_48] : memref<8x512xf32, #tpu.memory_space<vmem>>, vector<8x512xf32>
    tpu.vector_store %arg6[%c0_47, %c0_48], %112 {strides = array<i32>} : memref<8x512xf32, #tpu.memory_space<vmem>>, vector<8x512xf32>,
    return
  }
  func.func @transform_0(%arg0: i32) -> (i32, i32) {
    %c0_i32 = arith.constant 0 : i32
    %c0_i32_0 = arith.constant 0 : i32
    return %c0_i32, %arg0 : i32, i32
  }
  func.func @transform_1(%arg0: i32) -> (i32, i32) {
    %c0_i32 = arith.constant 0 : i32
    %c0_i32_0 = arith.constant 0 : i32
    %c0_i32_1 = arith.constant 0 : i32
    return %c0_i32, %c0_i32_0 : i32, i32
  }
  func.func @transform_2(%arg0: i32) -> (i32, i32, i32) {
    %c0_i32 = arith.constant 0 : i32
    %c0_i32_0 = arith.constant 0 : i32
    %c0_i32_1 = arith.constant 0 : i32
    %c0_i32_2 = arith.constant 0 : i32
    return %c0_i32, %c0_i32_0, %c0_i32_1 : i32, i32, i32
  }
  func.func @transform_3(%arg0: i32) -> (i32, i32) {
    %c0_i32 = arith.constant 0 : i32
    %c0_i32_0 = arith.constant 0 : i32
    %c0_i32_1 = arith.constant 0 : i32
    return %c0_i32, %c0_i32_0 : i32, i32
  }
  func.func @transform_4(%arg0: i32) -> (i32, i32) {
    %c0_i32 = arith.constant 0 : i32
    %c0_i32_0 = arith.constant 0 : i32
    %c0_i32_1 = arith.constant 0 : i32
    return %c0_i32, %c0_i32_0 : i32, i32
  }
  func.func @transform_5(%arg0: i32) -> (i32, i32) {
    %c0_i32 = arith.constant 0 : i32
    %c0_i32_0 = arith.constant 0 : i32
    return %c0_i32, %arg0 : i32, i32
  }
}

</mosaic_0001>

<llo_original>
// kernel: tpu_custom_call.1
$region0: #{tpu_custom_call.1}
  #allocation0 [shape = 'u32[]', space=smem, size = 0x4, offset = 0x4, fixed_abs, tag = 'smem constant byte address 0x4 - core index']
  #allocation1 [shape = 'u32[144,128]{1,0:T(1,128)}', space=vmem, size = 0x12000, scoped, tag = 'internal scratch']
  %s0 = inlined_call_operand.vmem [shape: f32[1,2048], index: 0, kind: input, shape index: {}]
  %s1 = inlined_call_operand.vmem [shape: f32[64,16], index: 1, kind: input, shape index: {}]
  %s2 = inlined_call_operand.vmem [shape: f32[2,64,64], index: 2, kind: input, shape index: {}]
  %s3 = inlined_call_operand.vmem [shape: f32[8,64], index: 3, kind: input, shape index: {}]
  %s4 = inlined_call_operand.vmem [shape: f32[64,16], index: 4, kind: input, shape index: {}]
  %s5 = inlined_call_operand.hbm [shape: f32[8,2048], index: 5, kind: output, shape index: {}]
  %s6 = sld [smem:[#allocation0]]
  $region53: #{tpu_custom_call.1} parent=0
    _
  %s8 = ssub.s32 1, %s6
  %s9 = scalar_select 0, %s8, %s6
  $region1: #{tpu_custom_call.1} parent=0
    #allocation2 [shape = 'u8[32768]{0}', space=vmem, size = 0x8000, scoped, tag = 'output window, operand 0']
    #allocation3 [shape = 's32[2]{0}', space=sflag, size = 0x8, scoped, tag = 'scoped memory for tpu_custom_call.1']
    %10 = vsyncpa [#allocation3], 0
    %s11 = scalar_lea.sflag [#allocation3], 1
    %12 = vsyncpa %s11, 0
    loop: start=0, step=1, limit=6
    $region2: #{tpu_custom_call.1} parent=1 // loop_pre_header
      _
    $region3: #{tpu_custom_call.1} parent=1 // loop_header
      %s14 = sphi 0, %s18
      %p15 = scmp.ge.s32.totalorder %s14, 6
      %s24 = sphi 0, %s26
      %s27 = sphi 0, %s24
      %s28 = sphi 0, %s27
      %s44 = sphi 0, %s28
      %s48 = sphi 0, %s48
      %s50 = sphi 0, %s48
      %s51 = sphi 0, %s50
      %s65 = sphi 0, %s51
      %s69 = sphi 0, %s69
      %s71 = sphi 0, %s69
      %s72 = sphi 0, %s71
      %s86 = sphi 0, %s72
      %s90 = sphi 0, %s90
      %s92 = sphi 0, %s90
      %s93 = sphi 0, %s92
      %s107 = sphi 0, %s93
      %s111 = sphi 0, %s111
      %s113 = sphi 0, %s111
      %s114 = sphi 0, %s113
      %s128 = sphi 0, %s114
      %s134 = sphi 0, %s136
      %s137 = sphi 0, %s134
      %s138 = sphi 0, %s137
      %s154 = sphi 0, %s138
    $region4: #{tpu_custom_call.1} parent=1 // loop_header_branch
      %17 = sbr.rel (%p15) target = $region8
    $region5: #{tpu_custom_call.1} parent=1 // loop_body
      %s19 = ssub.s32 %s14, 1
      %s20 = ssub.s32 %s14, 2
      %s21 = sadd.s32 %s14, 1
      %s22 = ssub.s32 %s14, %s21
      %p23 = scmp.eq.s32.totalorder %s22, 0
      %s25 = sadd.s32 %s24, 1
      %s26 = scalar_select %p23, %s24, %s25
      %p29 = pneg %p23
      %p30 = scmp.eq.s32.totalorder %s14, 3
      %p31 = por %p29, %p30
      %p32 = scmp.ne.s32.totalorder %s24, %s27
      %p33 = scmp.eq.s32.totalorder %s14, 0
      %p34 = por %p32, %p33
      %p35 = scmp.ne.s32.totalorder %s24, %s27
      %p36 = scmp.eq.s32.totalorder %s19, 3
      %p37 = por %p35, %p36
      %p38 = scmp.ne.s32.totalorder %s27, %s28
      %p39 = scmp.eq.s32.totalorder %s19, 0
      %p40 = por %p38, %p39
      %p41 = scmp.ne.s32.totalorder %s27, %s28
      %p42 = scmp.eq.s32.totalorder %s20, 3
      %p43 = por %p41, %p42
      %p45 = scmp.ne.s32.totalorder %s28, %s44
      %p46 = scmp.eq.s32.totalorder %s20, 0
      %p47 = por %p45, %p46
      %s49 = sadd.s32 %s48, 1
      %p52 = scmp.eq.s32.totalorder %s14, 3
      %p53 = scmp.ne.s32.totalorder %s48, %s50
      %p54 = scmp.eq.s32.totalorder %s14, 0
      %p55 = por %p53, %p54
      %p56 = scmp.ne.s32.totalorder %s48, %s50
      %p57 = scmp.eq.s32.totalorder %s19, 3
      %p58 = por %p56, %p57
      %p59 = scmp.ne.s32.totalorder %s50, %s51
      %p60 = scmp.eq.s32.totalorder %s19, 0
      %p61 = por %p59, %p60
      %p62 = scmp.ne.s32.totalorder %s50, %s51
      %p63 = scmp.eq.s32.totalorder %s20, 3
      %p64 = por %p62, %p63
      %p66 = scmp.ne.s32.totalorder %s51, %s65
      %p67 = scmp.eq.s32.totalorder %s20, 0
      %p68 = por %p66, %p67
      %s70 = sadd.s32 %s69, 1
      %p73 = scmp.eq.s32.totalorder %s14, 3
      %p74 = scmp.ne.s32.totalorder %s69, %s71
      %p75 = scmp.eq.s32.totalorder %s14, 0
      %p76 = por %p74, %p75
      %p77 = scmp.ne.s32.totalorder %s69, %s71
      %p78 = scmp.eq.s32.totalorder %s19, 3
      %p79 = por %p77, %p78
      %p80 = scmp.ne.s32.totalorder %s71, %s72
      %p81 = scmp.eq.s32.totalorder %s19, 0
      %p82 = por %p80, %p81
      %p83 = scmp.ne.s32.totalorder %s71, %s72
      %p84 = scmp.eq.s32.totalorder %s20, 3
      %p85 = por %p83, %p84
      %p87 = scmp.ne.s32.totalorder %s72, %s86
      %p88 = scmp.eq.s32.totalorder %s20, 0
      %p89 = por %p87, %p88
      %s91 = sadd.s32 %s90, 1
      %p94 = scmp.eq.s32.totalorder %s14, 3
      %p95 = scmp.ne.s32.totalorder %s90, %s92
      %p96 = scmp.eq.s32.totalorder %s14, 0
      %p97 = por %p95, %p96
      %p98 = scmp.ne.s32.totalorder %s90, %s92
      %p99 = scmp.eq.s32.totalorder %s19, 3
      %p100 = por %p98, %p99
      %p101 = scmp.ne.s32.totalorder %s92, %s93
      %p102 = scmp.eq.s32.totalorder %s19, 0
      %p103 = por %p101, %p102
      %p104 = scmp.ne.s32.totalorder %s92, %s93
      %p105 = scmp.eq.s32.totalorder %s20, 3
      %p106 = por %p104, %p105
      %p108 = scmp.ne.s32.totalorder %s93, %s107
      %p109 = scmp.eq.s32.totalorder %s20, 0
      %p110 = por %p108, %p109
      %s112 = sadd.s32 %s111, 1
      %p115 = scmp.eq.s32.totalorder %s14, 3
      %p116 = scmp.ne.s32.totalorder %s111, %s113
      %p117 = scmp.eq.s32.totalorder %s14, 0
      %p118 = por %p116, %p117
      %p119 = scmp.ne.s32.totalorder %s111, %s113
      %p120 = scmp.eq.s32.totalorder %s19, 3
      %p121 = por %p119, %p120
      %p122 = scmp.ne.s32.totalorder %s113, %s114
      %p123 = scmp.eq.s32.totalorder %s19, 0
      %p124 = por %p122, %p123
      %p125 = scmp.ne.s32.totalorder %s113, %s114
      %p126 = scmp.eq.s32.totalorder %s20, 3
      %p127 = por %p125, %p126
      %p129 = scmp.ne.s32.totalorder %s114, %s128
      %p130 = scmp.eq.s32.totalorder %s20, 0
      %p131 = por %p129, %p130
      %s132 = ssub.s32 %s14, %s21
      %p133 = scmp.eq.s32.totalorder %s132, 0
      %s135 = sadd.s32 %s134, 1
      %s136 = scalar_select %p133, %s134, %s135
      %p139 = pneg %p133
      %p140 = scmp.eq.s32.totalorder %s14, 3
      %p141 = por %p139, %p140
      %p142 = scmp.ne.s32.totalorder %s134, %s137
      %p143 = scmp.eq.s32.totalorder %s14, 0
      %p144 = por %p142, %p143
      %p145 = scmp.ne.s32.totalorder %s134, %s137
      %p146 = scmp.eq.s32.totalorder %s19, 3
      %p147 = por %p145, %p146
      %p148 = scmp.ne.s32.totalorder %s137, %s138
      %p149 = scmp.eq.s32.totalorder %s19, 0
      %p150 = por %p148, %p149
      %p151 = scmp.ne.s32.totalorder %s137, %s138
      %p152 = scmp.eq.s32.totalorder %s20, 3
      %p153 = por %p151, %p152
      %p155 = scmp.ne.s32.totalorder %s138, %s154
      %p156 = scmp.eq.s32.totalorder %s20, 0
      %p157 = por %p155, %p156
      %p158 = scmp.le.s32.totalorder 1, %s14
      %p159 = scmp.lt.s32.totalorder %s14, 5
      %p160 = pnand %p158, %p159
      %p161 = pneg %p160
      // Predicated region
      $region9: #{tpu_custom_call.1} parent=5 // pred_check
        _
      $region10: #{tpu_custom_call.1} parent=5 // pred_check_branch
        %163 = sbr.rel (%p160) target = $region12
      $region11: #{tpu_custom_call.1} parent=5 // pred_region
        %s164 = ssub.s32 %s14, 1
        // Predicated region
        $region13: #{tpu_custom_call.1} parent=11 // pred_check
          %p165 = pneg %p61
        $region14: #{tpu_custom_call.1} parent=11 // pred_check_branch
          %167 = sbr.rel (%p165) target = $region16
        $region15: #{tpu_custom_call.1} parent=11 // pred_region
          _
        $region16: #{tpu_custom_call.1} parent=11 // pred_fallthru
          _
        // Predicated region
        $region17: #{tpu_custom_call.1} parent=11 // pred_check
          %p168 = pneg %p82
        $region18: #{tpu_custom_call.1} parent=11 // pred_check_branch
          %170 = sbr.rel (%p168) target = $region20
        $region19: #{tpu_custom_call.1} parent=11 // pred_region
          _
        $region20: #{tpu_custom_call.1} parent=11 // pred_fallthru
          _
        // Predicated region
        $region21: #{tpu_custom_call.1} parent=11 // pred_check
          %p171 = pneg %p103
        $region22: #{tpu_custom_call.1} parent=11 // pred_check_branch
          %173 = sbr.rel (%p171) target = $region24
        $region23: #{tpu_custom_call.1} parent=11 // pred_region
          _
        $region24: #{tpu_custom_call.1} parent=11 // pred_fallthru
          _
        // Predicated region
        $region25: #{tpu_custom_call.1} parent=11 // pred_check
          %p174 = pneg %p124
        $region26: #{tpu_custom_call.1} parent=11 // pred_check_branch
          %176 = sbr.rel (%p174) target = $region28
        $region27: #{tpu_custom_call.1} parent=11 // pred_region
          _
        $region28: #{tpu_custom_call.1} parent=11 // pred_fallthru
          _
      $region12: #{tpu_custom_call.1} parent=5 // pred_fallthru
        _
      %p177 = scmp.lt.s32.totalorder %s14, 4
      // Predicated region
      $region29: #{tpu_custom_call.1} parent=5 // pred_check
        %p178 = pneg %p177
      $region30: #{tpu_custom_call.1} parent=5 // pred_check_branch
        %180 = sbr.rel (%p178) target = $region32
      $region31: #{tpu_custom_call.1} parent=5 // pred_region
        // Predicated region
        $region33: #{tpu_custom_call.1} parent=31 // pred_check
          %p181 = pneg %p34
        $region34: #{tpu_custom_call.1} parent=31 // pred_check_branch
          %183 = sbr.rel (%p181) target = $region36
        $region35: #{tpu_custom_call.1} parent=31 // pred_region
          %s184 = smul.u32 4, %s14
          %p185 = scmp.lt.s32.totalorder %s184, 15
          %s186 = scalar_select %p185, %s184, 15
          %s187 = scalar_lea.vmem %s0, %s186
          %s188 = smul.u32 4, %s14
        $region36: #{tpu_custom_call.1} parent=31 // pred_fallthru
          _
      $region32: #{tpu_custom_call.1} parent=5 // pred_fallthru
        _
      %p189 = scmp.le.s32.totalorder 1, %s14
      %p190 = scmp.lt.s32.totalorder %s14, 5
      %p191 = pnand %p189, %p190
      %p192 = pneg %p191
      // Predicated region
      $region37: #{tpu_custom_call.1} parent=5 // pred_check
        _
      $region38: #{tpu_custom_call.1} parent=5 // pred_check_branch
        %194 = sbr.rel (%p191) target = $region40
      $region39: #{tpu_custom_call.1} parent=5 // pred_region
        %s195 = ssub.s32 %s14, 1
        %s196 = smul.u32 4, %s19
        %p197 = scmp.lt.s32.totalorder %s196, 15
        %s198 = scalar_select %p197, %s196, 15
        %s199 = scalar_lea.vmem %s0, %s198
        %p200 = pneg %p40
        %p201 = pneg %p37
        %p202 = pneg %p61
        %p203 = pneg %p58
        %p204 = pneg %p82
        %p205 = pneg %p79
        %p206 = pneg %p103
        %p207 = pneg %p100
        %p208 = pneg %p124
        %p209 = pneg %p121
        %p210 = pneg %p150
        %p211 = pneg %p147
        %s212 = sand.u32 %s137, 1
        %s213 = scalar_lea.sflag [#allocation3], %s212
        %s214 = sand.u32 %s137, 1
        %s215 = smul.addr %s214, 32
        %s216 = scalar_lea.vmem [#allocation2], %s215
        %s217 = smul.u32 4, %s19
        %p218 = scmp.lt.s32.totalorder %s217, 15
        %s219 = scalar_select %p218, %s217, 15
        %s220 = scalar_lea.vmem %s0, %s219
        %s221 = smul.u32 4, %s19
        %s222 = smul.u32 4, %s19
        %v223 = vld [vmem:[%s220] sm:$0xf]
        %v224 = vld [vmem:[%s4] sm:$0xff]
        %v225 = vld [vmem:[%s4 + $0x8] sm:$0xff]
        %v227 = vlaneseq
        %v228 = vshrl.u32 %v227, 7
        %v229 = vsub.s32 0, %v228
        %v230 = vrot.slane %v223, %v229
        %v231 = vlaneseq
        %v232 = vshrl.u32 %v231, 7
        %v233 = vsub.s32 1, %v232
        %v234 = vrot.slane %v223, %v233
        %v235 = vlaneseq
        %v236 = vshrl.u32 %v235, 7
        %v237 = vsub.s32 2, %v236
        %v238 = vrot.slane %v223, %v237
        %v239 = vlaneseq
        %v240 = vshrl.u32 %v239, 7
        %v241 = vsub.s32 3, %v240
        %v242 = vrot.slane %v223, %v241
        %248 = vset.pattern.permute.xlu0 10
        %249 = vperm.xlu0 %248, %v224
        %v250 = vpop.permute.xlu0 %249
        %253 = vset.pattern.permute.xlu0 10
        %254 = vperm.xlu0 %253, %v225
        %v255 = vpop.permute.xlu0 %254
        %v257 = vmul.f32 %v230, %v250
        %v258 = vmul.f32 %v234, %v250
        %v259 = vmul.f32 %v238, %v250
        %v260 = vmul.f32 %v242, %v250
        %v261 = vmul.f32 %v230, %v255
        %v262 = vmul.f32 %v234, %v255
        %v263 = vmul.f32 %v238, %v255
        %v264 = vmul.f32 %v242, %v255
        %265 = vset.pattern.permute.xlu0 11
        %266 = vperm.xlu0 %265, %v224
        %v267 = vpop.permute.xlu0 %266
        %269 = vset.pattern.permute.xlu0 11
        %270 = vperm.xlu0 %269, %v225
        %v271 = vpop.permute.xlu0 %270
        %v273 = vadd.f32 %v257, %v267
        %v274 = vadd.f32 %v258, %v267
        %v275 = vadd.f32 %v259, %v267
        %v276 = vadd.f32 %v260, %v267
        %v277 = vadd.f32 %v261, %v271
        %v278 = vadd.f32 %v262, %v271
        %v279 = vadd.f32 %v263, %v271
        %v280 = vadd.f32 %v264, %v271
        %v281 = vand.u32 2147483647, %v273
        %vm282 = vcmp.le.f32.partialorder %v281, 0.7853982
        %vm283 = vcmp.lt.s32.totalorder %v273, 0
        %v284 = vand.u32 %v273, 2139095040
        %v285 = vshrl.u32 %v284, 23
        %v286 = vsub.s32 %v285, 127
        %v287 = vand.u32 2147483647, %v273
        %v288 = vand.u32 %v287, 8388607
        %v289 = vor.u32 %v288, 8388608
        %v290 = vsub.s32 0, %v289
        %v291 = vadd.s32 %v286, 1
        %vm292 = vcmp.gt.s32.totalorder %v291, 0
        %v293 = vsel %vm292, %v291, 0
        %v294 = vshrl.u32 %v293, 5
        %v295 = vand.u32 %v293, 31
        %v296 = vsub.s32 32, %v295
        %v297 = vshrl.u32 683565275, %v296
        %v298 = vshll.u32 683565275, %v295
        %v299 = vshrl.u32 2475754826, %v296
        %v300 = vor.u32 %v298, %v299
        %v301 = vshll.u32 2475754826, %v295
        %v302 = vshrl.u32 2131351028, %v296
        %v303 = vor.u32 %v301, %v302
        %v304 = vshll.u32 2131351028, %v295
        %v305 = vshrl.u32 2102212464, %v296
        %v306 = vor.u32 %v304, %v305
        %v307 = vshll.u32 2102212464, %v295
        %v308 = vshrl.u32 920167782, %v296
        %v309 = vor.u32 %v307, %v308
        %v310 = vshll.u32 920167782, %v295
        %v311 = vshrl.u32 1326507024, %v296
        %v312 = vor.u32 %v310, %v311
        %vm313 = vcmp.lt.s32.totalorder %v294, 1
        %vm314 = vcmp.lt.s32.totalorder %v294, 2
        %vm315 = vcmp.lt.s32.totalorder %v294, 3
        %vm316 = vcmp.lt.s32.totalorder %v294, 4
        %v317 = vsel %vm313, %v297, %v300
        %v318 = vsel %vm316, %v306, 2102212464
        %v319 = vsel %vm315, %v303, %v318
        %v320 = vsel %vm314, %v317, %v319
        %v321 = vsel %vm313, %v300, %v303
        %v322 = vsel %vm316, %v309, 920167782
        %v323 = vsel %vm315, %v306, %v322
        %v324 = vsel %vm314, %v321, %v323
        %v325 = vsel %vm313, %v303, %v306
        %v326 = vsel %vm316, %v312, 1326507024
        %v327 = vsel %vm315, %v309, %v326
        %v328 = vsel %vm314, %v325, %v327
        %v329 = vshll.u32 %v289, 8
        %v330 = vmul.u32.u64.compose %v329, %v328
        %v331 = vextract.low.u32 %v330
        %v332 = vextract.high.u32 %v330
        %v333 = vmul.u32.u64.compose %v329, %v324
        %v334 = vextract.low.u32 %v333
        %v335 = vextract.high.u32 %v333
        %v336 = vmul.u32 %v329, %v320
        %v337 = vadd.s32 %v332, %v334
        %vm338 = vc.u32 %v332, %v334
        %v339 = vadd.s32 %v335, 1
        %v340 = vsel %vm338, %v339, %v335
        %v341 = vadd.s32 %v336, %v340
        %v342 = vadd.s32 %v341, 536870912
        %v343 = vshrl.u32 %v342, 30
        %v344 = vshll.u32 %v343, 30
        %v345 = vsub.s32 %v341, %v344
        %vm346 = vcmp.lt.s32.totalorder %v345, 0
        %v347 = vsub.s32 0, %v345
        %v348 = vsel %vm346, %v347, %v345
        %v349 = vclz %v348
        %v350 = vsub.s32 %v349, 2
        %vm351 = vcmp.gt.s32.totalorder 0, %v350
        %v352 = vsel %vm351, 0, %v350
        %v353 = vsub.s32 32, %v352
        %v354 = vshll.u32 %v345, %v352
        %v355 = vshrl.u32 %v337, %v353
        %v356 = vor.u32 %v354, %v355
        %v357 = vsub.s32 4294967266, %v352
        %v358 = vadd.s32 %v357, 127
        %v359 = vshll.u32 %v358, 23
        %v360 = vor.u32 4788187, %v359
        %v361 = vand.u32 2147483647, %v360
        %v363 = vcvt.s32.f32 %v356
        %v364 = vmul.f32 %v363, %v361
        %v365 = vxor.u32 %v364, 2147483648
        %v366 = vsel %vm283, %v365, %v364
        %v367 = vsub.s32 4, %v343
        %v368 = vsel %vm283, %v367, %v343
        %v369 = vsel %vm282, %v273, %v366
        %v370 = vsel %vm282, 0, %v368
        %v371 = vcosq.f32.pop %v369
        %v372 = vsinq.f32.pop %v369
        %vm373 = vweird.f32 %v273
        %v374 = vadd.s32 %v370, 3
        %v375 = vand.u32 %v374, 3
        %vm376 = vcmp.lt.s32.totalorder %v375, 2
        %vm377 = vcmp.eq.s32.totalorder %v375, 0
        %v378 = vxor.u32 %v372, 2147483648
        %v379 = vsel %vm377, %v371, %v378
        %vm380 = vcmp.eq.s32.totalorder %v375, 2
        %v381 = vxor.u32 %v371, 2147483648
        %v382 = vsel %vm380, %v381, %v372
        %v383 = vsel %vm376, %v379, %v382
        %v384 = vsel %vm373, nan, %v383
        %v385 = vand.u32 2147483647, %v274
        %vm386 = vcmp.le.f32.partialorder %v385, 0.7853982
        %vm387 = vcmp.lt.s32.totalorder %v274, 0
        %v388 = vand.u32 %v274, 2139095040
        %v389 = vshrl.u32 %v388, 23
        %v390 = vsub.s32 %v389, 127
        %v391 = vand.u32 2147483647, %v274
        %v392 = vand.u32 %v391, 8388607
        %v393 = vor.u32 %v392, 8388608
        %v394 = vsub.s32 0, %v393
        %v395 = vadd.s32 %v390, 1
        %vm396 = vcmp.gt.s32.totalorder %v395, 0
        %v397 = vsel %vm396, %v395, 0
        %v398 = vshrl.u32 %v397, 5
        %v399 = vand.u32 %v397, 31
        %v400 = vsub.s32 32, %v399
        %v401 = vshrl.u32 683565275, %v400
        %v402 = vshll.u32 683565275, %v399
        %v403 = vshrl.u32 2475754826, %v400
        %v404 = vor.u32 %v402, %v403
        %v405 = vshll.u32 2475754826, %v399
        %v406 = vshrl.u32 2131351028, %v400
        %v407 = vor.u32 %v405, %v406
        %v408 = vshll.u32 2131351028, %v399
        %v409 = vshrl.u32 2102212464, %v400
        %v410 = vor.u32 %v408, %v409
        %v411 = vshll.u32 2102212464, %v399
        %v412 = vshrl.u32 920167782, %v400
        %v413 = vor.u32 %v411, %v412
        %v414 = vshll.u32 920167782, %v399
        %v415 = vshrl.u32 1326507024, %v400
        %v416 = vor.u32 %v414, %v415
        %vm417 = vcmp.lt.s32.totalorder %v398, 1
        %vm418 = vcmp.lt.s32.totalorder %v398, 2
        %vm419 = vcmp.lt.s32.totalorder %v398, 3
        %vm420 = vcmp.lt.s32.totalorder %v398, 4
        %v421 = vsel %vm417, %v401, %v404
        %v422 = vsel %vm420, %v410, 2102212464
        %v423 = vsel %vm419, %v407, %v422
        %v424 = vsel %vm418, %v421, %v423
        %v425 = vsel %vm417, %v404, %v407
        %v426 = vsel %vm420, %v413, 920167782
        %v427 = vsel %vm419, %v410, %v426
        %v428 = vsel %vm418, %v425, %v427
        %v429 = vsel %vm417, %v407, %v410
        %v430 = vsel %vm420, %v416, 1326507024
        %v431 = vsel %vm419, %v413, %v430
        %v432 = vsel %vm418, %v429, %v431
        %v433 = vshll.u32 %v393, 8
        %v434 = vmul.u32.u64.compose %v433, %v432
        %v435 = vextract.low.u32 %v434
        %v436 = vextract.high.u32 %v434
        %v437 = vmul.u32.u64.compose %v433, %v428
        %v438 = vextract.low.u32 %v437
        %v439 = vextract.high.u32 %v437
        %v440 = vmul.u32 %v433, %v424
        %v441 = vadd.s32 %v436, %v438
        %vm442 = vc.u32 %v436, %v438
        %v443 = vadd.s32 %v439, 1
        %v444 = vsel %vm442, %v443, %v439
        %v445 = vadd.s32 %v440, %v444
        %v446 = vadd.s32 %v445, 536870912
        %v447 = vshrl.u32 %v446, 30
        %v448 = vshll.u32 %v447, 30
        %v449 = vsub.s32 %v445, %v448
        %vm450 = vcmp.lt.s32.totalorder %v449, 0
        %v451 = vsub.s32 0, %v449
        %v452 = vsel %vm450, %v451, %v449
        %v453 = vclz %v452
        %v454 = vsub.s32 %v453, 2
        %vm455 = vcmp.gt.s32.totalorder 0, %v454
        %v456 = vsel %vm455, 0, %v454
        %v457 = vsub.s32 32, %v456
        %v458 = vshll.u32 %v449, %v456
        %v459 = vshrl.u32 %v441, %v457
        %v460 = vor.u32 %v458, %v459
        %v461 = vsub.s32 4294967266, %v456
        %v462 = vadd.s32 %v461, 127
        %v463 = vshll.u32 %v462, 23
        %v464 = vor.u32 4788187, %v463
        %v465 = vand.u32 2147483647, %v464
        %v467 = vcvt.s32.f32 %v460
        %v468 = vmul.f32 %v467, %v465
        %v469 = vxor.u32 %v468, 2147483648
        %v470 = vsel %vm387, %v469, %v468
        %v471 = vsub.s32 4, %v447
        %v472 = vsel %vm387, %v471, %v447
        %v473 = vsel %vm386, %v274, %v470
        %v474 = vsel %vm386, 0, %v472
        %v475 = vcosq.f32.pop %v473
        %v476 = vsinq.f32.pop %v473
        %vm477 = vweird.f32 %v274
        %v478 = vadd.s32 %v474, 3
        %v479 = vand.u32 %v478, 3
        %vm480 = vcmp.lt.s32.totalorder %v479, 2
        %vm481 = vcmp.eq.s32.totalorder %v479, 0
        %v482 = vxor.u32 %v476, 2147483648
        %v483 = vsel %vm481, %v475, %v482
        %vm484 = vcmp.eq.s32.totalorder %v479, 2
        %v485 = vxor.u32 %v475, 2147483648
        %v486 = vsel %vm484, %v485, %v476
        %v487 = vsel %vm480, %v483, %v486
        %v488 = vsel %vm477, nan, %v487
        %v489 = vand.u32 2147483647, %v275
        %vm490 = vcmp.le.f32.partialorder %v489, 0.7853982
        %vm491 = vcmp.lt.s32.totalorder %v275, 0
        %v492 = vand.u32 %v275, 2139095040
        %v493 = vshrl.u32 %v492, 23
        %v494 = vsub.s32 %v493, 127
        %v495 = vand.u32 2147483647, %v275
        %v496 = vand.u32 %v495, 8388607
        %v497 = vor.u32 %v496, 8388608
        %v498 = vsub.s32 0, %v497
        %v499 = vadd.s32 %v494, 1
        %vm500 = vcmp.gt.s32.totalorder %v499, 0
        %v501 = vsel %vm500, %v499, 0
        %v502 = vshrl.u32 %v501, 5
        %v503 = vand.u32 %v501, 31
        %v504 = vsub.s32 32, %v503
        %v505 = vshrl.u32 683565275, %v504
        %v506 = vshll.u32 683565275, %v503
        %v507 = vshrl.u32 2475754826, %v504
        %v508 = vor.u32 %v506, %v507
        %v509 = vshll.u32 2475754826, %v503
        %v510 = vshrl.u32 2131351028, %v504
        %v511 = vor.u32 %v509, %v510
        %v512 = vshll.u32 2131351028, %v503
        %v513 = vshrl.u32 2102212464, %v504
        %v514 = vor.u32 %v512, %v513
        %v515 = vshll.u32 2102212464, %v503
        %v516 = vshrl.u32 920167782, %v504
        %v517 = vor.u32 %v515, %v516
        %v518 = vshll.u32 920167782, %v503
        %v519 = vshrl.u32 1326507024, %v504
        %v520 = vor.u32 %v518, %v519
        %vm521 = vcmp.lt.s32.totalorder %v502, 1
        %vm522 = vcmp.lt.s32.totalorder %v502, 2
        %vm523 = vcmp.lt.s32.totalorder %v502, 3
        %vm524 = vcmp.lt.s32.totalorder %v502, 4
        %v525 = vsel %vm521, %v505, %v508
        %v526 = vsel %vm524, %v514, 2102212464
        %v527 = vsel %vm523, %v511, %v526
        %v528 = vsel %vm522, %v525, %v527
        %v529 = vsel %vm521, %v508, %v511
        %v530 = vsel %vm524, %v517, 920167782
        %v531 = vsel %vm523, %v514, %v530
        %v532 = vsel %vm522, %v529, %v531
        %v533 = vsel %vm521, %v511, %v514
        %v534 = vsel %vm524, %v520, 1326507024
        %v535 = vsel %vm523, %v517, %v534
        %v536 = vsel %vm522, %v533, %v535
        %v537 = vshll.u32 %v497, 8
        %v538 = vmul.u32.u64.compose %v537, %v536
        %v539 = vextract.low.u32 %v538
        %v540 = vextract.high.u32 %v538
        %v541 = vmul.u32.u64.compose %v537, %v532
        %v542 = vextract.low.u32 %v541
        %v543 = vextract.high.u32 %v541
        %v544 = vmul.u32 %v537, %v528
        %v545 = vadd.s32 %v540, %v542
        %vm546 = vc.u32 %v540, %v542
        %v547 = vadd.s32 %v543, 1
        %v548 = vsel %vm546, %v547, %v543
        %v549 = vadd.s32 %v544, %v548
        %v550 = vadd.s32 %v549, 536870912
        %v551 = vshrl.u32 %v550, 30
        %v552 = vshll.u32 %v551, 30
        %v553 = vsub.s32 %v549, %v552
        %vm554 = vcmp.lt.s32.totalorder %v553, 0
        %v555 = vsub.s32 0, %v553
        %v556 = vsel %vm554, %v555, %v553
        %v557 = vclz %v556
        %v558 = vsub.s32 %v557, 2
        %vm559 = vcmp.gt.s32.totalorder 0, %v558
        %v560 = vsel %vm559, 0, %v558
        %v561 = vsub.s32 32, %v560
        %v562 = vshll.u32 %v553, %v560
        %v563 = vshrl.u32 %v545, %v561
        %v564 = vor.u32 %v562, %v563
        %v565 = vsub.s32 4294967266, %v560
        %v566 = vadd.s32 %v565, 127
        %v567 = vshll.u32 %v566, 23
        %v568 = vor.u32 4788187, %v567
        %v569 = vand.u32 2147483647, %v568
        %v571 = vcvt.s32.f32 %v564
        %v572 = vmul.f32 %v571, %v569
        %v573 = vxor.u32 %v572, 2147483648
        %v574 = vsel %vm491, %v573, %v572
        %v575 = vsub.s32 4, %v551
        %v576 = vsel %vm491, %v575, %v551
        %v577 = vsel %vm490, %v275, %v574
        %v578 = vsel %vm490, 0, %v576
        %v579 = vcosq.f32.pop %v577
        %v580 = vsinq.f32.pop %v577
        %vm581 = vweird.f32 %v275
        %v582 = vadd.s32 %v578, 3
        %v583 = vand.u32 %v582, 3
        %vm584 = vcmp.lt.s32.totalorder %v583, 2
        %vm585 = vcmp.eq.s32.totalorder %v583, 0
        %v586 = vxor.u32 %v580, 2147483648
        %v587 = vsel %vm585, %v579, %v586
        %vm588 = vcmp.eq.s32.totalorder %v583, 2
        %v589 = vxor.u32 %v579, 2147483648
        %v590 = vsel %vm588, %v589, %v580
        %v591 = vsel %vm584, %v587, %v590
        %v592 = vsel %vm581, nan, %v591
        %v593 = vand.u32 2147483647, %v276
        %vm594 = vcmp.le.f32.partialorder %v593, 0.7853982
        %vm595 = vcmp.lt.s32.totalorder %v276, 0
        %v596 = vand.u32 %v276, 2139095040
        %v597 = vshrl.u32 %v596, 23
        %v598 = vsub.s32 %v597, 127
        %v599 = vand.u32 2147483647, %v276
        %v600 = vand.u32 %v599, 8388607
        %v601 = vor.u32 %v600, 8388608
        %v602 = vsub.s32 0, %v601
        %v603 = vadd.s32 %v598, 1
        %vm604 = vcmp.gt.s32.totalorder %v603, 0
        %v605 = vsel %vm604, %v603, 0
        %v606 = vshrl.u32 %v605, 5
        %v607 = vand.u32 %v605, 31
        %v608 = vsub.s32 32, %v607
        %v609 = vshrl.u32 683565275, %v608
        %v610 = vshll.u32 683565275, %v607
        %v611 = vshrl.u32 2475754826, %v608
        %v612 = vor.u32 %v610, %v611
        %v613 = vshll.u32 2475754826, %v607
        %v614 = vshrl.u32 2131351028, %v608
        %v615 = vor.u32 %v613, %v614
        %v616 = vshll.u32 2131351028, %v607
        %v617 = vshrl.u32 2102212464, %v608
        %v618 = vor.u32 %v616, %v617
        %v619 = vshll.u32 2102212464, %v607
        %v620 = vshrl.u32 920167782, %v608
        %v621 = vor.u32 %v619, %v620
        %v622 = vshll.u32 920167782, %v607
        %v623 = vshrl.u32 1326507024, %v608
        %v624 = vor.u32 %v622, %v623
        %vm625 = vcmp.lt.s32.totalorder %v606, 1
        %vm626 = vcmp.lt.s32.totalorder %v606, 2
        %vm627 = vcmp.lt.s32.totalorder %v606, 3
        %vm628 = vcmp.lt.s32.totalorder %v606, 4
        %v629 = vsel %vm625, %v609, %v612
        %v630 = vsel %vm628, %v618, 2102212464
        %v631 = vsel %vm627, %v615, %v630
        %v632 = vsel %vm626, %v629, %v631
        %v633 = vsel %vm625, %v612, %v615
        %v634 = vsel %vm628, %v621, 920167782
        %v635 = vsel %vm627, %v618, %v634
        %v636 = vsel %vm626, %v633, %v635
        %v637 = vsel %vm625, %v615, %v618
        %v638 = vsel %vm628, %v624, 1326507024
        %v639 = vsel %vm627, %v621, %v638
        %v640 = vsel %vm626, %v637, %v639
        %v641 = vshll.u32 %v601, 8
        %v642 = vmul.u32.u64.compose %v641, %v640
        %v643 = vextract.low.u32 %v642
        %v644 = vextract.high.u32 %v642
        %v645 = vmul.u32.u64.compose %v641, %v636
        %v646 = vextract.low.u32 %v645
        %v647 = vextract.high.u32 %v645
        %v648 = vmul.u32 %v641, %v632
        %v649 = vadd.s32 %v644, %v646
        %vm650 = vc.u32 %v644, %v646
        %v651 = vadd.s32 %v647, 1
        %v652 = vsel %vm650, %v651, %v647
        %v653 = vadd.s32 %v648, %v652
        %v654 = vadd.s32 %v653, 536870912
        %v655 = vshrl.u32 %v654, 30
        %v656 = vshll.u32 %v655, 30
        %v657 = vsub.s32 %v653, %v656
        %vm658 = vcmp.lt.s32.totalorder %v657, 0
        %v659 = vsub.s32 0, %v657
        %v660 = vsel %vm658, %v659, %v657
        %v661 = vclz %v660
        %v662 = vsub.s32 %v661, 2
        %vm663 = vcmp.gt.s32.totalorder 0, %v662
        %v664 = vsel %vm663, 0, %v662
        %v665 = vsub.s32 32, %v664
        %v666 = vshll.u32 %v657, %v664
        %v667 = vshrl.u32 %v649, %v665
        %v668 = vor.u32 %v666, %v667
        %v669 = vsub.s32 4294967266, %v664
        %v670 = vadd.s32 %v669, 127
        %v671 = vshll.u32 %v670, 23
        %v672 = vor.u32 4788187, %v671
        %v673 = vand.u32 2147483647, %v672
        %v675 = vcvt.s32.f32 %v668
        %v676 = vmul.f32 %v675, %v673
        %v677 = vxor.u32 %v676, 2147483648
        %v678 = vsel %vm595, %v677, %v676
        %v679 = vsub.s32 4, %v655
        %v680 = vsel %vm595, %v679, %v655
        %v681 = vsel %vm594, %v276, %v678
        %v682 = vsel %vm594, 0, %v680
        %v683 = vcosq.f32.pop %v681
        %v684 = vsinq.f32.pop %v681
        %vm685 = vweird.f32 %v276
        %v686 = vadd.s32 %v682, 3
        %v687 = vand.u32 %v686, 3
        %vm688 = vcmp.lt.s32.totalorder %v687, 2
        %vm689 = vcmp.eq.s32.totalorder %v687, 0
        %v690 = vxor.u32 %v684, 2147483648
        %v691 = vsel %vm689, %v683, %v690
        %vm692 = vcmp.eq.s32.totalorder %v687, 2
        %v693 = vxor.u32 %v683, 2147483648
        %v694 = vsel %vm692, %v693, %v684
        %v695 = vsel %vm688, %v691, %v694
        %v696 = vsel %vm685, nan, %v695
        %v697 = vand.u32 2147483647, %v277
        %vm698 = vcmp.le.f32.partialorder %v697, 0.7853982
        %vm699 = vcmp.lt.s32.totalorder %v277, 0
        %v700 = vand.u32 %v277, 2139095040
        %v701 = vshrl.u32 %v700, 23
        %v702 = vsub.s32 %v701, 127
        %v703 = vand.u32 2147483647, %v277
        %v704 = vand.u32 %v703, 8388607
        %v705 = vor.u32 %v704, 8388608
        %v706 = vsub.s32 0, %v705
        %v707 = vadd.s32 %v702, 1
        %vm708 = vcmp.gt.s32.totalorder %v707, 0
        %v709 = vsel %vm708, %v707, 0
        %v710 = vshrl.u32 %v709, 5
        %v711 = vand.u32 %v709, 31
        %v712 = vsub.s32 32, %v711
        %v713 = vshrl.u32 683565275, %v712
        %v714 = vshll.u32 683565275, %v711
        %v715 = vshrl.u32 2475754826, %v712
        %v716 = vor.u32 %v714, %v715
        %v717 = vshll.u32 2475754826, %v711
        %v718 = vshrl.u32 2131351028, %v712
        %v719 = vor.u32 %v717, %v718
        %v720 = vshll.u32 2131351028, %v711
        %v721 = vshrl.u32 2102212464, %v712
        %v722 = vor.u32 %v720, %v721
        %v723 = vshll.u32 2102212464, %v711
        %v724 = vshrl.u32 920167782, %v712
        %v725 = vor.u32 %v723, %v724
        %v726 = vshll.u32 920167782, %v711
        %v727 = vshrl.u32 1326507024, %v712
        %v728 = vor.u32 %v726, %v727
        %vm729 = vcmp.lt.s32.totalorder %v710, 1
        %vm730 = vcmp.lt.s32.totalorder %v710, 2
        %vm731 = vcmp.lt.s32.totalorder %v710, 3
        %vm732 = vcmp.lt.s32.totalorder %v710, 4
        %v733 = vsel %vm729, %v713, %v716
        %v734 = vsel %vm732, %v722, 2102212464
        %v735 = vsel %vm731, %v719, %v734
        %v736 = vsel %vm730, %v733, %v735
        %v737 = vsel %vm729, %v716, %v719
        %v738 = vsel %vm732, %v725, 920167782
        %v739 = vsel %vm731, %v722, %v738
        %v740 = vsel %vm730, %v737, %v739
        %v741 = vsel %vm729, %v719, %v722
        %v742 = vsel %vm732, %v728, 1326507024
        %v743 = vsel %vm731, %v725, %v742
        %v744 = vsel %vm730, %v741, %v743
        %v745 = vshll.u32 %v705, 8
        %v746 = vmul.u32.u64.compose %v745, %v744
        %v747 = vextract.low.u32 %v746
        %v748 = vextract.high.u32 %v746
        %v749 = vmul.u32.u64.compose %v745, %v740
        %v750 = vextract.low.u32 %v749
        %v751 = vextract.high.u32 %v749
        %v752 = vmul.u32 %v745, %v736
        %v753 = vadd.s32 %v748, %v750
        %vm754 = vc.u32 %v748, %v750
        %v755 = vadd.s32 %v751, 1
        %v756 = vsel %vm754, %v755, %v751
        %v757 = vadd.s32 %v752, %v756
        %v758 = vadd.s32 %v757, 536870912
        %v759 = vshrl.u32 %v758, 30
        %v760 = vshll.u32 %v759, 30
        %v761 = vsub.s32 %v757, %v760
        %vm762 = vcmp.lt.s32.totalorder %v761, 0
        %v763 = vsub.s32 0, %v761
        %v764 = vsel %vm762, %v763, %v761
        %v765 = vclz %v764
        %v766 = vsub.s32 %v765, 2
        %vm767 = vcmp.gt.s32.totalorder 0, %v766
        %v768 = vsel %vm767, 0, %v766
        %v769 = vsub.s32 32, %v768
        %v770 = vshll.u32 %v761, %v768
        %v771 = vshrl.u32 %v753, %v769
        %v772 = vor.u32 %v770, %v771
        %v773 = vsub.s32 4294967266, %v768
        %v774 = vadd.s32 %v773, 127
        %v775 = vshll.u32 %v774, 23
        %v776 = vor.u32 4788187, %v775
        %v777 = vand.u32 2147483647, %v776
        %v779 = vcvt.s32.f32 %v772
        %v780 = vmul.f32 %v779, %v777
        %v781 = vxor.u32 %v780, 2147483648
        %v782 = vsel %vm699, %v781, %v780
        %v783 = vsub.s32 4, %v759
        %v784 = vsel %vm699, %v783, %v759
        %v785 = vsel %vm698, %v277, %v782
        %v786 = vsel %vm698, 0, %v784
        %v787 = vcosq.f32.pop %v785
        %v788 = vsinq.f32.pop %v785
        %vm789 = vweird.f32 %v277
        %v790 = vadd.s32 %v786, 3
        %v791 = vand.u32 %v790, 3
        %vm792 = vcmp.lt.s32.totalorder %v791, 2
        %vm793 = vcmp.eq.s32.totalorder %v791, 0
        %v794 = vxor.u32 %v788, 2147483648
        %v795 = vsel %vm793, %v787, %v794
        %vm796 = vcmp.eq.s32.totalorder %v791, 2
        %v797 = vxor.u32 %v787, 2147483648
        %v798 = vsel %vm796, %v797, %v788
        %v799 = vsel %vm792, %v795, %v798
        %v800 = vsel %vm789, nan, %v799
        %v801 = vand.u32 2147483647, %v278
        %vm802 = vcmp.le.f32.partialorder %v801, 0.7853982
        %vm803 = vcmp.lt.s32.totalorder %v278, 0
        %v804 = vand.u32 %v278, 2139095040
        %v805 = vshrl.u32 %v804, 23
        %v806 = vsub.s32 %v805, 127
        %v807 = vand.u32 2147483647, %v278
        %v808 = vand.u32 %v807, 8388607
        %v809 = vor.u32 %v808, 8388608
        %v810 = vsub.s32 0, %v809
        %v811 = vadd.s32 %v806, 1
        %vm812 = vcmp.gt.s32.totalorder %v811, 0
        %v813 = vsel %vm812, %v811, 0
        %v814 = vshrl.u32 %v813, 5
        %v815 = vand.u32 %v813, 31
        %v816 = vsub.s32 32, %v815
        %v817 = vshrl.u32 683565275, %v816
        %v818 = vshll.u32 683565275, %v815
        %v819 = vshrl.u32 2475754826, %v816
        %v820 = vor.u32 %v818, %v819
        %v821 = vshll.u32 2475754826, %v815
        %v822 = vshrl.u32 2131351028, %v816
        %v823 = vor.u32 %v821, %v822
        %v824 = vshll.u32 2131351028, %v815
        %v825 = vshrl.u32 2102212464, %v816
        %v826 = vor.u32 %v824, %v825
        %v827 = vshll.u32 2102212464, %v815
        %v828 = vshrl.u32 920167782, %v816
        %v829 = vor.u32 %v827, %v828
        %v830 = vshll.u32 920167782, %v815
        %v831 = vshrl.u32 1326507024, %v816
        %v832 = vor.u32 %v830, %v831
        %vm833 = vcmp.lt.s32.totalorder %v814, 1
        %vm834 = vcmp.lt.s32.totalorder %v814, 2
        %vm835 = vcmp.lt.s32.totalorder %v814, 3
        %vm836 = vcmp.lt.s32.totalorder %v814, 4
        %v837 = vsel %vm833, %v817, %v820
        %v838 = vsel %vm836, %v826, 2102212464
        %v839 = vsel %vm835, %v823, %v838
        %v840 = vsel %vm834, %v837, %v839
        %v841 = vsel %vm833, %v820, %v823
        %v842 = vsel %vm836, %v829, 920167782
        %v843 = vsel %vm835, %v826, %v842
        %v844 = vsel %vm834, %v841, %v843
        %v845 = vsel %vm833, %v823, %v826
        %v846 = vsel %vm836, %v832, 1326507024
        %v847 = vsel %vm835, %v829, %v846
        %v848 = vsel %vm834, %v845, %v847
        %v849 = vshll.u32 %v809, 8
        %v850 = vmul.u32.u64.compose %v849, %v848
        %v851 = vextract.low.u32 %v850
        %v852 = vextract.high.u32 %v850
        %v853 = vmul.u32.u64.compose %v849, %v844
        %v854 = vextract.low.u32 %v853
        %v855 = vextract.high.u32 %v853
        %v856 = vmul.u32 %v849, %v840
        %v857 = vadd.s32 %v852, %v854
        %vm858 = vc.u32 %v852, %v854
        %v859 = vadd.s32 %v855, 1
        %v860 = vsel %vm858, %v859, %v855
        %v861 = vadd.s32 %v856, %v860
        %v862 = vadd.s32 %v861, 536870912
        %v863 = vshrl.u32 %v862, 30
        %v864 = vshll.u32 %v863, 30
        %v865 = vsub.s32 %v861, %v864
        %vm866 = vcmp.lt.s32.totalorder %v865, 0
        %v867 = vsub.s32 0, %v865
        %v868 = vsel %vm866, %v867, %v865
        %v869 = vclz %v868
        %v870 = vsub.s32 %v869, 2
        %vm871 = vcmp.gt.s32.totalorder 0, %v870
        %v872 = vsel %vm871, 0, %v870
        %v873 = vsub.s32 32, %v872
        %v874 = vshll.u32 %v865, %v872
        %v875 = vshrl.u32 %v857, %v873
        %v876 = vor.u32 %v874, %v875
        %v877 = vsub.s32 4294967266, %v872
        %v878 = vadd.s32 %v877, 127
        %v879 = vshll.u32 %v878, 23
        %v880 = vor.u32 4788187, %v879
        %v881 = vand.u32 2147483647, %v880
        %v883 = vcvt.s32.f32 %v876
        %v884 = vmul.f32 %v883, %v881
        %v885 = vxor.u32 %v884, 2147483648
        %v886 = vsel %vm803, %v885, %v884
        %v887 = vsub.s32 4, %v863
        %v888 = vsel %vm803, %v887, %v863
        %v889 = vsel %vm802, %v278, %v886
        %v890 = vsel %vm802, 0, %v888
        %v891 = vcosq.f32.pop %v889
        %v892 = vsinq.f32.pop %v889
        %vm893 = vweird.f32 %v278
        %v894 = vadd.s32 %v890, 3
        %v895 = vand.u32 %v894, 3
        %vm896 = vcmp.lt.s32.totalorder %v895, 2
        %vm897 = vcmp.eq.s32.totalorder %v895, 0
        %v898 = vxor.u32 %v892, 2147483648
        %v899 = vsel %vm897, %v891, %v898
        %vm900 = vcmp.eq.s32.totalorder %v895, 2
        %v901 = vxor.u32 %v891, 2147483648
        %v902 = vsel %vm900, %v901, %v892
        %v903 = vsel %vm896, %v899, %v902
        %v904 = vsel %vm893, nan, %v903
        %v905 = vand.u32 2147483647, %v279
        %vm906 = vcmp.le.f32.partialorder %v905, 0.7853982
        %vm907 = vcmp.lt.s32.totalorder %v279, 0
        %v908 = vand.u32 %v279, 2139095040
        %v909 = vshrl.u32 %v908, 23
        %v910 = vsub.s32 %v909, 127
        %v911 = vand.u32 2147483647, %v279
        %v912 = vand.u32 %v911, 8388607
        %v913 = vor.u32 %v912, 8388608
        %v914 = vsub.s32 0, %v913
        %v915 = vadd.s32 %v910, 1
        %vm916 = vcmp.gt.s32.totalorder %v915, 0
        %v917 = vsel %vm916, %v915, 0
        %v918 = vshrl.u32 %v917, 5
        %v919 = vand.u32 %v917, 31
        %v920 = vsub.s32 32, %v919
        %v921 = vshrl.u32 683565275, %v920
        %v922 = vshll.u32 683565275, %v919
        %v923 = vshrl.u32 2475754826, %v920
        %v924 = vor.u32 %v922, %v923
        %v925 = vshll.u32 2475754826, %v919
        %v926 = vshrl.u32 2131351028, %v920
        %v927 = vor.u32 %v925, %v926
        %v928 = vshll.u32 2131351028, %v919
        %v929 = vshrl.u32 2102212464, %v920
        %v930 = vor.u32 %v928, %v929
        %v931 = vshll.u32 2102212464, %v919
        %v932 = vshrl.u32 920167782, %v920
        %v933 = vor.u32 %v931, %v932
        %v934 = vshll.u32 920167782, %v919
        %v935 = vshrl.u32 1326507024, %v920
        %v936 = vor.u32 %v934, %v935
        %vm937 = vcmp.lt.s32.totalorder %v918, 1
        %vm938 = vcmp.lt.s32.totalorder %v918, 2
        %vm939 = vcmp.lt.s32.totalorder %v918, 3
        %vm940 = vcmp.lt.s32.totalorder %v918, 4
        %v941 = vsel %vm937, %v921, %v924
        %v942 = vsel %vm940, %v930, 2102212464
        %v943 = vsel %vm939, %v927, %v942
        %v944 = vsel %vm938, %v941, %v943
        %v945 = vsel %vm937, %v924, %v927
        %v946 = vsel %vm940, %v933, 920167782
        %v947 = vsel %vm939, %v930, %v946
        %v948 = vsel %vm938, %v945, %v947
        %v949 = vsel %vm937, %v927, %v930
        %v950 = vsel %vm940, %v936, 1326507024
        %v951 = vsel %vm939, %v933, %v950
        %v952 = vsel %vm938, %v949, %v951
        %v953 = vshll.u32 %v913, 8
        %v954 = vmul.u32.u64.compose %v953, %v952
        %v955 = vextract.low.u32 %v954
        %v956 = vextract.high.u32 %v954
        %v957 = vmul.u32.u64.compose %v953, %v948
        %v958 = vextract.low.u32 %v957
        %v959 = vextract.high.u32 %v957
        %v960 = vmul.u32 %v953, %v944
        %v961 = vadd.s32 %v956, %v958
        %vm962 = vc.u32 %v956, %v958
        %v963 = vadd.s32 %v959, 1
        %v964 = vsel %vm962, %v963, %v959
        %v965 = vadd.s32 %v960, %v964
        %v966 = vadd.s32 %v965, 536870912
        %v967 = vshrl.u32 %v966, 30
        %v968 = vshll.u32 %v967, 30
        %v969 = vsub.s32 %v965, %v968
        %vm970 = vcmp.lt.s32.totalorder %v969, 0
        %v971 = vsub.s32 0, %v969
        %v972 = vsel %vm970, %v971, %v969
        %v973 = vclz %v972
        %v974 = vsub.s32 %v973, 2
        %vm975 = vcmp.gt.s32.totalorder 0, %v974
        %v976 = vsel %vm975, 0, %v974
        %v977 = vsub.s32 32, %v976
        %v978 = vshll.u32 %v969, %v976
        %v979 = vshrl.u32 %v961, %v977
        %v980 = vor.u32 %v978, %v979
        %v981 = vsub.s32 4294967266, %v976
        %v982 = vadd.s32 %v981, 127
        %v983 = vshll.u32 %v982, 23
        %v984 = vor.u32 4788187, %v983
        %v985 = vand.u32 2147483647, %v984
        %v987 = vcvt.s32.f32 %v980
        %v988 = vmul.f32 %v987, %v985
        %v989 = vxor.u32 %v988, 2147483648
        %v990 = vsel %vm907, %v989, %v988
        %v991 = vsub.s32 4, %v967
        %v992 = vsel %vm907, %v991, %v967
        %v993 = vsel %vm906, %v279, %v990
        %v994 = vsel %vm906, 0, %v992
        %v995 = vcosq.f32.pop %v993
        %v996 = vsinq.f32.pop %v993
        %vm997 = vweird.f32 %v279
        %v998 = vadd.s32 %v994, 3
        %v999 = vand.u32 %v998, 3
        %vm1000 = vcmp.lt.s32.totalorder %v999, 2
        %vm1001 = vcmp.eq.s32.totalorder %v999, 0
        %v1002 = vxor.u32 %v996, 2147483648
        %v1003 = vsel %vm1001, %v995, %v1002
        %vm1004 = vcmp.eq.s32.totalorder %v999, 2
        %v1005 = vxor.u32 %v995, 2147483648
        %v1006 = vsel %vm1004, %v1005, %v996
        %v1007 = vsel %vm1000, %v1003, %v1006
        %v1008 = vsel %vm997, nan, %v1007
        %v1009 = vand.u32 2147483647, %v280
        %vm1010 = vcmp.le.f32.partialorder %v1009, 0.7853982
        %vm1011 = vcmp.lt.s32.totalorder %v280, 0
        %v1012 = vand.u32 %v280, 2139095040
        %v1013 = vshrl.u32 %v1012, 23
        %v1014 = vsub.s32 %v1013, 127
        %v1015 = vand.u32 2147483647, %v280
        %v1016 = vand.u32 %v1015, 8388607
        %v1017 = vor.u32 %v1016, 8388608
        %v1018 = vsub.s32 0, %v1017
        %v1019 = vadd.s32 %v1014, 1
        %vm1020 = vcmp.gt.s32.totalorder %v1019, 0
        %v1021 = vsel %vm1020, %v1019, 0
        %v1022 = vshrl.u32 %v1021, 5
        %v1023 = vand.u32 %v1021, 31
        %v1024 = vsub.s32 32, %v1023
        %v1025 = vshrl.u32 683565275, %v1024
        %v1026 = vshll.u32 683565275, %v1023
        %v1027 = vshrl.u32 2475754826, %v1024
        %v1028 = vor.u32 %v1026, %v1027
        %v1029 = vshll.u32 2475754826, %v1023
        %v1030 = vshrl.u32 2131351028, %v1024
        %v1031 = vor.u32 %v1029, %v1030
        %v1032 = vshll.u32 2131351028, %v1023
        %v1033 = vshrl.u32 2102212464, %v1024
        %v1034 = vor.u32 %v1032, %v1033
        %v1035 = vshll.u32 2102212464, %v1023
        %v1036 = vshrl.u32 920167782, %v1024
        %v1037 = vor.u32 %v1035, %v1036
        %v1038 = vshll.u32 920167782, %v1023
        %v1039 = vshrl.u32 1326507024, %v1024
        %v1040 = vor.u32 %v1038, %v1039
        %vm1041 = vcmp.lt.s32.totalorder %v1022, 1
        %vm1042 = vcmp.lt.s32.totalorder %v1022, 2
        %vm1043 = vcmp.lt.s32.totalorder %v1022, 3
        %vm1044 = vcmp.lt.s32.totalorder %v1022, 4
        %v1045 = vsel %vm1041, %v1025, %v1028
        %v1046 = vsel %vm1044, %v1034, 2102212464
        %v1047 = vsel %vm1043, %v1031, %v1046
        %v1048 = vsel %vm1042, %v1045, %v1047
        %v1049 = vsel %vm1041, %v1028, %v1031
        %v1050 = vsel %vm1044, %v1037, 920167782
        %v1051 = vsel %vm1043, %v1034, %v1050
        %v1052 = vsel %vm1042, %v1049, %v1051
        %v1053 = vsel %vm1041, %v1031, %v1034
        %v1054 = vsel %vm1044, %v1040, 1326507024
        %v1055 = vsel %vm1043, %v1037, %v1054
        %v1056 = vsel %vm1042, %v1053, %v1055
        %v1057 = vshll.u32 %v1017, 8
        %v1058 = vmul.u32.u64.compose %v1057, %v1056
        %v1059 = vextract.low.u32 %v1058
        %v1060 = vextract.high.u32 %v1058
        %v1061 = vmul.u32.u64.compose %v1057, %v1052
        %v1062 = vextract.low.u32 %v1061
        %v1063 = vextract.high.u32 %v1061
        %v1064 = vmul.u32 %v1057, %v1048
        %v1065 = vadd.s32 %v1060, %v1062
        %vm1066 = vc.u32 %v1060, %v1062
        %v1067 = vadd.s32 %v1063, 1
        %v1068 = vsel %vm1066, %v1067, %v1063
        %v1069 = vadd.s32 %v1064, %v1068
        %v1070 = vadd.s32 %v1069, 536870912
        %v1071 = vshrl.u32 %v1070, 30
        %v1072 = vshll.u32 %v1071, 30
        %v1073 = vsub.s32 %v1069, %v1072
        %vm1074 = vcmp.lt.s32.totalorder %v1073, 0
        %v1075 = vsub.s32 0, %v1073
        %v1076 = vsel %vm1074, %v1075, %v1073
        %v1077 = vclz %v1076
        %v1078 = vsub.s32 %v1077, 2
        %vm1079 = vcmp.gt.s32.totalorder 0, %v1078
        %v1080 = vsel %vm1079, 0, %v1078
        %v1081 = vsub.s32 32, %v1080
        %v1082 = vshll.u32 %v1073, %v1080
        %v1083 = vshrl.u32 %v1065, %v1081
        %v1084 = vor.u32 %v1082, %v1083
        %v1085 = vsub.s32 4294967266, %v1080
        %v1086 = vadd.s32 %v1085, 127
        %v1087 = vshll.u32 %v1086, 23
        %v1088 = vor.u32 4788187, %v1087
        %v1089 = vand.u32 2147483647, %v1088
        %v1091 = vcvt.s32.f32 %v1084
        %v1092 = vmul.f32 %v1091, %v1089
        %v1093 = vxor.u32 %v1092, 2147483648
        %v1094 = vsel %vm1011, %v1093, %v1092
        %v1095 = vsub.s32 4, %v1071
        %v1096 = vsel %vm1011, %v1095, %v1071
        %v1097 = vsel %vm1010, %v280, %v1094
        %v1098 = vsel %vm1010, 0, %v1096
        %v1099 = vcosq.f32.pop %v1097
        %v1100 = vsinq.f32.pop %v1097
        %vm1101 = vweird.f32 %v280
        %v1102 = vadd.s32 %v1098, 3
        %v1103 = vand.u32 %v1102, 3
        %vm1104 = vcmp.lt.s32.totalorder %v1103, 2
        %vm1105 = vcmp.eq.s32.totalorder %v1103, 0
        %v1106 = vxor.u32 %v1100, 2147483648
        %v1107 = vsel %vm1105, %v1099, %v1106
        %vm1108 = vcmp.eq.s32.totalorder %v1103, 2
        %v1109 = vxor.u32 %v1099, 2147483648
        %v1110 = vsel %vm1108, %v1109, %v1100
        %v1111 = vsel %vm1104, %v1107, %v1110
        %v1112 = vsel %vm1101, nan, %v1111
        %1113 = vset.pattern.permute.xlu0 12
        %1114 = vperm.xlu0 %1113, %v224
        %v1115 = vpop.permute.xlu0 %1114
        %1117 = vset.pattern.permute.xlu0 12
        %1118 = vperm.xlu0 %1117, %v225
        %v1119 = vpop.permute.xlu0 %1118
        %v1121 = vmul.f32 %v230, %v1115
        %v1122 = vmul.f32 %v234, %v1115
        %v1123 = vmul.f32 %v238, %v1115
        %v1124 = vmul.f32 %v242, %v1115
        %v1125 = vmul.f32 %v230, %v1119
        %v1126 = vmul.f32 %v234, %v1119
        %v1127 = vmul.f32 %v238, %v1119
        %v1128 = vmul.f32 %v242, %v1119
        %v1129 = vadd.f32 %v384, %v1121
        %v1130 = vadd.f32 %v488, %v1122
        %v1131 = vadd.f32 %v592, %v1123
        %v1132 = vadd.f32 %v696, %v1124
        %v1133 = vadd.f32 %v800, %v1125
        %v1134 = vadd.f32 %v904, %v1126
        %v1135 = vadd.f32 %v1008, %v1127
        %v1136 = vadd.f32 %v1112, %v1128
        %v1137 = vld [vmem:[%s1] sm:$0xff]
        %v1138 = vld [vmem:[%s1 + $0x8] sm:$0xff]
        %v1139 = vld [vmem:[%s1 + $0x10] sm:$0xff]
        %v1140 = vld [vmem:[%s1 + $0x18] sm:$0xff]
        %v1141 = vld [vmem:[%s1 + $0x20] sm:$0xff]
        %v1142 = vld [vmem:[%s1 + $0x28] sm:$0xff]
        %v1143 = vld [vmem:[%s1 + $0x30] sm:$0xff]
        %v1144 = vld [vmem:[%s1 + $0x38] sm:$0xff]
        %v1145 = vld [vmem:[%s4] sm:$0xff]
        %v1146 = vld [vmem:[%s4 + $0x8] sm:$0xff]
        %v1147 = vld [vmem:[%s4 + $0x10] sm:$0xff]
        %v1148 = vld [vmem:[%s4 + $0x18] sm:$0xff]
        %v1149 = vld [vmem:[%s4 + $0x20] sm:$0xff]
        %v1150 = vld [vmem:[%s4 + $0x28] sm:$0xff]
        %v1151 = vld [vmem:[%s4 + $0x30] sm:$0xff]
        %v1152 = vld [vmem:[%s4 + $0x38] sm:$0xff]
        %1154 = vset.pattern.permute.xlu0 0
        %1155 = vperm.xlu0 %1154, %v1145
        %v1156 = vpop.permute.xlu0 %1155
        %1159 = vset.pattern.permute.xlu0 0
        %1160 = vperm.xlu0 %1159, %v1146
        %v1161 = vpop.permute.xlu0 %1160
        %1164 = vset.pattern.permute.xlu0 0
        %1165 = vperm.xlu0 %1164, %v1147
        %v1166 = vpop.permute.xlu0 %1165
        %1169 = vset.pattern.permute.xlu0 0
        %1170 = vperm.xlu0 %1169, %v1148
        %v1171 = vpop.permute.xlu0 %1170
        %1174 = vset.pattern.permute.xlu0 0
        %1175 = vperm.xlu0 %1174, %v1149
        %v1176 = vpop.permute.xlu0 %1175
        %1179 = vset.pattern.permute.xlu0 0
        %1180 = vperm.xlu0 %1179, %v1150
        %v1181 = vpop.permute.xlu0 %1180
        %1184 = vset.pattern.permute.xlu0 0
        %1185 = vperm.xlu0 %1184, %v1151
        %v1186 = vpop.permute.xlu0 %1185
        %1189 = vset.pattern.permute.xlu0 0
        %1190 = vperm.xlu0 %1189, %v1152
        %v1191 = vpop.permute.xlu0 %1190
        %vm1193 = vcmask 130048
        %v1195 = vsel %vm1193, %v1137, 0
        %v1198 = vsel %vm1193, %v1138, 0
        %v1201 = vsel %vm1193, %v1139, 0
        %v1204 = vsel %vm1193, %v1140, 0
        %v1207 = vsel %vm1193, %v1141, 0
        %v1210 = vsel %vm1193, %v1142, 0
        %v1213 = vsel %vm1193, %v1143, 0
        %v1216 = vsel %vm1193, %v1144, 0
        %1218 = vmatprep.subr.mxu0 %v1130
        %1219 = vmatpush1.msra.mxu0 %v1129
        %1220 = vmatprep.subr.mxu0 %v1134
        %1221 = vmatpush1.msra.mxu0 %v1133
        %1222 = vmatprep.subr.mxu0 0.0
        %1223 = vmatpush1.msra.mxu0 0.0
        %1224 = vmatprep.subr.mxu0 0.0
        %1225 = vmatpush1.msra.mxu0 0.0
        %1226 = vmatprep.subr.mxu0 0.0
        %1227 = vmatpush1.msra.mxu0 0.0
        %1228 = vmatprep.subr.mxu0 0.0
        %1229 = vmatpush1.msra.mxu0 0.0
        %1230 = vmatprep.subr.mxu0 0.0
        %1231 = vmatpush1.msra.mxu0 0.0
        %1232 = vmatprep.subr.mxu0 0.0
        %1233 = vmatpush1.msra.mxu0 0.0
        %1234 = vmatprep.subr.mxu0 0.0
        %1235 = vmatpush1.msra.mxu0 0.0
        %1236 = vmatprep.subr.mxu0 0.0
        %1237 = vmatpush1.msra.mxu0 0.0
        %1238 = vmatprep.subr.mxu0 0.0
        %1239 = vmatpush1.msra.mxu0 0.0
        %1240 = vmatprep.subr.mxu0 0.0
        %1241 = vmatpush1.msra.mxu0 0.0
        %1242 = vmatprep.subr.mxu0 0.0
        %1243 = vmatpush1.msra.mxu0 0.0
        %1244 = vmatprep.subr.mxu0 0.0
        %1245 = vmatpush1.msra.mxu0 0.0
        %1246 = vmatprep.subr.mxu0 0.0
        %1247 = vmatpush1.msra.mxu0 0.0
        %1248 = vmatprep.subr.mxu0 0.0
        %1249 = vmatpush1.msra.mxu0 0.0
        %1250 = vmatprep.subr.mxu0 0.0
        %1251 = vmatpush1.msra.mxu0 0.0
        %1252 = vmatprep.subr.mxu0 0.0
        %1253 = vmatpush1.msra.mxu0 0.0
        %1254 = vmatprep.subr.mxu0 0.0
        %1255 = vmatpush1.msra.mxu0 0.0
        %1256 = vmatprep.subr.mxu0 0.0
        %1257 = vmatpush1.msra.mxu0 0.0
        %1258 = vmatprep.subr.mxu0 0.0
        %1259 = vmatpush1.msra.mxu0 0.0
        %1260 = vmatprep.subr.mxu0 0.0
        %1261 = vmatpush1.msra.mxu0 0.0
        %1262 = vmatprep.subr.mxu0 0.0
        %1263 = vmatpush1.msra.mxu0 0.0
        %1264 = vmatprep.subr.mxu0 0.0
        %1265 = vmatpush1.msra.mxu0 0.0
        %1266 = vmatprep.subr.mxu0 0.0
        %1267 = vmatpush1.msra.mxu0 0.0
        %1268 = vmatprep.subr.mxu0 0.0
        %1269 = vmatpush1.msra.mxu0 0.0
        %1270 = vmatprep.subr.mxu0 0.0
        %1271 = vmatpush1.msra.mxu0 0.0
        %1272 = vmatprep.subr.mxu0 0.0
        %1273 = vmatpush1.msra.mxu0 0.0
        %1274 = vmatprep.subr.mxu0 0.0
        %1275 = vmatpush1.msra.mxu0 0.0
        %1276 = vmatprep.subr.mxu0 0.0
        %1277 = vmatpush1.msra.mxu0 0.0
        %1278 = vmatprep.subr.mxu0 0.0
        %1279 = vmatpush1.msra.mxu0 0.0
        %1280 = vmatprep.subr.mxu0 0.0
        %1281 = vmatpush1.msra.mxu0 0.0
        %1282 = vmatprep.mubr.f32.mxu0 0.0
        %1283 = vmatmul.mubr.f32.gmra.mrb[0].mxu0 %v1195
        %v1284 = vpop.f32.mrb[0].mxu0
        %v1285 = vadd.f32 %v1156, %v1284
        %v1286 = vpop.f32.mrb[0].mxu0
        %v1287 = vadd.f32 %v1156, %v1286
        %1288 = vmatprep.mubr.f32.mxu0 0.0
        %1289 = vmatmul.mubr.f32.gmra.mrb[0].mxu0 %v1198
        %v1290 = vpop.f32.mrb[0].mxu0
        %v1291 = vadd.f32 %v1161, %v1290
        %v1292 = vpop.f32.mrb[0].mxu0
        %v1293 = vadd.f32 %v1161, %v1292
        %1294 = vmatprep.mubr.f32.mxu0 0.0
        %1295 = vmatmul.mubr.f32.gmra.mrb[0].mxu0 %v1201
        %v1296 = vpop.f32.mrb[0].mxu0
        %v1297 = vadd.f32 %v1166, %v1296
        %v1298 = vpop.f32.mrb[0].mxu0
        %v1299 = vadd.f32 %v1166, %v1298
        %1300 = vmatprep.mubr.f32.mxu0 0.0
        %1301 = vmatmul.mubr.f32.gmra.mrb[0].mxu0 %v1204
        %v1302 = vpop.f32.mrb[0].mxu0
        %v1303 = vadd.f32 %v1171, %v1302
        %v1304 = vpop.f32.mrb[0].mxu0
        %v1305 = vadd.f32 %v1171, %v1304
        %1306 = vmatprep.mubr.f32.mxu0 0.0
        %1307 = vmatmul.mubr.f32.gmra.mrb[0].mxu0 %v1207
        %v1308 = vpop.f32.mrb[0].mxu0
        %v1309 = vadd.f32 %v1176, %v1308
        %v1310 = vpop.f32.mrb[0].mxu0
        %v1311 = vadd.f32 %v1176, %v1310
        %1312 = vmatprep.mubr.f32.mxu0 0.0
        %1313 = vmatmul.mubr.f32.gmra.mrb[0].mxu0 %v1210
        %v1314 = vpop.f32.mrb[0].mxu0
        %v1315 = vadd.f32 %v1181, %v1314
        %v1316 = vpop.f32.mrb[0].mxu0
        %v1317 = vadd.f32 %v1181, %v1316
        %1318 = vmatprep.mubr.f32.mxu0 0.0
        %1319 = vmatmul.mubr.f32.gmra.mrb[0].mxu0 %v1213
        %v1320 = vpop.f32.mrb[0].mxu0
        %v1321 = vadd.f32 %v1186, %v1320
        %v1322 = vpop.f32.mrb[0].mxu0
        %v1323 = vadd.f32 %v1186, %v1322
        %1324 = vmatprep.mubr.f32.mxu0 0.0
        %1325 = vmatmul.mubr.f32.gmra.mrb[0].mxu0 %v1216
        %v1326 = vpop.f32.mrb[0].mxu0
        %v1327 = vadd.f32 %v1191, %v1326
        %v1328 = vpop.f32.mrb[0].mxu0
        %v1329 = vadd.f32 %v1191, %v1328
        %1330 = vdwg.mxu0
        %1331 = vmatprep.subr.mxu0 %v1132
        %1332 = vmatpush1.msra.mxu0 %v1131
        %1333 = vmatprep.subr.mxu0 %v1136
        %1334 = vmatpush1.msra.mxu0 %v1135
        %1335 = vmatprep.subr.mxu0 0.0
        %1336 = vmatpush1.msra.mxu0 0.0
        %1337 = vmatprep.subr.mxu0 0.0
        %1338 = vmatpush1.msra.mxu0 0.0
        %1339 = vmatprep.subr.mxu0 0.0
        %1340 = vmatpush1.msra.mxu0 0.0
        %1341 = vmatprep.subr.mxu0 0.0
        %1342 = vmatpush1.msra.mxu0 0.0
        %1343 = vmatprep.subr.mxu0 0.0
        %1344 = vmatpush1.msra.mxu0 0.0
        %1345 = vmatprep.subr.mxu0 0.0
        %1346 = vmatpush1.msra.mxu0 0.0
        %1347 = vmatprep.subr.mxu0 0.0
        %1348 = vmatpush1.msra.mxu0 0.0
        %1349 = vmatprep.subr.mxu0 0.0
        %1350 = vmatpush1.msra.mxu0 0.0
        %1351 = vmatprep.subr.mxu0 0.0
        %1352 = vmatpush1.msra.mxu0 0.0
        %1353 = vmatprep.subr.mxu0 0.0
        %1354 = vmatpush1.msra.mxu0 0.0
        %1355 = vmatprep.subr.mxu0 0.0
        %1356 = vmatpush1.msra.mxu0 0.0
        %1357 = vmatprep.subr.mxu0 0.0
        %1358 = vmatpush1.msra.mxu0 0.0
        %1359 = vmatprep.subr.mxu0 0.0
        %1360 = vmatpush1.msra.mxu0 0.0
        %1361 = vmatprep.subr.mxu0 0.0
        %1362 = vmatpush1.msra.mxu0 0.0
        %1363 = vmatprep.subr.mxu0 0.0
        %1364 = vmatpush1.msra.mxu0 0.0
        %1365 = vmatprep.subr.mxu0 0.0
        %1366 = vmatpush1.msra.mxu0 0.0
        %1367 = vmatprep.subr.mxu0 0.0
        %1368 = vmatpush1.msra.mxu0 0.0
        %1369 = vmatprep.subr.mxu0 0.0
        %1370 = vmatpush1.msra.mxu0 0.0
        %1371 = vmatprep.subr.mxu0 0.0
        %1372 = vmatpush1.msra.mxu0 0.0
        %1373 = vmatprep.subr.mxu0 0.0
        %1374 = vmatpush1.msra.mxu0 0.0
        %1375 = vmatprep.subr.mxu0 0.0
        %1376 = vmatpush1.msra.mxu0 0.0
        %1377 = vmatprep.subr.mxu0 0.0
        %1378 = vmatpush1.msra.mxu0 0.0
        %1379 = vmatprep.subr.mxu0 0.0
        %1380 = vmatpush1.msra.mxu0 0.0
        %1381 = vmatprep.subr.mxu0 0.0
        %1382 = vmatpush1.msra.mxu0 0.0
        %1383 = vmatprep.subr.mxu0 0.0
        %1384 = vmatpush1.msra.mxu0 0.0
        %1385 = vmatprep.subr.mxu0 0.0
        %1386 = vmatpush1.msra.mxu0 0.0
        %1387 = vmatprep.subr.mxu0 0.0
        %1388 = vmatpush1.msra.mxu0 0.0
        %1389 = vmatprep.subr.mxu0 0.0
        %1390 = vmatpush1.msra.mxu0 0.0
        %1391 = vmatprep.subr.mxu0 0.0
        %1392 = vmatpush1.msra.mxu0 0.0
        %1393 = vmatprep.subr.mxu0 0.0
        %1394 = vmatpush1.msra.mxu0 0.0
        %1395 = vmatprep.mubr.f32.mxu0 0.0
        %1396 = vmatmul.mubr.f32.gmra.mrb[0].mxu0 %v1195
        %v1397 = vpop.f32.mrb[0].mxu0
        %v1398 = vadd.f32 %v1156, %v1397
        %v1399 = vpop.f32.mrb[0].mxu0
        %v1400 = vadd.f32 %v1156, %v1399
        %1401 = vmatprep.mubr.f32.mxu0 0.0
        %1402 = vmatmul.mubr.f32.gmra.mrb[0].mxu0 %v1198
        %v1403 = vpop.f32.mrb[0].mxu0
        %v1404 = vadd.f32 %v1161, %v1403
        %v1405 = vpop.f32.mrb[0].mxu0
        %v1406 = vadd.f32 %v1161, %v1405
        %1407 = vmatprep.mubr.f32.mxu0 0.0
        %1408 = vmatmul.mubr.f32.gmra.mrb[0].mxu0 %v1201
        %v1409 = vpop.f32.mrb[0].mxu0
        %v1410 = vadd.f32 %v1166, %v1409
        %v1411 = vpop.f32.mrb[0].mxu0
        %v1412 = vadd.f32 %v1166, %v1411
        %1413 = vmatprep.mubr.f32.mxu0 0.0
        %1414 = vmatmul.mubr.f32.gmra.mrb[0].mxu0 %v1204
        %v1415 = vpop.f32.mrb[0].mxu0
        %v1416 = vadd.f32 %v1171, %v1415
        %v1417 = vpop.f32.mrb[0].mxu0
        %v1418 = vadd.f32 %v1171, %v1417
        %1419 = vmatprep.mubr.f32.mxu0 0.0
        %1420 = vmatmul.mubr.f32.gmra.mrb[0].mxu0 %v1207
        %v1421 = vpop.f32.mrb[0].mxu0
        %v1422 = vadd.f32 %v1176, %v1421
        %v1423 = vpop.f32.mrb[0].mxu0
        %v1424 = vadd.f32 %v1176, %v1423
        %1425 = vmatprep.mubr.f32.mxu0 0.0
        %1426 = vmatmul.mubr.f32.gmra.mrb[0].mxu0 %v1210
        %v1427 = vpop.f32.mrb[0].mxu0
        %v1428 = vadd.f32 %v1181, %v1427
        %v1429 = vpop.f32.mrb[0].mxu0
        %v1430 = vadd.f32 %v1181, %v1429
        %1431 = vmatprep.mubr.f32.mxu0 0.0
        %1432 = vmatmul.mubr.f32.gmra.mrb[0].mxu0 %v1213
        %v1433 = vpop.f32.mrb[0].mxu0
        %v1434 = vadd.f32 %v1186, %v1433
        %v1435 = vpop.f32.mrb[0].mxu0
        %v1436 = vadd.f32 %v1186, %v1435
        %1437 = vmatprep.mubr.f32.mxu0 0.0
        %1438 = vmatmul.mubr.f32.gmra.mrb[0].mxu0 %v1216
        %v1439 = vpop.f32.mrb[0].mxu0
        %v1440 = vadd.f32 %v1191, %v1439
        %v1441 = vpop.f32.mrb[0].mxu0
        %v1442 = vadd.f32 %v1191, %v1441
        %1443 = vdwg.mxu0
        %v1444 = vadd.f32 %v1285, %v1291
        %v1445 = vadd.f32 %v1444, %v1297
        %v1446 = vadd.f32 %v1445, %v1303
        %v1447 = vadd.f32 %v1446, %v1309
        %v1448 = vadd.f32 %v1447, %v1315
        %v1449 = vadd.f32 %v1448, %v1321
        %v1450 = vadd.f32 %v1449, %v1327
        %v1451 = vrot.slane %v1450, 4
        %v1452 = vadd.f32 %v1450, %v1451
        %v1453 = vrot.slane %v1452, 2
        %v1454 = vadd.f32 %v1452, %v1453
        %v1455 = vrot.slane %v1454, 1
        %v1456 = vadd.f32 %v1454, %v1455
        %v1457 = vadd.f32 %v1287, %v1293
        %v1458 = vadd.f32 %v1457, %v1299
        %v1459 = vadd.f32 %v1458, %v1305
        %v1460 = vadd.f32 %v1459, %v1311
        %v1461 = vadd.f32 %v1460, %v1317
        %v1462 = vadd.f32 %v1461, %v1323
        %v1463 = vadd.f32 %v1462, %v1329
        %v1464 = vrot.slane %v1463, 4
        %v1465 = vadd.f32 %v1463, %v1464
        %v1466 = vrot.slane %v1465, 2
        %v1467 = vadd.f32 %v1465, %v1466
        %v1468 = vrot.slane %v1467, 1
        %v1469 = vadd.f32 %v1467, %v1468
        %v1470 = vadd.f32 %v1398, %v1404
        %v1471 = vadd.f32 %v1470, %v1410
        %v1472 = vadd.f32 %v1471, %v1416
        %v1473 = vadd.f32 %v1472, %v1422
        %v1474 = vadd.f32 %v1473, %v1428
        %v1475 = vadd.f32 %v1474, %v1434
        %v1476 = vadd.f32 %v1475, %v1440
        %v1477 = vrot.slane %v1476, 4
        %v1478 = vadd.f32 %v1476, %v1477
        %v1479 = vrot.slane %v1478, 2
        %v1480 = vadd.f32 %v1478, %v1479
        %v1481 = vrot.slane %v1480, 1
        %v1482 = vadd.f32 %v1480, %v1481
        %v1483 = vadd.f32 %v1400, %v1406
        %v1484 = vadd.f32 %v1483, %v1412
        %v1485 = vadd.f32 %v1484, %v1418
        %v1486 = vadd.f32 %v1485, %v1424
        %v1487 = vadd.f32 %v1486, %v1430
        %v1488 = vadd.f32 %v1487, %v1436
        %v1489 = vadd.f32 %v1488, %v1442
        %v1490 = vrot.slane %v1489, 4
        %v1491 = vadd.f32 %v1489, %v1490
        %v1492 = vrot.slane %v1491, 2
        %v1493 = vadd.f32 %v1491, %v1492
        %v1494 = vrot.slane %v1493, 1
        %v1495 = vadd.f32 %v1493, %v1494
        %v1496 = vrcp.pop 64.0
        %v1497 = vmul.f32 %v1456, %v1496
        %v1498 = vmul.f32 %v1469, %v1496
        %v1499 = vmul.f32 %v1482, %v1496
        %v1500 = vmul.f32 %v1495, %v1496
        %v1501 = vsub.f32 %v1285, %v1497
        %v1502 = vsub.f32 %v1287, %v1498
        %v1503 = vsub.f32 %v1398, %v1499
        %v1504 = vsub.f32 %v1400, %v1500
        %v1505 = vsub.f32 %v1291, %v1497
        %v1506 = vsub.f32 %v1293, %v1498
        %v1507 = vsub.f32 %v1404, %v1499
        %v1508 = vsub.f32 %v1406, %v1500
        %v1509 = vsub.f32 %v1297, %v1497
        %v1510 = vsub.f32 %v1299, %v1498
        %v1511 = vsub.f32 %v1410, %v1499
        %v1512 = vsub.f32 %v1412, %v1500
        %v1513 = vsub.f32 %v1303, %v1497
        %v1514 = vsub.f32 %v1305, %v1498
        %v1515 = vsub.f32 %v1416, %v1499
        %v1516 = vsub.f32 %v1418, %v1500
        %v1517 = vsub.f32 %v1309, %v1497
        %v1518 = vsub.f32 %v1311, %v1498
        %v1519 = vsub.f32 %v1422, %v1499
        %v1520 = vsub.f32 %v1424, %v1500
        %v1521 = vsub.f32 %v1315, %v1497
        %v1522 = vsub.f32 %v1317, %v1498
        %v1523 = vsub.f32 %v1428, %v1499
        %v1524 = vsub.f32 %v1430, %v1500
        %v1525 = vsub.f32 %v1321, %v1497
        %v1526 = vsub.f32 %v1323, %v1498
        %v1527 = vsub.f32 %v1434, %v1499
        %v1528 = vsub.f32 %v1436, %v1500
        %v1529 = vsub.f32 %v1327, %v1497
        %v1530 = vsub.f32 %v1329, %v1498
        %v1531 = vsub.f32 %v1440, %v1499
        %v1532 = vsub.f32 %v1442, %v1500
        %v1533 = vmul.f32 %v1501, %v1501
        %v1534 = vmul.f32 %v1502, %v1502
        %v1535 = vmul.f32 %v1503, %v1503
        %v1536 = vmul.f32 %v1504, %v1504
        %v1537 = vmul.f32 %v1505, %v1505
        %v1538 = vmul.f32 %v1506, %v1506
        %v1539 = vmul.f32 %v1507, %v1507
        %v1540 = vmul.f32 %v1508, %v1508
        %v1541 = vmul.f32 %v1509, %v1509
        %v1542 = vmul.f32 %v1510, %v1510
        %v1543 = vmul.f32 %v1511, %v1511
        %v1544 = vmul.f32 %v1512, %v1512
        %v1545 = vmul.f32 %v1513, %v1513
        %v1546 = vmul.f32 %v1514, %v1514
        %v1547 = vmul.f32 %v1515, %v1515
        %v1548 = vmul.f32 %v1516, %v1516
        %v1549 = vmul.f32 %v1517, %v1517
        %v1550 = vmul.f32 %v1518, %v1518
        %v1551 = vmul.f32 %v1519, %v1519
        %v1552 = vmul.f32 %v1520, %v1520
        %v1553 = vmul.f32 %v1521, %v1521
        %v1554 = vmul.f32 %v1522, %v1522
        %v1555 = vmul.f32 %v1523, %v1523
        %v1556 = vmul.f32 %v1524, %v1524
        %v1557 = vmul.f32 %v1525, %v1525
        %v1558 = vmul.f32 %v1526, %v1526
        %v1559 = vmul.f32 %v1527, %v1527
        %v1560 = vmul.f32 %v1528, %v1528
        %v1561 = vmul.f32 %v1529, %v1529
        %v1562 = vmul.f32 %v1530, %v1530
        %v1563 = vmul.f32 %v1531, %v1531
        %v1564 = vmul.f32 %v1532, %v1532
        %v1565 = vadd.f32 %v1533, %v1537
        %v1566 = vadd.f32 %v1565, %v1541
        %v1567 = vadd.f32 %v1566, %v1545
        %v1568 = vadd.f32 %v1567, %v1549
        %v1569 = vadd.f32 %v1568, %v1553
        %v1570 = vadd.f32 %v1569, %v1557
        %v1571 = vadd.f32 %v1570, %v1561
        %v1572 = vrot.slane %v1571, 4
        %v1573 = vadd.f32 %v1571, %v1572
        %v1574 = vrot.slane %v1573, 2
        %v1575 = vadd.f32 %v1573, %v1574
        %v1576 = vrot.slane %v1575, 1
        %v1577 = vadd.f32 %v1575, %v1576
        %v1578 = vadd.f32 %v1534, %v1538
        %v1579 = vadd.f32 %v1578, %v1542
        %v1580 = vadd.f32 %v1579, %v1546
        %v1581 = vadd.f32 %v1580, %v1550
        %v1582 = vadd.f32 %v1581, %v1554
        %v1583 = vadd.f32 %v1582, %v1558
        %v1584 = vadd.f32 %v1583, %v1562
        %v1585 = vrot.slane %v1584, 4
        %v1586 = vadd.f32 %v1584, %v1585
        %v1587 = vrot.slane %v1586, 2
        %v1588 = vadd.f32 %v1586, %v1587
        %v1589 = vrot.slane %v1588, 1
        %v1590 = vadd.f32 %v1588, %v1589
        %v1591 = vadd.f32 %v1535, %v1539
        %v1592 = vadd.f32 %v1591, %v1543
        %v1593 = vadd.f32 %v1592, %v1547
        %v1594 = vadd.f32 %v1593, %v1551
        %v1595 = vadd.f32 %v1594, %v1555
        %v1596 = vadd.f32 %v1595, %v1559
        %v1597 = vadd.f32 %v1596, %v1563
        %v1598 = vrot.slane %v1597, 4
        %v1599 = vadd.f32 %v1597, %v1598
        %v1600 = vrot.slane %v1599, 2
        %v1601 = vadd.f32 %v1599, %v1600
        %v1602 = vrot.slane %v1601, 1
        %v1603 = vadd.f32 %v1601, %v1602
        %v1604 = vadd.f32 %v1536, %v1540
        %v1605 = vadd.f32 %v1604, %v1544
        %v1606 = vadd.f32 %v1605, %v1548
        %v1607 = vadd.f32 %v1606, %v1552
        %v1608 = vadd.f32 %v1607, %v1556
        %v1609 = vadd.f32 %v1608, %v1560
        %v1610 = vadd.f32 %v1609, %v1564
        %v1611 = vrot.slane %v1610, 4
        %v1612 = vadd.f32 %v1610, %v1611
        %v1613 = vrot.slane %v1612, 2
        %v1614 = vadd.f32 %v1612, %v1613
        %v1615 = vrot.slane %v1614, 1
        %v1616 = vadd.f32 %v1614, %v1615
        %v1617 = vmul.f32 %v1577, %v1496
        %v1618 = vmul.f32 %v1590, %v1496
        %v1619 = vmul.f32 %v1603, %v1496
        %v1620 = vmul.f32 %v1616, %v1496
        %v1621 = vadd.f32 %v1617, 1e-05
        %v1622 = vadd.f32 %v1618, 1e-05
        %v1623 = vadd.f32 %v1619, 1e-05
        %v1624 = vadd.f32 %v1620, 1e-05
        %v1625 = vrsqrt.pop %v1621
        %v1626 = vrsqrt.pop %v1622
        %v1627 = vrsqrt.pop %v1623
        %v1628 = vrsqrt.pop %v1624
        %v1629 = vmul.f32 %v1501, %v1625
        %v1630 = vmul.f32 %v1502, %v1626
        %v1631 = vmul.f32 %v1503, %v1627
        %v1632 = vmul.f32 %v1504, %v1628
        %v1633 = vmul.f32 %v1505, %v1625
        %v1634 = vmul.f32 %v1506, %v1626
        %v1635 = vmul.f32 %v1507, %v1627
        %v1636 = vmul.f32 %v1508, %v1628
        %v1637 = vmul.f32 %v1509, %v1625
        %v1638 = vmul.f32 %v1510, %v1626
        %v1639 = vmul.f32 %v1511, %v1627
        %v1640 = vmul.f32 %v1512, %v1628
        %v1641 = vmul.f32 %v1513, %v1625
        %v1642 = vmul.f32 %v1514, %v1626
        %v1643 = vmul.f32 %v1515, %v1627
        %v1644 = vmul.f32 %v1516, %v1628
        %v1645 = vmul.f32 %v1517, %v1625
        %v1646 = vmul.f32 %v1518, %v1626
        %v1647 = vmul.f32 %v1519, %v1627
        %v1648 = vmul.f32 %v1520, %v1628
        %v1649 = vmul.f32 %v1521, %v1625
        %v1650 = vmul.f32 %v1522, %v1626
        %v1651 = vmul.f32 %v1523, %v1627
        %v1652 = vmul.f32 %v1524, %v1628
        %v1653 = vmul.f32 %v1525, %v1625
        %v1654 = vmul.f32 %v1526, %v1626
        %v1655 = vmul.f32 %v1527, %v1627
        %v1656 = vmul.f32 %v1528, %v1628
        %v1657 = vmul.f32 %v1529, %v1625
        %v1658 = vmul.f32 %v1530, %v1626
        %v1659 = vmul.f32 %v1531, %v1627
        %v1660 = vmul.f32 %v1532, %v1628
        %1661 = vset.pattern.permute.xlu0 1
        %1662 = vperm.xlu0 %1661, %v1145
        %v1663 = vpop.permute.xlu0 %1662
        %1665 = vset.pattern.permute.xlu0 1
        %1666 = vperm.xlu0 %1665, %v1146
        %v1667 = vpop.permute.xlu0 %1666
        %1669 = vset.pattern.permute.xlu0 1
        %1670 = vperm.xlu0 %1669, %v1147
        %v1671 = vpop.permute.xlu0 %1670
        %1673 = vset.pattern.permute.xlu0 1
        %1674 = vperm.xlu0 %1673, %v1148
        %v1675 = vpop.permute.xlu0 %1674
        %1677 = vset.pattern.permute.xlu0 1
        %1678 = vperm.xlu0 %1677, %v1149
        %v1679 = vpop.permute.xlu0 %1678
        %1681 = vset.pattern.permute.xlu0 1
        %1682 = vperm.xlu0 %1681, %v1150
        %v1683 = vpop.permute.xlu0 %1682
        %1685 = vset.pattern.permute.xlu0 1
        %1686 = vperm.xlu0 %1685, %v1151
        %v1687 = vpop.permute.xlu0 %1686
        %1689 = vset.pattern.permute.xlu0 1
        %1690 = vperm.xlu0 %1689, %v1152
        %v1691 = vpop.permute.xlu0 %1690
        %v1693 = vmul.f32 %v1629, %v1663
        %v1694 = vmul.f32 %v1630, %v1663
        %v1695 = vmul.f32 %v1631, %v1663
        %v1696 = vmul.f32 %v1632, %v1663
        %v1697 = vmul.f32 %v1633, %v1667
        %v1698 = vmul.f32 %v1634, %v1667
        %v1699 = vmul.f32 %v1635, %v1667
        %v1700 = vmul.f32 %v1636, %v1667
        %v1701 = vmul.f32 %v1637, %v1671
        %v1702 = vmul.f32 %v1638, %v1671
        %v1703 = vmul.f32 %v1639, %v1671
        %v1704 = vmul.f32 %v1640, %v1671
        %v1705 = vmul.f32 %v1641, %v1675
        %v1706 = vmul.f32 %v1642, %v1675
        %v1707 = vmul.f32 %v1643, %v1675
        %v1708 = vmul.f32 %v1644, %v1675
        %v1709 = vmul.f32 %v1645, %v1679
        %v1710 = vmul.f32 %v1646, %v1679
        %v1711 = vmul.f32 %v1647, %v1679
        %v1712 = vmul.f32 %v1648, %v1679
        %v1713 = vmul.f32 %v1649, %v1683
        %v1714 = vmul.f32 %v1650, %v1683
        %v1715 = vmul.f32 %v1651, %v1683
        %v1716 = vmul.f32 %v1652, %v1683
        %v1717 = vmul.f32 %v1653, %v1687
        %v1718 = vmul.f32 %v1654, %v1687
        %v1719 = vmul.f32 %v1655, %v1687
        %v1720 = vmul.f32 %v1656, %v1687
        %v1721 = vmul.f32 %v1657, %v1691
        %v1722 = vmul.f32 %v1658, %v1691
        %v1723 = vmul.f32 %v1659, %v1691
        %v1724 = vmul.f32 %v1660, %v1691
        %1725 = vset.pattern.permute.xlu0 2
        %1726 = vperm.xlu0 %1725, %v1145
        %v1727 = vpop.permute.xlu0 %1726
        %1729 = vset.pattern.permute.xlu0 2
        %1730 = vperm.xlu0 %1729, %v1146
        %v1731 = vpop.permute.xlu0 %1730
        %1733 = vset.pattern.permute.xlu0 2
        %1734 = vperm.xlu0 %1733, %v1147
        %v1735 = vpop.permute.xlu0 %1734
        %1737 = vset.pattern.permute.xlu0 2
        %1738 = vperm.xlu0 %1737, %v1148
        %v1739 = vpop.permute.xlu0 %1738
        %1741 = vset.pattern.permute.xlu0 2
        %1742 = vperm.xlu0 %1741, %v1149
        %v1743 = vpop.permute.xlu0 %1742
        %1745 = vset.pattern.permute.xlu0 2
        %1746 = vperm.xlu0 %1745, %v1150
        %v1747 = vpop.permute.xlu0 %1746
        %1749 = vset.pattern.permute.xlu0 2
        %1750 = vperm.xlu0 %1749, %v1151
        %v1751 = vpop.permute.xlu0 %1750
        %1753 = vset.pattern.permute.xlu0 2
        %1754 = vperm.xlu0 %1753, %v1152
        %v1755 = vpop.permute.xlu0 %1754
        %v1757 = vadd.f32 %v1693, %v1727
        %v1758 = vadd.f32 %v1694, %v1727
        %v1759 = vadd.f32 %v1695, %v1727
        %v1760 = vadd.f32 %v1696, %v1727
        %v1761 = vadd.f32 %v1697, %v1731
        %v1762 = vadd.f32 %v1698, %v1731
        %v1763 = vadd.f32 %v1699, %v1731
        %v1764 = vadd.f32 %v1700, %v1731
        %v1765 = vadd.f32 %v1701, %v1735
        %v1766 = vadd.f32 %v1702, %v1735
        %v1767 = vadd.f32 %v1703, %v1735
        %v1768 = vadd.f32 %v1704, %v1735
        %v1769 = vadd.f32 %v1705, %v1739
        %v1770 = vadd.f32 %v1706, %v1739
        %v1771 = vadd.f32 %v1707, %v1739
        %v1772 = vadd.f32 %v1708, %v1739
        %v1773 = vadd.f32 %v1709, %v1743
        %v1774 = vadd.f32 %v1710, %v1743
        %v1775 = vadd.f32 %v1711, %v1743
        %v1776 = vadd.f32 %v1712, %v1743
        %v1777 = vadd.f32 %v1713, %v1747
        %v1778 = vadd.f32 %v1714, %v1747
        %v1779 = vadd.f32 %v1715, %v1747
        %v1780 = vadd.f32 %v1716, %v1747
        %v1781 = vadd.f32 %v1717, %v1751
        %v1782 = vadd.f32 %v1718, %v1751
        %v1783 = vadd.f32 %v1719, %v1751
        %v1784 = vadd.f32 %v1720, %v1751
        %v1785 = vadd.f32 %v1721, %v1755
        %v1786 = vadd.f32 %v1722, %v1755
        %v1787 = vadd.f32 %v1723, %v1755
        %v1788 = vadd.f32 %v1724, %v1755
        %v1789 = vmax.f32 %v1757, 0.0
        %v1790 = vmax.f32 %v1758, 0.0
        %v1791 = vmax.f32 %v1759, 0.0
        %v1792 = vmax.f32 %v1760, 0.0
        %v1793 = vmax.f32 %v1761, 0.0
        %v1794 = vmax.f32 %v1762, 0.0
        %v1795 = vmax.f32 %v1763, 0.0
        %v1796 = vmax.f32 %v1764, 0.0
        %v1797 = vmax.f32 %v1765, 0.0
        %v1798 = vmax.f32 %v1766, 0.0
        %v1799 = vmax.f32 %v1767, 0.0
        %v1800 = vmax.f32 %v1768, 0.0
        %v1801 = vmax.f32 %v1769, 0.0
        %v1802 = vmax.f32 %v1770, 0.0
        %v1803 = vmax.f32 %v1771, 0.0
        %v1804 = vmax.f32 %v1772, 0.0
        %v1805 = vmax.f32 %v1773, 0.0
        %v1806 = vmax.f32 %v1774, 0.0
        %v1807 = vmax.f32 %v1775, 0.0
        %v1808 = vmax.f32 %v1776, 0.0
        %v1809 = vmax.f32 %v1777, 0.0
        %v1810 = vmax.f32 %v1778, 0.0
        %v1811 = vmax.f32 %v1779, 0.0
        %v1812 = vmax.f32 %v1780, 0.0
        %v1813 = vmax.f32 %v1781, 0.0
        %v1814 = vmax.f32 %v1782, 0.0
        %v1815 = vmax.f32 %v1783, 0.0
        %v1816 = vmax.f32 %v1784, 0.0
        %v1817 = vmax.f32 %v1785, 0.0
        %v1818 = vmax.f32 %v1786, 0.0
        %v1819 = vmax.f32 %v1787, 0.0
        %v1820 = vmax.f32 %v1788, 0.0
        %v1821 = vld [vmem:[%s2] sm:$0xff]
        %v1822 = vld [vmem:[%s2 + $0x8] sm:$0xff]
        %v1823 = vld [vmem:[%s2 + $0x10] sm:$0xff]
        %v1824 = vld [vmem:[%s2 + $0x18] sm:$0xff]
        %v1825 = vld [vmem:[%s2 + $0x20] sm:$0xff]
        %v1826 = vld [vmem:[%s2 + $0x28] sm:$0xff]
        %v1827 = vld [vmem:[%s2 + $0x30] sm:$0xff]
        %v1828 = vld [vmem:[%s2 + $0x38] sm:$0xff]
        %1829 = vset.pattern.permute.xlu0 3
        %1830 = vperm.xlu0 %1829, %v1145
        %v1831 = vpop.permute.xlu0 %1830
        %1833 = vset.pattern.permute.xlu0 3
        %1834 = vperm.xlu0 %1833, %v1146
        %v1835 = vpop.permute.xlu0 %1834
        %1837 = vset.pattern.permute.xlu0 3
        %1838 = vperm.xlu0 %1837, %v1147
        %v1839 = vpop.permute.xlu0 %1838
        %1841 = vset.pattern.permute.xlu0 3
        %1842 = vperm.xlu0 %1841, %v1148
        %v1843 = vpop.permute.xlu0 %1842
        %1845 = vset.pattern.permute.xlu0 3
        %1846 = vperm.xlu0 %1845, %v1149
        %v1847 = vpop.permute.xlu0 %1846
        %1849 = vset.pattern.permute.xlu0 3
        %1850 = vperm.xlu0 %1849, %v1150
        %v1851 = vpop.permute.xlu0 %1850
        %1853 = vset.pattern.permute.xlu0 3
        %1854 = vperm.xlu0 %1853, %v1151
        %v1855 = vpop.permute.xlu0 %1854
        %1857 = vset.pattern.permute.xlu0 3
        %1858 = vperm.xlu0 %1857, %v1152
        %v1859 = vpop.permute.xlu0 %1858
        %vm1861 = vcmask 523264
        %v1863 = vsel %vm1861, %v1821, 0
        %v1866 = vsel %vm1861, %v1822, 0
        %v1869 = vsel %vm1861, %v1823, 0
        %v1872 = vsel %vm1861, %v1824, 0
        %v1875 = vsel %vm1861, %v1825, 0
        %v1878 = vsel %vm1861, %v1826, 0
        %v1881 = vsel %vm1861, %v1827, 0
        %v1884 = vsel %vm1861, %v1828, 0
        %1886 = vmatprep.subr.mxu0 %v1790
        %1887 = vmatpush1.msra.mxu0 %v1789
        %1888 = vmatprep.subr.mxu0 %v1794
        %1889 = vmatpush1.msra.mxu0 %v1793
        %1890 = vmatprep.subr.mxu0 %v1798
        %1891 = vmatpush1.msra.mxu0 %v1797
        %1892 = vmatprep.subr.mxu0 %v1802
        %1893 = vmatpush1.msra.mxu0 %v1801
        %1894 = vmatprep.subr.mxu0 %v1806
        %1895 = vmatpush1.msra.mxu0 %v1805
        %1896 = vmatprep.subr.mxu0 %v1810
        %1897 = vmatpush1.msra.mxu0 %v1809
        %1898 = vmatprep.subr.mxu0 %v1814
        %1899 = vmatpush1.msra.mxu0 %v1813
        %1900 = vmatprep.subr.mxu0 %v1818
        %1901 = vmatpush1.msra.mxu0 %v1817
        %1902 = vmatprep.subr.mxu0 0.0
        %1903 = vmatpush1.msra.mxu0 0.0
        %1904 = vmatprep.subr.mxu0 0.0
        %1905 = vmatpush1.msra.mxu0 0.0
        %1906 = vmatprep.subr.mxu0 0.0
        %1907 = vmatpush1.msra.mxu0 0.0
        %1908 = vmatprep.subr.mxu0 0.0
        %1909 = vmatpush1.msra.mxu0 0.0
        %1910 = vmatprep.subr.mxu0 0.0
        %1911 = vmatpush1.msra.mxu0 0.0
        %1912 = vmatprep.subr.mxu0 0.0
        %1913 = vmatpush1.msra.mxu0 0.0
        %1914 = vmatprep.subr.mxu0 0.0
        %1915 = vmatpush1.msra.mxu0 0.0
        %1916 = vmatprep.subr.mxu0 0.0
        %1917 = vmatpush1.msra.mxu0 0.0
        %1918 = vmatprep.subr.mxu0 0.0
        %1919 = vmatpush1.msra.mxu0 0.0
        %1920 = vmatprep.subr.mxu0 0.0
        %1921 = vmatpush1.msra.mxu0 0.0
        %1922 = vmatprep.subr.mxu0 0.0
        %1923 = vmatpush1.msra.mxu0 0.0
        %1924 = vmatprep.subr.mxu0 0.0
        %1925 = vmatpush1.msra.mxu0 0.0
        %1926 = vmatprep.subr.mxu0 0.0
        %1927 = vmatpush1.msra.mxu0 0.0
        %1928 = vmatprep.subr.mxu0 0.0
        %1929 = vmatpush1.msra.mxu0 0.0
        %1930 = vmatprep.subr.mxu0 0.0
        %1931 = vmatpush1.msra.mxu0 0.0
        %1932 = vmatprep.subr.mxu0 0.0
        %1933 = vmatpush1.msra.mxu0 0.0
        %1934 = vmatprep.subr.mxu0 0.0
        %1935 = vmatpush1.msra.mxu0 0.0
        %1936 = vmatprep.subr.mxu0 0.0
        %1937 = vmatpush1.msra.mxu0 0.0
        %1938 = vmatprep.subr.mxu0 0.0
        %1939 = vmatpush1.msra.mxu0 0.0
        %1940 = vmatprep.subr.mxu0 0.0
        %1941 = vmatpush1.msra.mxu0 0.0
        %1942 = vmatprep.subr.mxu0 0.0
        %1943 = vmatpush1.msra.mxu0 0.0
        %1944 = vmatprep.subr.mxu0 0.0
        %1945 = vmatpush1.msra.mxu0 0.0
        %1946 = vmatprep.subr.mxu0 0.0
        %1947 = vmatpush1.msra.mxu0 0.0
        %1948 = vmatprep.subr.mxu0 0.0
        %1949 = vmatpush1.msra.mxu0 0.0
        %1950 = vmatprep.mubr.f32.mxu0 0.0
        %1951 = vmatmul.mubr.f32.gmra.mrb[0].mxu0 %v1863
        %v1952 = vpop.f32.mrb[0].mxu0
        %v1953 = vadd.f32 %v1831, %v1952
        %v1954 = vpop.f32.mrb[0].mxu0
        %v1955 = vadd.f32 %v1831, %v1954
        %1956 = vmatprep.mubr.f32.mxu0 0.0
        %1957 = vmatmul.mubr.f32.gmra.mrb[0].mxu0 %v1866
        %v1958 = vpop.f32.mrb[0].mxu0
        %v1959 = vadd.f32 %v1835, %v1958
        %v1960 = vpop.f32.mrb[0].mxu0
        %v1961 = vadd.f32 %v1835, %v1960
        %1962 = vmatprep.mubr.f32.mxu0 0.0
        %1963 = vmatmul.mubr.f32.gmra.mrb[0].mxu0 %v1869
        %v1964 = vpop.f32.mrb[0].mxu0
        %v1965 = vadd.f32 %v1839, %v1964
        %v1966 = vpop.f32.mrb[0].mxu0
        %v1967 = vadd.f32 %v1839, %v1966
        %1968 = vmatprep.mubr.f32.mxu0 0.0
        %1969 = vmatmul.mubr.f32.gmra.mrb[0].mxu0 %v1872
        %v1970 = vpop.f32.mrb[0].mxu0
        %v1971 = vadd.f32 %v1843, %v1970
        %v1972 = vpop.f32.mrb[0].mxu0
        %v1973 = vadd.f32 %v1843, %v1972
        %1974 = vmatprep.mubr.f32.mxu0 0.0
        %1975 = vmatmul.mubr.f32.gmra.mrb[0].mxu0 %v1875
        %v1976 = vpop.f32.mrb[0].mxu0
        %v1977 = vadd.f32 %v1847, %v1976
        %v1978 = vpop.f32.mrb[0].mxu0
        %v1979 = vadd.f32 %v1847, %v1978
        %1980 = vmatprep.mubr.f32.mxu0 0.0
        %1981 = vmatmul.mubr.f32.gmra.mrb[0].mxu0 %v1878
        %v1982 = vpop.f32.mrb[0].mxu0
        %v1983 = vadd.f32 %v1851, %v1982
        %v1984 = vpop.f32.mrb[0].mxu0
        %v1985 = vadd.f32 %v1851, %v1984
        %1986 = vmatprep.mubr.f32.mxu0 0.0
        %1987 = vmatmul.mubr.f32.gmra.mrb[0].mxu0 %v1881
        %v1988 = vpop.f32.mrb[0].mxu0
        %v1989 = vadd.f32 %v1855, %v1988
        %v1990 = vpop.f32.mrb[0].mxu0
        %v1991 = vadd.f32 %v1855, %v1990
        %1992 = vmatprep.mubr.f32.mxu0 0.0
        %1993 = vmatmul.mubr.f32.gmra.mrb[0].mxu0 %v1884
        %v1994 = vpop.f32.mrb[0].mxu0
        %v1995 = vadd.f32 %v1859, %v1994
        %v1996 = vpop.f32.mrb[0].mxu0
        %v1997 = vadd.f32 %v1859, %v1996
        %1998 = vdwg.mxu0
        %1999 = vmatprep.subr.mxu0 %v1792
        %2000 = vmatpush1.msra.mxu0 %v1791
        %2001 = vmatprep.subr.mxu0 %v1796
        %2002 = vmatpush1.msra.mxu0 %v1795
        %2003 = vmatprep.subr.mxu0 %v1800
        %2004 = vmatpush1.msra.mxu0 %v1799
        %2005 = vmatprep.subr.mxu0 %v1804
        %2006 = vmatpush1.msra.mxu0 %v1803
        %2007 = vmatprep.subr.mxu0 %v1808
        %2008 = vmatpush1.msra.mxu0 %v1807
        %2009 = vmatprep.subr.mxu0 %v1812
        %2010 = vmatpush1.msra.mxu0 %v1811
        %2011 = vmatprep.subr.mxu0 %v1816
        %2012 = vmatpush1.msra.mxu0 %v1815
        %2013 = vmatprep.subr.mxu0 %v1820
        %2014 = vmatpush1.msra.mxu0 %v1819
        %2015 = vmatprep.subr.mxu0 0.0
        %2016 = vmatpush1.msra.mxu0 0.0
        %2017 = vmatprep.subr.mxu0 0.0
        %2018 = vmatpush1.msra.mxu0 0.0
        %2019 = vmatprep.subr.mxu0 0.0
        %2020 = vmatpush1.msra.mxu0 0.0
        %2021 = vmatprep.subr.mxu0 0.0
        %2022 = vmatpush1.msra.mxu0 0.0
        %2023 = vmatprep.subr.mxu0 0.0
        %2024 = vmatpush1.msra.mxu0 0.0
        %2025 = vmatprep.subr.mxu0 0.0
        %2026 = vmatpush1.msra.mxu0 0.0
        %2027 = vmatprep.subr.mxu0 0.0
        %2028 = vmatpush1.msra.mxu0 0.0
        %2029 = vmatprep.subr.mxu0 0.0
        %2030 = vmatpush1.msra.mxu0 0.0
        %2031 = vmatprep.subr.mxu0 0.0
        %2032 = vmatpush1.msra.mxu0 0.0
        %2033 = vmatprep.subr.mxu0 0.0
        %2034 = vmatpush1.msra.mxu0 0.0
        %2035 = vmatprep.subr.mxu0 0.0
        %2036 = vmatpush1.msra.mxu0 0.0
        %2037 = vmatprep.subr.mxu0 0.0
        %2038 = vmatpush1.msra.mxu0 0.0
        %2039 = vmatprep.subr.mxu0 0.0
        %2040 = vmatpush1.msra.mxu0 0.0
        %2041 = vmatprep.subr.mxu0 0.0
        %2042 = vmatpush1.msra.mxu0 0.0
        %2043 = vmatprep.subr.mxu0 0.0
        %2044 = vmatpush1.msra.mxu0 0.0
        %2045 = vmatprep.subr.mxu0 0.0
        %2046 = vmatpush1.msra.mxu0 0.0
        %2047 = vmatprep.subr.mxu0 0.0
        %2048 = vmatpush1.msra.mxu0 0.0
        %2049 = vmatprep.subr.mxu0 0.0
        %2050 = vmatpush1.msra.mxu0 0.0
        %2051 = vmatprep.subr.mxu0 0.0
        %2052 = vmatpush1.msra.mxu0 0.0
        %2053 = vmatprep.subr.mxu0 0.0
        %2054 = vmatpush1.msra.mxu0 0.0
        %2055 = vmatprep.subr.mxu0 0.0
        %2056 = vmatpush1.msra.mxu0 0.0
        %2057 = vmatprep.subr.mxu0 0.0
        %2058 = vmatpush1.msra.mxu0 0.0
        %2059 = vmatprep.subr.mxu0 0.0
        %2060 = vmatpush1.msra.mxu0 0.0
        %2061 = vmatprep.subr.mxu0 0.0
        %2062 = vmatpush1.msra.mxu0 0.0
        %2063 = vmatprep.mubr.f32.mxu0 0.0
        %2064 = vmatmul.mubr.f32.gmra.mrb[0].mxu0 %v1863
        %v2065 = vpop.f32.mrb[0].mxu0
        %v2066 = vadd.f32 %v1831, %v2065
        %v2067 = vpop.f32.mrb[0].mxu0
        %v2068 = vadd.f32 %v1831, %v2067
        %2069 = vmatprep.mubr.f32.mxu0 0.0
        %2070 = vmatmul.mubr.f32.gmra.mrb[0].mxu0 %v1866
        %v2071 = vpop.f32.mrb[0].mxu0
        %v2072 = vadd.f32 %v1835, %v2071
        %v2073 = vpop.f32.mrb[0].mxu0
        %v2074 = vadd.f32 %v1835, %v2073
        %2075 = vmatprep.mubr.f32.mxu0 0.0
        %2076 = vmatmul.mubr.f32.gmra.mrb[0].mxu0 %v1869
        %v2077 = vpop.f32.mrb[0].mxu0
        %v2078 = vadd.f32 %v1839, %v2077
        %v2079 = vpop.f32.mrb[0].mxu0
        %v2080 = vadd.f32 %v1839, %v2079
        %2081 = vmatprep.mubr.f32.mxu0 0.0
        %2082 = vmatmul.mubr.f32.gmra.mrb[0].mxu0 %v1872
        %v2083 = vpop.f32.mrb[0].mxu0
        %v2084 = vadd.f32 %v1843, %v2083
        %v2085 = vpop.f32.mrb[0].mxu0
        %v2086 = vadd.f32 %v1843, %v2085
        %2087 = vmatprep.mubr.f32.mxu0 0.0
        %2088 = vmatmul.mubr.f32.gmra.mrb[0].mxu0 %v1875
        %v2089 = vpop.f32.mrb[0].mxu0
        %v2090 = vadd.f32 %v1847, %v2089
        %v2091 = vpop.f32.mrb[0].mxu0
        %v2092 = vadd.f32 %v1847, %v2091
        %2093 = vmatprep.mubr.f32.mxu0 0.0
        %2094 = vmatmul.mubr.f32.gmra.mrb[0].mxu0 %v1878
        %v2095 = vpop.f32.mrb[0].mxu0
        %v2096 = vadd.f32 %v1851, %v2095
        %v2097 = vpop.f32.mrb[0].mxu0
        %v2098 = vadd.f32 %v1851, %v2097
        %2099 = vmatprep.mubr.f32.mxu0 0.0
        %2100 = vmatmul.mubr.f32.gmra.mrb[0].mxu0 %v1881
        %v2101 = vpop.f32.mrb[0].mxu0
        %v2102 = vadd.f32 %v1855, %v2101
        %v2103 = vpop.f32.mrb[0].mxu0
        %v2104 = vadd.f32 %v1855, %v2103
        %2105 = vmatprep.mubr.f32.mxu0 0.0
        %2106 = vmatmul.mubr.f32.gmra.mrb[0].mxu0 %v1884
        %v2107 = vpop.f32.mrb[0].mxu0
        %v2108 = vadd.f32 %v1859, %v2107
        %v2109 = vpop.f32.mrb[0].mxu0
        %v2110 = vadd.f32 %v1859, %v2109
        %2111 = vdwg.mxu0
        %v2112 = vadd.f32 %v1953, %v1959
        %v2113 = vadd.f32 %v2112, %v1965
        %v2114 = vadd.f32 %v2113, %v1971
        %v2115 = vadd.f32 %v2114, %v1977
        %v2116 = vadd.f32 %v2115, %v1983
        %v2117 = vadd.f32 %v2116, %v1989
        %v2118 = vadd.f32 %v2117, %v1995
        %v2119 = vrot.slane %v2118, 4
        %v2120 = vadd.f32 %v2118, %v2119
        %v2121 = vrot.slane %v2120, 2
        %v2122 = vadd.f32 %v2120, %v2121
        %v2123 = vrot.slane %v2122, 1
        %v2124 = vadd.f32 %v2122, %v2123
        %v2125 = vadd.f32 %v1955, %v1961
        %v2126 = vadd.f32 %v2125, %v1967
        %v2127 = vadd.f32 %v2126, %v1973
        %v2128 = vadd.f32 %v2127, %v1979
        %v2129 = vadd.f32 %v2128, %v1985
        %v2130 = vadd.f32 %v2129, %v1991
        %v2131 = vadd.f32 %v2130, %v1997
        %v2132 = vrot.slane %v2131, 4
        %v2133 = vadd.f32 %v2131, %v2132
        %v2134 = vrot.slane %v2133, 2
        %v2135 = vadd.f32 %v2133, %v2134
        %v2136 = vrot.slane %v2135, 1
        %v2137 = vadd.f32 %v2135, %v2136
        %v2138 = vadd.f32 %v2066, %v2072
        %v2139 = vadd.f32 %v2138, %v2078
        %v2140 = vadd.f32 %v2139, %v2084
        %v2141 = vadd.f32 %v2140, %v2090
        %v2142 = vadd.f32 %v2141, %v2096
        %v2143 = vadd.f32 %v2142, %v2102
        %v2144 = vadd.f32 %v2143, %v2108
        %v2145 = vrot.slane %v2144, 4
        %v2146 = vadd.f32 %v2144, %v2145
        %v2147 = vrot.slane %v2146, 2
        %v2148 = vadd.f32 %v2146, %v2147
        %v2149 = vrot.slane %v2148, 1
        %v2150 = vadd.f32 %v2148, %v2149
        %v2151 = vadd.f32 %v2068, %v2074
        %v2152 = vadd.f32 %v2151, %v2080
        %v2153 = vadd.f32 %v2152, %v2086
        %v2154 = vadd.f32 %v2153, %v2092
        %v2155 = vadd.f32 %v2154, %v2098
        %v2156 = vadd.f32 %v2155, %v2104
        %v2157 = vadd.f32 %v2156, %v2110
        %v2158 = vrot.slane %v2157, 4
        %v2159 = vadd.f32 %v2157, %v2158
        %v2160 = vrot.slane %v2159, 2
        %v2161 = vadd.f32 %v2159, %v2160
        %v2162 = vrot.slane %v2161, 1
        %v2163 = vadd.f32 %v2161, %v2162
        %v2164 = vmul.f32 %v2124, %v1496
        %v2165 = vmul.f32 %v2137, %v1496
        %v2166 = vmul.f32 %v2150, %v1496
        %v2167 = vmul.f32 %v2163, %v1496
        %v2168 = vsub.f32 %v1953, %v2164
        %v2169 = vsub.f32 %v1955, %v2165
        %v2170 = vsub.f32 %v2066, %v2166
        %v2171 = vsub.f32 %v2068, %v2167
        %v2172 = vsub.f32 %v1959, %v2164
        %v2173 = vsub.f32 %v1961, %v2165
        %v2174 = vsub.f32 %v2072, %v2166
        %v2175 = vsub.f32 %v2074, %v2167
        %v2176 = vsub.f32 %v1965, %v2164
        %v2177 = vsub.f32 %v1967, %v2165
        %v2178 = vsub.f32 %v2078, %v2166
        %v2179 = vsub.f32 %v2080, %v2167
        %v2180 = vsub.f32 %v1971, %v2164
        %v2181 = vsub.f32 %v1973, %v2165
        %v2182 = vsub.f32 %v2084, %v2166
        %v2183 = vsub.f32 %v2086, %v2167
        %v2184 = vsub.f32 %v1977, %v2164
        %v2185 = vsub.f32 %v1979, %v2165
        %v2186 = vsub.f32 %v2090, %v2166
        %v2187 = vsub.f32 %v2092, %v2167
        %v2188 = vsub.f32 %v1983, %v2164
        %v2189 = vsub.f32 %v1985, %v2165
        %v2190 = vsub.f32 %v2096, %v2166
        %v2191 = vsub.f32 %v2098, %v2167
        %v2192 = vsub.f32 %v1989, %v2164
        %v2193 = vsub.f32 %v1991, %v2165
        %v2194 = vsub.f32 %v2102, %v2166
        %v2195 = vsub.f32 %v2104, %v2167
        %v2196 = vsub.f32 %v1995, %v2164
        %v2197 = vsub.f32 %v1997, %v2165
        %v2198 = vsub.f32 %v2108, %v2166
        %v2199 = vsub.f32 %v2110, %v2167
        %v2200 = vmul.f32 %v2168, %v2168
        %v2201 = vmul.f32 %v2169, %v2169
        %v2202 = vmul.f32 %v2170, %v2170
        %v2203 = vmul.f32 %v2171, %v2171
        %v2204 = vmul.f32 %v2172, %v2172
        %v2205 = vmul.f32 %v2173, %v2173
        %v2206 = vmul.f32 %v2174, %v2174
        %v2207 = vmul.f32 %v2175, %v2175
        %v2208 = vmul.f32 %v2176, %v2176
        %v2209 = vmul.f32 %v2177, %v2177
        %v2210 = vmul.f32 %v2178, %v2178
        %v2211 = vmul.f32 %v2179, %v2179
        %v2212 = vmul.f32 %v2180, %v2180
        %v2213 = vmul.f32 %v2181, %v2181
        %v2214 = vmul.f32 %v2182, %v2182
        %v2215 = vmul.f32 %v2183, %v2183
        %v2216 = vmul.f32 %v2184, %v2184
        %v2217 = vmul.f32 %v2185, %v2185
        %v2218 = vmul.f32 %v2186, %v2186
        %v2219 = vmul.f32 %v2187, %v2187
        %v2220 = vmul.f32 %v2188, %v2188
        %v2221 = vmul.f32 %v2189, %v2189
        %v2222 = vmul.f32 %v2190, %v2190
        %v2223 = vmul.f32 %v2191, %v2191
        %v2224 = vmul.f32 %v2192, %v2192
        %v2225 = vmul.f32 %v2193, %v2193
        %v2226 = vmul.f32 %v2194, %v2194
        %v2227 = vmul.f32 %v2195, %v2195
        %v2228 = vmul.f32 %v2196, %v2196
        %v2229 = vmul.f32 %v2197, %v2197
        %v2230 = vmul.f32 %v2198, %v2198
        %v2231 = vmul.f32 %v2199, %v2199
        %v2232 = vadd.f32 %v2200, %v2204
        %v2233 = vadd.f32 %v2232, %v2208
        %v2234 = vadd.f32 %v2233, %v2212
        %v2235 = vadd.f32 %v2234, %v2216
        %v2236 = vadd.f32 %v2235, %v2220
        %v2237 = vadd.f32 %v2236, %v2224
        %v2238 = vadd.f32 %v2237, %v2228
        %v2239 = vrot.slane %v2238, 4
        %v2240 = vadd.f32 %v2238, %v2239
        %v2241 = vrot.slane %v2240, 2
        %v2242 = vadd.f32 %v2240, %v2241
        %v2243 = vrot.slane %v2242, 1
        %v2244 = vadd.f32 %v2242, %v2243
        %v2245 = vadd.f32 %v2201, %v2205
        %v2246 = vadd.f32 %v2245, %v2209
        %v2247 = vadd.f32 %v2246, %v2213
        %v2248 = vadd.f32 %v2247, %v2217
        %v2249 = vadd.f32 %v2248, %v2221
        %v2250 = vadd.f32 %v2249, %v2225
        %v2251 = vadd.f32 %v2250, %v2229
        %v2252 = vrot.slane %v2251, 4
        %v2253 = vadd.f32 %v2251, %v2252
        %v2254 = vrot.slane %v2253, 2
        %v2255 = vadd.f32 %v2253, %v2254
        %v2256 = vrot.slane %v2255, 1
        %v2257 = vadd.f32 %v2255, %v2256
        %v2258 = vadd.f32 %v2202, %v2206
        %v2259 = vadd.f32 %v2258, %v2210
        %v2260 = vadd.f32 %v2259, %v2214
        %v2261 = vadd.f32 %v2260, %v2218
        %v2262 = vadd.f32 %v2261, %v2222
        %v2263 = vadd.f32 %v2262, %v2226
        %v2264 = vadd.f32 %v2263, %v2230
        %v2265 = vrot.slane %v2264, 4
        %v2266 = vadd.f32 %v2264, %v2265
        %v2267 = vrot.slane %v2266, 2
        %v2268 = vadd.f32 %v2266, %v2267
        %v2269 = vrot.slane %v2268, 1
        %v2270 = vadd.f32 %v2268, %v2269
        %v2271 = vadd.f32 %v2203, %v2207
        %v2272 = vadd.f32 %v2271, %v2211
        %v2273 = vadd.f32 %v2272, %v2215
        %v2274 = vadd.f32 %v2273, %v2219
        %v2275 = vadd.f32 %v2274, %v2223
        %v2276 = vadd.f32 %v2275, %v2227
        %v2277 = vadd.f32 %v2276, %v2231
        %v2278 = vrot.slane %v2277, 4
        %v2279 = vadd.f32 %v2277, %v2278
        %v2280 = vrot.slane %v2279, 2
        %v2281 = vadd.f32 %v2279, %v2280
        %v2282 = vrot.slane %v2281, 1
        %v2283 = vadd.f32 %v2281, %v2282
        %v2284 = vmul.f32 %v2244, %v1496
        %v2285 = vmul.f32 %v2257, %v1496
        %v2286 = vmul.f32 %v2270, %v1496
        %v2287 = vmul.f32 %v2283, %v1496
        %v2288 = vadd.f32 %v2284, 1e-05
        %v2289 = vadd.f32 %v2285, 1e-05
        %v2290 = vadd.f32 %v2286, 1e-05
        %v2291 = vadd.f32 %v2287, 1e-05
        %v2292 = vrsqrt.pop %v2288
        %v2293 = vrsqrt.pop %v2289
        %v2294 = vrsqrt.pop %v2290
        %v2295 = vrsqrt.pop %v2291
        %v2296 = vmul.f32 %v2168, %v2292
        %v2297 = vmul.f32 %v2169, %v2293
        %v2298 = vmul.f32 %v2170, %v2294
        %v2299 = vmul.f32 %v2171, %v2295
        %v2300 = vmul.f32 %v2172, %v2292
        %v2301 = vmul.f32 %v2173, %v2293
        %v2302 = vmul.f32 %v2174, %v2294
        %v2303 = vmul.f32 %v2175, %v2295
        %v2304 = vmul.f32 %v2176, %v2292
        %v2305 = vmul.f32 %v2177, %v2293
        %v2306 = vmul.f32 %v2178, %v2294
        %v2307 = vmul.f32 %v2179, %v2295
        %v2308 = vmul.f32 %v2180, %v2292
        %v2309 = vmul.f32 %v2181, %v2293
        %v2310 = vmul.f32 %v2182, %v2294
        %v2311 = vmul.f32 %v2183, %v2295
        %v2312 = vmul.f32 %v2184, %v2292
        %v2313 = vmul.f32 %v2185, %v2293
        %v2314 = vmul.f32 %v2186, %v2294
        %v2315 = vmul.f32 %v2187, %v2295
        %v2316 = vmul.f32 %v2188, %v2292
        %v2317 = vmul.f32 %v2189, %v2293
        %v2318 = vmul.f32 %v2190, %v2294
        %v2319 = vmul.f32 %v2191, %v2295
        %v2320 = vmul.f32 %v2192, %v2292
        %v2321 = vmul.f32 %v2193, %v2293
        %v2322 = vmul.f32 %v2194, %v2294
        %v2323 = vmul.f32 %v2195, %v2295
        %v2324 = vmul.f32 %v2196, %v2292
        %v2325 = vmul.f32 %v2197, %v2293
        %v2326 = vmul.f32 %v2198, %v2294
        %v2327 = vmul.f32 %v2199, %v2295
        %2328 = vset.pattern.permute.xlu0 4
        %2329 = vperm.xlu0 %2328, %v1145
        %v2330 = vpop.permute.xlu0 %2329
        %2332 = vset.pattern.permute.xlu0 4
        %2333 = vperm.xlu0 %2332, %v1146
        %v2334 = vpop.permute.xlu0 %2333
        %2336 = vset.pattern.permute.xlu0 4
        %2337 = vperm.xlu0 %2336, %v1147
        %v2338 = vpop.permute.xlu0 %2337
        %2340 = vset.pattern.permute.xlu0 4
        %2341 = vperm.xlu0 %2340, %v1148
        %v2342 = vpop.permute.xlu0 %2341
        %2344 = vset.pattern.permute.xlu0 4
        %2345 = vperm.xlu0 %2344, %v1149
        %v2346 = vpop.permute.xlu0 %2345
        %2348 = vset.pattern.permute.xlu0 4
        %2349 = vperm.xlu0 %2348, %v1150
        %v2350 = vpop.permute.xlu0 %2349
        %2352 = vset.pattern.permute.xlu0 4
        %2353 = vperm.xlu0 %2352, %v1151
        %v2354 = vpop.permute.xlu0 %2353
        %2356 = vset.pattern.permute.xlu0 4
        %2357 = vperm.xlu0 %2356, %v1152
        %v2358 = vpop.permute.xlu0 %2357
        %v2360 = vmul.f32 %v2296, %v2330
        %v2361 = vmul.f32 %v2297, %v2330
        %v2362 = vmul.f32 %v2298, %v2330
        %v2363 = vmul.f32 %v2299, %v2330
        %v2364 = vmul.f32 %v2300, %v2334
        %v2365 = vmul.f32 %v2301, %v2334
        %v2366 = vmul.f32 %v2302, %v2334
        %v2367 = vmul.f32 %v2303, %v2334
        %v2368 = vmul.f32 %v2304, %v2338
        %v2369 = vmul.f32 %v2305, %v2338
        %v2370 = vmul.f32 %v2306, %v2338
        %v2371 = vmul.f32 %v2307, %v2338
        %v2372 = vmul.f32 %v2308, %v2342
        %v2373 = vmul.f32 %v2309, %v2342
        %v2374 = vmul.f32 %v2310, %v2342
        %v2375 = vmul.f32 %v2311, %v2342
        %v2376 = vmul.f32 %v2312, %v2346
        %v2377 = vmul.f32 %v2313, %v2346
        %v2378 = vmul.f32 %v2314, %v2346
        %v2379 = vmul.f32 %v2315, %v2346
        %v2380 = vmul.f32 %v2316, %v2350
        %v2381 = vmul.f32 %v2317, %v2350
        %v2382 = vmul.f32 %v2318, %v2350
        %v2383 = vmul.f32 %v2319, %v2350
        %v2384 = vmul.f32 %v2320, %v2354
        %v2385 = vmul.f32 %v2321, %v2354
        %v2386 = vmul.f32 %v2322, %v2354
        %v2387 = vmul.f32 %v2323, %v2354
        %v2388 = vmul.f32 %v2324, %v2358
        %v2389 = vmul.f32 %v2325, %v2358
        %v2390 = vmul.f32 %v2326, %v2358
        %v2391 = vmul.f32 %v2327, %v2358
        %2392 = vset.pattern.permute.xlu0 5
        %2393 = vperm.xlu0 %2392, %v1145
        %v2394 = vpop.permute.xlu0 %2393
        %2396 = vset.pattern.permute.xlu0 5
        %2397 = vperm.xlu0 %2396, %v1146
        %v2398 = vpop.permute.xlu0 %2397
        %2400 = vset.pattern.permute.xlu0 5
        %2401 = vperm.xlu0 %2400, %v1147
        %v2402 = vpop.permute.xlu0 %2401
        %2404 = vset.pattern.permute.xlu0 5
        %2405 = vperm.xlu0 %2404, %v1148
        %v2406 = vpop.permute.xlu0 %2405
        %2408 = vset.pattern.permute.xlu0 5
        %2409 = vperm.xlu0 %2408, %v1149
        %v2410 = vpop.permute.xlu0 %2409
        %2412 = vset.pattern.permute.xlu0 5
        %2413 = vperm.xlu0 %2412, %v1150
        %v2414 = vpop.permute.xlu0 %2413
        %2416 = vset.pattern.permute.xlu0 5
        %2417 = vperm.xlu0 %2416, %v1151
        %v2418 = vpop.permute.xlu0 %2417
        %2420 = vset.pattern.permute.xlu0 5
        %2421 = vperm.xlu0 %2420, %v1152
        %v2422 = vpop.permute.xlu0 %2421
        %v2424 = vadd.f32 %v2360, %v2394
        %v2425 = vadd.f32 %v2361, %v2394
        %v2426 = vadd.f32 %v2362, %v2394
        %v2427 = vadd.f32 %v2363, %v2394
        %v2428 = vadd.f32 %v2364, %v2398
        %v2429 = vadd.f32 %v2365, %v2398
        %v2430 = vadd.f32 %v2366, %v2398
        %v2431 = vadd.f32 %v2367, %v2398
        %v2432 = vadd.f32 %v2368, %v2402
        %v2433 = vadd.f32 %v2369, %v2402
        %v2434 = vadd.f32 %v2370, %v2402
        %v2435 = vadd.f32 %v2371, %v2402
        %v2436 = vadd.f32 %v2372, %v2406
        %v2437 = vadd.f32 %v2373, %v2406
        %v2438 = vadd.f32 %v2374, %v2406
        %v2439 = vadd.f32 %v2375, %v2406
        %v2440 = vadd.f32 %v2376, %v2410
        %v2441 = vadd.f32 %v2377, %v2410
        %v2442 = vadd.f32 %v2378, %v2410
        %v2443 = vadd.f32 %v2379, %v2410
        %v2444 = vadd.f32 %v2380, %v2414
        %v2445 = vadd.f32 %v2381, %v2414
        %v2446 = vadd.f32 %v2382, %v2414
        %v2447 = vadd.f32 %v2383, %v2414
        %v2448 = vadd.f32 %v2384, %v2418
        %v2449 = vadd.f32 %v2385, %v2418
        %v2450 = vadd.f32 %v2386, %v2418
        %v2451 = vadd.f32 %v2387, %v2418
        %v2452 = vadd.f32 %v2388, %v2422
        %v2453 = vadd.f32 %v2389, %v2422
        %v2454 = vadd.f32 %v2390, %v2422
        %v2455 = vadd.f32 %v2391, %v2422
        %v2456 = vmax.f32 %v2424, 0.0
        %v2457 = vmax.f32 %v2425, 0.0
        %v2458 = vmax.f32 %v2426, 0.0
        %v2459 = vmax.f32 %v2427, 0.0
        %v2460 = vmax.f32 %v2428, 0.0
        %v2461 = vmax.f32 %v2429, 0.0
        %v2462 = vmax.f32 %v2430, 0.0
        %v2463 = vmax.f32 %v2431, 0.0
        %v2464 = vmax.f32 %v2432, 0.0
        %v2465 = vmax.f32 %v2433, 0.0
        %v2466 = vmax.f32 %v2434, 0.0
        %v2467 = vmax.f32 %v2435, 0.0
        %v2468 = vmax.f32 %v2436, 0.0
        %v2469 = vmax.f32 %v2437, 0.0
        %v2470 = vmax.f32 %v2438, 0.0
        %v2471 = vmax.f32 %v2439, 0.0
        %v2472 = vmax.f32 %v2440, 0.0
        %v2473 = vmax.f32 %v2441, 0.0
        %v2474 = vmax.f32 %v2442, 0.0
        %v2475 = vmax.f32 %v2443, 0.0
        %v2476 = vmax.f32 %v2444, 0.0
        %v2477 = vmax.f32 %v2445, 0.0
        %v2478 = vmax.f32 %v2446, 0.0
        %v2479 = vmax.f32 %v2447, 0.0
        %v2480 = vmax.f32 %v2448, 0.0
        %v2481 = vmax.f32 %v2449, 0.0
        %v2482 = vmax.f32 %v2450, 0.0
        %v2483 = vmax.f32 %v2451, 0.0
        %v2484 = vmax.f32 %v2452, 0.0
        %v2485 = vmax.f32 %v2453, 0.0
        %v2486 = vmax.f32 %v2454, 0.0
        %v2487 = vmax.f32 %v2455, 0.0
        %s2488 = scalar_lea.vmem %s2, 64
        %v2489 = vld [vmem:[%s2488] sm:$0xff]
        %v2490 = vld [vmem:[%s2488 + $0x8] sm:$0xff]
        %v2491 = vld [vmem:[%s2488 + $0x10] sm:$0xff]
        %v2492 = vld [vmem:[%s2488 + $0x18] sm:$0xff]
        %v2493 = vld [vmem:[%s2488 + $0x20] sm:$0xff]
        %v2494 = vld [vmem:[%s2488 + $0x28] sm:$0xff]
        %v2495 = vld [vmem:[%s2488 + $0x30] sm:$0xff]
        %v2496 = vld [vmem:[%s2488 + $0x38] sm:$0xff]
        %2497 = vset.pattern.permute.xlu0 6
        %2498 = vperm.xlu0 %2497, %v1145
        %v2499 = vpop.permute.xlu0 %2498
        %2501 = vset.pattern.permute.xlu0 6
        %2502 = vperm.xlu0 %2501, %v1146
        %v2503 = vpop.permute.xlu0 %2502
        %2505 = vset.pattern.permute.xlu0 6
        %2506 = vperm.xlu0 %2505, %v1147
        %v2507 = vpop.permute.xlu0 %2506
        %2509 = vset.pattern.permute.xlu0 6
        %2510 = vperm.xlu0 %2509, %v1148
        %v2511 = vpop.permute.xlu0 %2510
        %2513 = vset.pattern.permute.xlu0 6
        %2514 = vperm.xlu0 %2513, %v1149
        %v2515 = vpop.permute.xlu0 %2514
        %2517 = vset.pattern.permute.xlu0 6
        %2518 = vperm.xlu0 %2517, %v1150
        %v2519 = vpop.permute.xlu0 %2518
        %2521 = vset.pattern.permute.xlu0 6
        %2522 = vperm.xlu0 %2521, %v1151
        %v2523 = vpop.permute.xlu0 %2522
        %2525 = vset.pattern.permute.xlu0 6
        %2526 = vperm.xlu0 %2525, %v1152
        %v2527 = vpop.permute.xlu0 %2526
        %v2530 = vsel %vm1861, %v2489, 0
        %v2533 = vsel %vm1861, %v2490, 0
        %v2536 = vsel %vm1861, %v2491, 0
        %v2539 = vsel %vm1861, %v2492, 0
        %v2542 = vsel %vm1861, %v2493, 0
        %v2545 = vsel %vm1861, %v2494, 0
        %v2548 = vsel %vm1861, %v2495, 0
        %v2551 = vsel %vm1861, %v2496, 0
        %2553 = vmatprep.subr.mxu0 %v2457
        %2554 = vmatpush1.msra.mxu0 %v2456
        %2555 = vmatprep.subr.mxu0 %v2461
        %2556 = vmatpush1.msra.mxu0 %v2460
        %2557 = vmatprep.subr.mxu0 %v2465
        %2558 = vmatpush1.msra.mxu0 %v2464
        %2559 = vmatprep.subr.mxu0 %v2469
        %2560 = vmatpush1.msra.mxu0 %v2468
        %2561 = vmatprep.subr.mxu0 %v2473
        %2562 = vmatpush1.msra.mxu0 %v2472
        %2563 = vmatprep.subr.mxu0 %v2477
        %2564 = vmatpush1.msra.mxu0 %v2476
        %2565 = vmatprep.subr.mxu0 %v2481
        %2566 = vmatpush1.msra.mxu0 %v2480
        %2567 = vmatprep.subr.mxu0 %v2485
        %2568 = vmatpush1.msra.mxu0 %v2484
        %2569 = vmatprep.subr.mxu0 0.0
        %2570 = vmatpush1.msra.mxu0 0.0
        %2571 = vmatprep.subr.mxu0 0.0
        %2572 = vmatpush1.msra.mxu0 0.0
        %2573 = vmatprep.subr.mxu0 0.0
        %2574 = vmatpush1.msra.mxu0 0.0
        %2575 = vmatprep.subr.mxu0 0.0
        %2576 = vmatpush1.msra.mxu0 0.0
        %2577 = vmatprep.subr.mxu0 0.0
        %2578 = vmatpush1.msra.mxu0 0.0
        %2579 = vmatprep.subr.mxu0 0.0
        %2580 = vmatpush1.msra.mxu0 0.0
        %2581 = vmatprep.subr.mxu0 0.0
        %2582 = vmatpush1.msra.mxu0 0.0
        %2583 = vmatprep.subr.mxu0 0.0
        %2584 = vmatpush1.msra.mxu0 0.0
        %2585 = vmatprep.subr.mxu0 0.0
        %2586 = vmatpush1.msra.mxu0 0.0
        %2587 = vmatprep.subr.mxu0 0.0
        %2588 = vmatpush1.msra.mxu0 0.0
        %2589 = vmatprep.subr.mxu0 0.0
        %2590 = vmatpush1.msra.mxu0 0.0
        %2591 = vmatprep.subr.mxu0 0.0
        %2592 = vmatpush1.msra.mxu0 0.0
        %2593 = vmatprep.subr.mxu0 0.0
        %2594 = vmatpush1.msra.mxu0 0.0
        %2595 = vmatprep.subr.mxu0 0.0
        %2596 = vmatpush1.msra.mxu0 0.0
        %2597 = vmatprep.subr.mxu0 0.0
        %2598 = vmatpush1.msra.mxu0 0.0
        %2599 = vmatprep.subr.mxu0 0.0
        %2600 = vmatpush1.msra.mxu0 0.0
        %2601 = vmatprep.subr.mxu0 0.0
        %2602 = vmatpush1.msra.mxu0 0.0
        %2603 = vmatprep.subr.mxu0 0.0
        %2604 = vmatpush1.msra.mxu0 0.0
        %2605 = vmatprep.subr.mxu0 0.0
        %2606 = vmatpush1.msra.mxu0 0.0
        %2607 = vmatprep.subr.mxu0 0.0
        %2608 = vmatpush1.msra.mxu0 0.0
        %2609 = vmatprep.subr.mxu0 0.0
        %2610 = vmatpush1.msra.mxu0 0.0
        %2611 = vmatprep.subr.mxu0 0.0
        %2612 = vmatpush1.msra.mxu0 0.0
        %2613 = vmatprep.subr.mxu0 0.0
        %2614 = vmatpush1.msra.mxu0 0.0
        %2615 = vmatprep.subr.mxu0 0.0
        %2616 = vmatpush1.msra.mxu0 0.0
        %2617 = vmatprep.mubr.f32.mxu0 0.0
        %2618 = vmatmul.mubr.f32.gmra.mrb[0].mxu0 %v2530
        %v2619 = vpop.f32.mrb[0].mxu0
        %v2620 = vadd.f32 %v2499, %v2619
        %v2621 = vpop.f32.mrb[0].mxu0
        %v2622 = vadd.f32 %v2499, %v2621
        %2623 = vmatprep.mubr.f32.mxu0 0.0
        %2624 = vmatmul.mubr.f32.gmra.mrb[0].mxu0 %v2533
        %v2625 = vpop.f32.mrb[0].mxu0
        %v2626 = vadd.f32 %v2503, %v2625
        %v2627 = vpop.f32.mrb[0].mxu0
        %v2628 = vadd.f32 %v2503, %v2627
        %2629 = vmatprep.mubr.f32.mxu0 0.0
        %2630 = vmatmul.mubr.f32.gmra.mrb[0].mxu0 %v2536
        %v2631 = vpop.f32.mrb[0].mxu0
        %v2632 = vadd.f32 %v2507, %v2631
        %v2633 = vpop.f32.mrb[0].mxu0
        %v2634 = vadd.f32 %v2507, %v2633
        %2635 = vmatprep.mubr.f32.mxu0 0.0
        %2636 = vmatmul.mubr.f32.gmra.mrb[0].mxu0 %v2539
        %v2637 = vpop.f32.mrb[0].mxu0
        %v2638 = vadd.f32 %v2511, %v2637
        %v2639 = vpop.f32.mrb[0].mxu0
        %v2640 = vadd.f32 %v2511, %v2639
        %2641 = vmatprep.mubr.f32.mxu0 0.0
        %2642 = vmatmul.mubr.f32.gmra.mrb[0].mxu0 %v2542
        %v2643 = vpop.f32.mrb[0].mxu0
        %v2644 = vadd.f32 %v2515, %v2643
        %v2645 = vpop.f32.mrb[0].mxu0
        %v2646 = vadd.f32 %v2515, %v2645
        %2647 = vmatprep.mubr.f32.mxu0 0.0
        %2648 = vmatmul.mubr.f32.gmra.mrb[0].mxu0 %v2545
        %v2649 = vpop.f32.mrb[0].mxu0
        %v2650 = vadd.f32 %v2519, %v2649
        %v2651 = vpop.f32.mrb[0].mxu0
        %v2652 = vadd.f32 %v2519, %v2651
        %2653 = vmatprep.mubr.f32.mxu0 0.0
        %2654 = vmatmul.mubr.f32.gmra.mrb[0].mxu0 %v2548
        %v2655 = vpop.f32.mrb[0].mxu0
        %v2656 = vadd.f32 %v2523, %v2655
        %v2657 = vpop.f32.mrb[0].mxu0
        %v2658 = vadd.f32 %v2523, %v2657
        %2659 = vmatprep.mubr.f32.mxu0 0.0
        %2660 = vmatmul.mubr.f32.gmra.mrb[0].mxu0 %v2551
        %v2661 = vpop.f32.mrb[0].mxu0
        %v2662 = vadd.f32 %v2527, %v2661
        %v2663 = vpop.f32.mrb[0].mxu0
        %v2664 = vadd.f32 %v2527, %v2663
        %2665 = vdwg.mxu0
        %2666 = vmatprep.subr.mxu0 %v2459
        %2667 = vmatpush1.msra.mxu0 %v2458
        %2668 = vmatprep.subr.mxu0 %v2463
        %2669 = vmatpush1.msra.mxu0 %v2462
        %2670 = vmatprep.subr.mxu0 %v2467
        %2671 = vmatpush1.msra.mxu0 %v2466
        %2672 = vmatprep.subr.mxu0 %v2471
        %2673 = vmatpush1.msra.mxu0 %v2470
        %2674 = vmatprep.subr.mxu0 %v2475
        %2675 = vmatpush1.msra.mxu0 %v2474
        %2676 = vmatprep.subr.mxu0 %v2479
        %2677 = vmatpush1.msra.mxu0 %v2478
        %2678 = vmatprep.subr.mxu0 %v2483
        %2679 = vmatpush1.msra.mxu0 %v2482
        %2680 = vmatprep.subr.mxu0 %v2487
        %2681 = vmatpush1.msra.mxu0 %v2486
        %2682 = vmatprep.subr.mxu0 0.0
        %2683 = vmatpush1.msra.mxu0 0.0
        %2684 = vmatprep.subr.mxu0 0.0
        %2685 = vmatpush1.msra.mxu0 0.0
        %2686 = vmatprep.subr.mxu0 0.0
        %2687 = vmatpush1.msra.mxu0 0.0
        %2688 = vmatprep.subr.mxu0 0.0
        %2689 = vmatpush1.msra.mxu0 0.0
        %2690 = vmatprep.subr.mxu0 0.0
        %2691 = vmatpush1.msra.mxu0 0.0
        %2692 = vmatprep.subr.mxu0 0.0
        %2693 = vmatpush1.msra.mxu0 0.0
        %2694 = vmatprep.subr.mxu0 0.0
        %2695 = vmatpush1.msra.mxu0 0.0
        %2696 = vmatprep.subr.mxu0 0.0
        %2697 = vmatpush1.msra.mxu0 0.0
        %2698 = vmatprep.subr.mxu0 0.0
        %2699 = vmatpush1.msra.mxu0 0.0
        %2700 = vmatprep.subr.mxu0 0.0
        %2701 = vmatpush1.msra.mxu0 0.0
        %2702 = vmatprep.subr.mxu0 0.0
        %2703 = vmatpush1.msra.mxu0 0.0
        %2704 = vmatprep.subr.mxu0 0.0
        %2705 = vmatpush1.msra.mxu0 0.0
        %2706 = vmatprep.subr.mxu0 0.0
        %2707 = vmatpush1.msra.mxu0 0.0
        %2708 = vmatprep.subr.mxu0 0.0
        %2709 = vmatpush1.msra.mxu0 0.0
        %2710 = vmatprep.subr.mxu0 0.0
        %2711 = vmatpush1.msra.mxu0 0.0
        %2712 = vmatprep.subr.mxu0 0.0
        %2713 = vmatpush1.msra.mxu0 0.0
        %2714 = vmatprep.subr.mxu0 0.0
        %2715 = vmatpush1.msra.mxu0 0.0
        %2716 = vmatprep.subr.mxu0 0.0
        %2717 = vmatpush1.msra.mxu0 0.0
        %2718 = vmatprep.subr.mxu0 0.0
        %2719 = vmatpush1.msra.mxu0 0.0
        %2720 = vmatprep.subr.mxu0 0.0
        %2721 = vmatpush1.msra.mxu0 0.0
        %2722 = vmatprep.subr.mxu0 0.0
        %2723 = vmatpush1.msra.mxu0 0.0
        %2724 = vmatprep.subr.mxu0 0.0
        %2725 = vmatpush1.msra.mxu0 0.0
        %2726 = vmatprep.subr.mxu0 0.0
        %2727 = vmatpush1.msra.mxu0 0.0
        %2728 = vmatprep.subr.mxu0 0.0
        %2729 = vmatpush1.msra.mxu0 0.0
        %2730 = vmatprep.mubr.f32.mxu0 0.0
        %2731 = vmatmul.mubr.f32.gmra.mrb[0].mxu0 %v2530
        %v2732 = vpop.f32.mrb[0].mxu0
        %v2733 = vadd.f32 %v2499, %v2732
        %v2734 = vpop.f32.mrb[0].mxu0
        %v2735 = vadd.f32 %v2499, %v2734
        %2736 = vmatprep.mubr.f32.mxu0 0.0
        %2737 = vmatmul.mubr.f32.gmra.mrb[0].mxu0 %v2533
        %v2738 = vpop.f32.mrb[0].mxu0
        %v2739 = vadd.f32 %v2503, %v2738
        %v2740 = vpop.f32.mrb[0].mxu0
        %v2741 = vadd.f32 %v2503, %v2740
        %2742 = vmatprep.mubr.f32.mxu0 0.0
        %2743 = vmatmul.mubr.f32.gmra.mrb[0].mxu0 %v2536
        %v2744 = vpop.f32.mrb[0].mxu0
        %v2745 = vadd.f32 %v2507, %v2744
        %v2746 = vpop.f32.mrb[0].mxu0
        %v2747 = vadd.f32 %v2507, %v2746
        %2748 = vmatprep.mubr.f32.mxu0 0.0
        %2749 = vmatmul.mubr.f32.gmra.mrb[0].mxu0 %v2539
        %v2750 = vpop.f32.mrb[0].mxu0
        %v2751 = vadd.f32 %v2511, %v2750
        %v2752 = vpop.f32.mrb[0].mxu0
        %v2753 = vadd.f32 %v2511, %v2752
        %2754 = vmatprep.mubr.f32.mxu0 0.0
        %2755 = vmatmul.mubr.f32.gmra.mrb[0].mxu0 %v2542
        %v2756 = vpop.f32.mrb[0].mxu0
        %v2757 = vadd.f32 %v2515, %v2756
        %v2758 = vpop.f32.mrb[0].mxu0
        %v2759 = vadd.f32 %v2515, %v2758
        %2760 = vmatprep.mubr.f32.mxu0 0.0
        %2761 = vmatmul.mubr.f32.gmra.mrb[0].mxu0 %v2545
        %v2762 = vpop.f32.mrb[0].mxu0
        %v2763 = vadd.f32 %v2519, %v2762
        %v2764 = vpop.f32.mrb[0].mxu0
        %v2765 = vadd.f32 %v2519, %v2764
        %2766 = vmatprep.mubr.f32.mxu0 0.0
        %2767 = vmatmul.mubr.f32.gmra.mrb[0].mxu0 %v2548
        %v2768 = vpop.f32.mrb[0].mxu0
        %v2769 = vadd.f32 %v2523, %v2768
        %v2770 = vpop.f32.mrb[0].mxu0
        %v2771 = vadd.f32 %v2523, %v2770
        %2772 = vmatprep.mubr.f32.mxu0 0.0
        %2773 = vmatmul.mubr.f32.gmra.mrb[0].mxu0 %v2551
        %v2774 = vpop.f32.mrb[0].mxu0
        %v2775 = vadd.f32 %v2527, %v2774
        %v2776 = vpop.f32.mrb[0].mxu0
        %v2777 = vadd.f32 %v2527, %v2776
        %2778 = vdwg.mxu0
        %v2779 = vadd.f32 %v2620, %v2626
        %v2780 = vadd.f32 %v2779, %v2632
        %v2781 = vadd.f32 %v2780, %v2638
        %v2782 = vadd.f32 %v2781, %v2644
        %v2783 = vadd.f32 %v2782, %v2650
        %v2784 = vadd.f32 %v2783, %v2656
        %v2785 = vadd.f32 %v2784, %v2662
        %v2786 = vrot.slane %v2785, 4
        %v2787 = vadd.f32 %v2785, %v2786
        %v2788 = vrot.slane %v2787, 2
        %v2789 = vadd.f32 %v2787, %v2788
        %v2790 = vrot.slane %v2789, 1
        %v2791 = vadd.f32 %v2789, %v2790
        %v2792 = vadd.f32 %v2622, %v2628
        %v2793 = vadd.f32 %v2792, %v2634
        %v2794 = vadd.f32 %v2793, %v2640
        %v2795 = vadd.f32 %v2794, %v2646
        %v2796 = vadd.f32 %v2795, %v2652
        %v2797 = vadd.f32 %v2796, %v2658
        %v2798 = vadd.f32 %v2797, %v2664
        %v2799 = vrot.slane %v2798, 4
        %v2800 = vadd.f32 %v2798, %v2799
        %v2801 = vrot.slane %v2800, 2
        %v2802 = vadd.f32 %v2800, %v2801
        %v2803 = vrot.slane %v2802, 1
        %v2804 = vadd.f32 %v2802, %v2803
        %v2805 = vadd.f32 %v2733, %v2739
        %v2806 = vadd.f32 %v2805, %v2745
        %v2807 = vadd.f32 %v2806, %v2751
        %v2808 = vadd.f32 %v2807, %v2757
        %v2809 = vadd.f32 %v2808, %v2763
        %v2810 = vadd.f32 %v2809, %v2769
        %v2811 = vadd.f32 %v2810, %v2775
        %v2812 = vrot.slane %v2811, 4
        %v2813 = vadd.f32 %v2811, %v2812
        %v2814 = vrot.slane %v2813, 2
        %v2815 = vadd.f32 %v2813, %v2814
        %v2816 = vrot.slane %v2815, 1
        %v2817 = vadd.f32 %v2815, %v2816
        %v2818 = vadd.f32 %v2735, %v2741
        %v2819 = vadd.f32 %v2818, %v2747
        %v2820 = vadd.f32 %v2819, %v2753
        %v2821 = vadd.f32 %v2820, %v2759
        %v2822 = vadd.f32 %v2821, %v2765
        %v2823 = vadd.f32 %v2822, %v2771
        %v2824 = vadd.f32 %v2823, %v2777
        %v2825 = vrot.slane %v2824, 4
        %v2826 = vadd.f32 %v2824, %v2825
        %v2827 = vrot.slane %v2826, 2
        %v2828 = vadd.f32 %v2826, %v2827
        %v2829 = vrot.slane %v2828, 1
        %v2830 = vadd.f32 %v2828, %v2829
        %v2831 = vmul.f32 %v2791, %v1496
        %v2832 = vmul.f32 %v2804, %v1496
        %v2833 = vmul.f32 %v2817, %v1496
        %v2834 = vmul.f32 %v2830, %v1496
        %v2835 = vsub.f32 %v2620, %v2831
        %v2836 = vsub.f32 %v2622, %v2832
        %v2837 = vsub.f32 %v2733, %v2833
        %v2838 = vsub.f32 %v2735, %v2834
        %v2839 = vsub.f32 %v2626, %v2831
        %v2840 = vsub.f32 %v2628, %v2832
        %v2841 = vsub.f32 %v2739, %v2833
        %v2842 = vsub.f32 %v2741, %v2834
        %v2843 = vsub.f32 %v2632, %v2831
        %v2844 = vsub.f32 %v2634, %v2832
        %v2845 = vsub.f32 %v2745, %v2833
        %v2846 = vsub.f32 %v2747, %v2834
        %v2847 = vsub.f32 %v2638, %v2831
        %v2848 = vsub.f32 %v2640, %v2832
        %v2849 = vsub.f32 %v2751, %v2833
        %v2850 = vsub.f32 %v2753, %v2834
        %v2851 = vsub.f32 %v2644, %v2831
        %v2852 = vsub.f32 %v2646, %v2832
        %v2853 = vsub.f32 %v2757, %v2833
        %v2854 = vsub.f32 %v2759, %v2834
        %v2855 = vsub.f32 %v2650, %v2831
        %v2856 = vsub.f32 %v2652, %v2832
        %v2857 = vsub.f32 %v2763, %v2833
        %v2858 = vsub.f32 %v2765, %v2834
        %v2859 = vsub.f32 %v2656, %v2831
        %v2860 = vsub.f32 %v2658, %v2832
        %v2861 = vsub.f32 %v2769, %v2833
        %v2862 = vsub.f32 %v2771, %v2834
        %v2863 = vsub.f32 %v2662, %v2831
        %v2864 = vsub.f32 %v2664, %v2832
        %v2865 = vsub.f32 %v2775, %v2833
        %v2866 = vsub.f32 %v2777, %v2834
        %v2867 = vmul.f32 %v2835, %v2835
        %v2868 = vmul.f32 %v2836, %v2836
        %v2869 = vmul.f32 %v2837, %v2837
        %v2870 = vmul.f32 %v2838, %v2838
        %v2871 = vmul.f32 %v2839, %v2839
        %v2872 = vmul.f32 %v2840, %v2840
        %v2873 = vmul.f32 %v2841, %v2841
        %v2874 = vmul.f32 %v2842, %v2842
        %v2875 = vmul.f32 %v2843, %v2843
        %v2876 = vmul.f32 %v2844, %v2844
        %v2877 = vmul.f32 %v2845, %v2845
        %v2878 = vmul.f32 %v2846, %v2846
        %v2879 = vmul.f32 %v2847, %v2847
        %v2880 = vmul.f32 %v2848, %v2848
        %v2881 = vmul.f32 %v2849, %v2849
        %v2882 = vmul.f32 %v2850, %v2850
        %v2883 = vmul.f32 %v2851, %v2851
        %v2884 = vmul.f32 %v2852, %v2852
        %v2885 = vmul.f32 %v2853, %v2853
        %v2886 = vmul.f32 %v2854, %v2854
        %v2887 = vmul.f32 %v2855, %v2855
        %v2888 = vmul.f32 %v2856, %v2856
        %v2889 = vmul.f32 %v2857, %v2857
        %v2890 = vmul.f32 %v2858, %v2858
        %v2891 = vmul.f32 %v2859, %v2859
        %v2892 = vmul.f32 %v2860, %v2860
        %v2893 = vmul.f32 %v2861, %v2861
        %v2894 = vmul.f32 %v2862, %v2862
        %v2895 = vmul.f32 %v2863, %v2863
        %v2896 = vmul.f32 %v2864, %v2864
        %v2897 = vmul.f32 %v2865, %v2865
        %v2898 = vmul.f32 %v2866, %v2866
        %v2899 = vadd.f32 %v2867, %v2871
        %v2900 = vadd.f32 %v2899, %v2875
        %v2901 = vadd.f32 %v2900, %v2879
        %v2902 = vadd.f32 %v2901, %v2883
        %v2903 = vadd.f32 %v2902, %v2887
        %v2904 = vadd.f32 %v2903, %v2891
        %v2905 = vadd.f32 %v2904, %v2895
        %v2906 = vrot.slane %v2905, 4
        %v2907 = vadd.f32 %v2905, %v2906
        %v2908 = vrot.slane %v2907, 2
        %v2909 = vadd.f32 %v2907, %v2908
        %v2910 = vrot.slane %v2909, 1
        %v2911 = vadd.f32 %v2909, %v2910
        %v2912 = vadd.f32 %v2868, %v2872
        %v2913 = vadd.f32 %v2912, %v2876
        %v2914 = vadd.f32 %v2913, %v2880
        %v2915 = vadd.f32 %v2914, %v2884
        %v2916 = vadd.f32 %v2915, %v2888
        %v2917 = vadd.f32 %v2916, %v2892
        %v2918 = vadd.f32 %v2917, %v2896
        %v2919 = vrot.slane %v2918, 4
        %v2920 = vadd.f32 %v2918, %v2919
        %v2921 = vrot.slane %v2920, 2
        %v2922 = vadd.f32 %v2920, %v2921
        %v2923 = vrot.slane %v2922, 1
        %v2924 = vadd.f32 %v2922, %v2923
        %v2925 = vadd.f32 %v2869, %v2873
        %v2926 = vadd.f32 %v2925, %v2877
        %v2927 = vadd.f32 %v2926, %v2881
        %v2928 = vadd.f32 %v2927, %v2885
        %v2929 = vadd.f32 %v2928, %v2889
        %v2930 = vadd.f32 %v2929, %v2893
        %v2931 = vadd.f32 %v2930, %v2897
        %v2932 = vrot.slane %v2931, 4
        %v2933 = vadd.f32 %v2931, %v2932
        %v2934 = vrot.slane %v2933, 2
        %v2935 = vadd.f32 %v2933, %v2934
        %v2936 = vrot.slane %v2935, 1
        %v2937 = vadd.f32 %v2935, %v2936
        %v2938 = vadd.f32 %v2870, %v2874
        %v2939 = vadd.f32 %v2938, %v2878
        %v2940 = vadd.f32 %v2939, %v2882
        %v2941 = vadd.f32 %v2940, %v2886
        %v2942 = vadd.f32 %v2941, %v2890
        %v2943 = vadd.f32 %v2942, %v2894
        %v2944 = vadd.f32 %v2943, %v2898
        %v2945 = vrot.slane %v2944, 4
        %v2946 = vadd.f32 %v2944, %v2945
        %v2947 = vrot.slane %v2946, 2
        %v2948 = vadd.f32 %v2946, %v2947
        %v2949 = vrot.slane %v2948, 1
        %v2950 = vadd.f32 %v2948, %v2949
        %v2951 = vmul.f32 %v2911, %v1496
        %v2952 = vmul.f32 %v2924, %v1496
        %v2953 = vmul.f32 %v2937, %v1496
        %v2954 = vmul.f32 %v2950, %v1496
        %v2955 = vadd.f32 %v2951, 1e-05
        %v2956 = vadd.f32 %v2952, 1e-05
        %v2957 = vadd.f32 %v2953, 1e-05
        %v2958 = vadd.f32 %v2954, 1e-05
        %v2959 = vrsqrt.pop %v2955
        %v2960 = vrsqrt.pop %v2956
        %v2961 = vrsqrt.pop %v2957
        %v2962 = vrsqrt.pop %v2958
        %v2963 = vmul.f32 %v2835, %v2959
        %v2964 = vmul.f32 %v2836, %v2960
        %v2965 = vmul.f32 %v2837, %v2961
        %v2966 = vmul.f32 %v2838, %v2962
        %v2967 = vmul.f32 %v2839, %v2959
        %v2968 = vmul.f32 %v2840, %v2960
        %v2969 = vmul.f32 %v2841, %v2961
        %v2970 = vmul.f32 %v2842, %v2962
        %v2971 = vmul.f32 %v2843, %v2959
        %v2972 = vmul.f32 %v2844, %v2960
        %v2973 = vmul.f32 %v2845, %v2961
        %v2974 = vmul.f32 %v2846, %v2962
        %v2975 = vmul.f32 %v2847, %v2959
        %v2976 = vmul.f32 %v2848, %v2960
        %v2977 = vmul.f32 %v2849, %v2961
        %v2978 = vmul.f32 %v2850, %v2962
        %v2979 = vmul.f32 %v2851, %v2959
        %v2980 = vmul.f32 %v2852, %v2960
        %v2981 = vmul.f32 %v2853, %v2961
        %v2982 = vmul.f32 %v2854, %v2962
        %v2983 = vmul.f32 %v2855, %v2959
        %v2984 = vmul.f32 %v2856, %v2960
        %v2985 = vmul.f32 %v2857, %v2961
        %v2986 = vmul.f32 %v2858, %v2962
        %v2987 = vmul.f32 %v2859, %v2959
        %v2988 = vmul.f32 %v2860, %v2960
        %v2989 = vmul.f32 %v2861, %v2961
        %v2990 = vmul.f32 %v2862, %v2962
        %v2991 = vmul.f32 %v2863, %v2959
        %v2992 = vmul.f32 %v2864, %v2960
        %v2993 = vmul.f32 %v2865, %v2961
        %v2994 = vmul.f32 %v2866, %v2962
        %2995 = vset.pattern.permute.xlu0 7
        %2996 = vperm.xlu0 %2995, %v1145
        %v2997 = vpop.permute.xlu0 %2996
        %2999 = vset.pattern.permute.xlu0 7
        %3000 = vperm.xlu0 %2999, %v1146
        %v3001 = vpop.permute.xlu0 %3000
        %3003 = vset.pattern.permute.xlu0 7
        %3004 = vperm.xlu0 %3003, %v1147
        %v3005 = vpop.permute.xlu0 %3004
        %3007 = vset.pattern.permute.xlu0 7
        %3008 = vperm.xlu0 %3007, %v1148
        %v3009 = vpop.permute.xlu0 %3008
        %3011 = vset.pattern.permute.xlu0 7
        %3012 = vperm.xlu0 %3011, %v1149
        %v3013 = vpop.permute.xlu0 %3012
        %3015 = vset.pattern.permute.xlu0 7
        %3016 = vperm.xlu0 %3015, %v1150
        %v3017 = vpop.permute.xlu0 %3016
        %3019 = vset.pattern.permute.xlu0 7
        %3020 = vperm.xlu0 %3019, %v1151
        %v3021 = vpop.permute.xlu0 %3020
        %3023 = vset.pattern.permute.xlu0 7
        %3024 = vperm.xlu0 %3023, %v1152
        %v3025 = vpop.permute.xlu0 %3024
        %v3027 = vmul.f32 %v2963, %v2997
        %v3028 = vmul.f32 %v2964, %v2997
        %v3029 = vmul.f32 %v2965, %v2997
        %v3030 = vmul.f32 %v2966, %v2997
        %v3031 = vmul.f32 %v2967, %v3001
        %v3032 = vmul.f32 %v2968, %v3001
        %v3033 = vmul.f32 %v2969, %v3001
        %v3034 = vmul.f32 %v2970, %v3001
        %v3035 = vmul.f32 %v2971, %v3005
        %v3036 = vmul.f32 %v2972, %v3005
        %v3037 = vmul.f32 %v2973, %v3005
        %v3038 = vmul.f32 %v2974, %v3005
        %v3039 = vmul.f32 %v2975, %v3009
        %v3040 = vmul.f32 %v2976, %v3009
        %v3041 = vmul.f32 %v2977, %v3009
        %v3042 = vmul.f32 %v2978, %v3009
        %v3043 = vmul.f32 %v2979, %v3013
        %v3044 = vmul.f32 %v2980, %v3013
        %v3045 = vmul.f32 %v2981, %v3013
        %v3046 = vmul.f32 %v2982, %v3013
        %v3047 = vmul.f32 %v2983, %v3017
        %v3048 = vmul.f32 %v2984, %v3017
        %v3049 = vmul.f32 %v2985, %v3017
        %v3050 = vmul.f32 %v2986, %v3017
        %v3051 = vmul.f32 %v2987, %v3021
        %v3052 = vmul.f32 %v2988, %v3021
        %v3053 = vmul.f32 %v2989, %v3021
        %v3054 = vmul.f32 %v2990, %v3021
        %v3055 = vmul.f32 %v2991, %v3025
        %v3056 = vmul.f32 %v2992, %v3025
        %v3057 = vmul.f32 %v2993, %v3025
        %v3058 = vmul.f32 %v2994, %v3025
        %3059 = vset.pattern.permute.xlu0 8
        %3060 = vperm.xlu0 %3059, %v1145
        %v3061 = vpop.permute.xlu0 %3060
        %3063 = vset.pattern.permute.xlu0 8
        %3064 = vperm.xlu0 %3063, %v1146
        %v3065 = vpop.permute.xlu0 %3064
        %3067 = vset.pattern.permute.xlu0 8
        %3068 = vperm.xlu0 %3067, %v1147
        %v3069 = vpop.permute.xlu0 %3068
        %3071 = vset.pattern.permute.xlu0 8
        %3072 = vperm.xlu0 %3071, %v1148
        %v3073 = vpop.permute.xlu0 %3072
        %3075 = vset.pattern.permute.xlu0 8
        %3076 = vperm.xlu0 %3075, %v1149
        %v3077 = vpop.permute.xlu0 %3076
        %3079 = vset.pattern.permute.xlu0 8
        %3080 = vperm.xlu0 %3079, %v1150
        %v3081 = vpop.permute.xlu0 %3080
        %3083 = vset.pattern.permute.xlu0 8
        %3084 = vperm.xlu0 %3083, %v1151
        %v3085 = vpop.permute.xlu0 %3084
        %3087 = vset.pattern.permute.xlu0 8
        %3088 = vperm.xlu0 %3087, %v1152
        %v3089 = vpop.permute.xlu0 %3088
        %v3091 = vadd.f32 %v3027, %v3061
        %v3092 = vadd.f32 %v3028, %v3061
        %v3093 = vadd.f32 %v3029, %v3061
        %v3094 = vadd.f32 %v3030, %v3061
        %v3095 = vadd.f32 %v3031, %v3065
        %v3096 = vadd.f32 %v3032, %v3065
        %v3097 = vadd.f32 %v3033, %v3065
        %v3098 = vadd.f32 %v3034, %v3065
        %v3099 = vadd.f32 %v3035, %v3069
        %v3100 = vadd.f32 %v3036, %v3069
        %v3101 = vadd.f32 %v3037, %v3069
        %v3102 = vadd.f32 %v3038, %v3069
        %v3103 = vadd.f32 %v3039, %v3073
        %v3104 = vadd.f32 %v3040, %v3073
        %v3105 = vadd.f32 %v3041, %v3073
        %v3106 = vadd.f32 %v3042, %v3073
        %v3107 = vadd.f32 %v3043, %v3077
        %v3108 = vadd.f32 %v3044, %v3077
        %v3109 = vadd.f32 %v3045, %v3077
        %v3110 = vadd.f32 %v3046, %v3077
        %v3111 = vadd.f32 %v3047, %v3081
        %v3112 = vadd.f32 %v3048, %v3081
        %v3113 = vadd.f32 %v3049, %v3081
        %v3114 = vadd.f32 %v3050, %v3081
        %v3115 = vadd.f32 %v3051, %v3085
        %v3116 = vadd.f32 %v3052, %v3085
        %v3117 = vadd.f32 %v3053, %v3085
        %v3118 = vadd.f32 %v3054, %v3085
        %v3119 = vadd.f32 %v3055, %v3089
        %v3120 = vadd.f32 %v3056, %v3089
        %v3121 = vadd.f32 %v3057, %v3089
        %v3122 = vadd.f32 %v3058, %v3089
        %v3123 = vmax.f32 %v3091, 0.0
        %v3124 = vmax.f32 %v3092, 0.0
        %v3125 = vmax.f32 %v3093, 0.0
        %v3126 = vmax.f32 %v3094, 0.0
        %v3127 = vmax.f32 %v3095, 0.0
        %v3128 = vmax.f32 %v3096, 0.0
        %v3129 = vmax.f32 %v3097, 0.0
        %v3130 = vmax.f32 %v3098, 0.0
        %v3131 = vmax.f32 %v3099, 0.0
        %v3132 = vmax.f32 %v3100, 0.0
        %v3133 = vmax.f32 %v3101, 0.0
        %v3134 = vmax.f32 %v3102, 0.0
        %v3135 = vmax.f32 %v3103, 0.0
        %v3136 = vmax.f32 %v3104, 0.0
        %v3137 = vmax.f32 %v3105, 0.0
        %v3138 = vmax.f32 %v3106, 0.0
        %v3139 = vmax.f32 %v3107, 0.0
        %v3140 = vmax.f32 %v3108, 0.0
        %v3141 = vmax.f32 %v3109, 0.0
        %v3142 = vmax.f32 %v3110, 0.0
        %v3143 = vmax.f32 %v3111, 0.0
        %v3144 = vmax.f32 %v3112, 0.0
        %v3145 = vmax.f32 %v3113, 0.0
        %v3146 = vmax.f32 %v3114, 0.0
        %v3147 = vmax.f32 %v3115, 0.0
        %v3148 = vmax.f32 %v3116, 0.0
        %v3149 = vmax.f32 %v3117, 0.0
        %v3150 = vmax.f32 %v3118, 0.0
        %v3151 = vmax.f32 %v3119, 0.0
        %v3152 = vmax.f32 %v3120, 0.0
        %v3153 = vmax.f32 %v3121, 0.0
        %v3154 = vmax.f32 %v3122, 0.0
        %v3155 = vld [vmem:[%s3] sm:$0xff]
        %v3156 = vld [vmem:[%s4] sm:$0xff]
        %3158 = vset.pattern.permute.xlu0 9
        %3159 = vperm.xlu0 %3158, %v3156
        %v3160 = vpop.permute.xlu0 %3159
        %v3163 = vsel %vm1861, %v3155, 0
        %3165 = vmatprep.subr.mxu0 %v3124
        %3166 = vmatpush1.msra.mxu0 %v3123
        %3167 = vmatprep.subr.mxu0 %v3128
        %3168 = vmatpush1.msra.mxu0 %v3127
        %3169 = vmatprep.subr.mxu0 %v3132
        %3170 = vmatpush1.msra.mxu0 %v3131
        %3171 = vmatprep.subr.mxu0 %v3136
        %3172 = vmatpush1.msra.mxu0 %v3135
        %3173 = vmatprep.subr.mxu0 %v3140
        %3174 = vmatpush1.msra.mxu0 %v3139
        %3175 = vmatprep.subr.mxu0 %v3144
        %3176 = vmatpush1.msra.mxu0 %v3143
        %3177 = vmatprep.subr.mxu0 %v3148
        %3178 = vmatpush1.msra.mxu0 %v3147
        %3179 = vmatprep.subr.mxu0 %v3152
        %3180 = vmatpush1.msra.mxu0 %v3151
        %3181 = vmatprep.subr.mxu0 0.0
        %3182 = vmatpush1.msra.mxu0 0.0
        %3183 = vmatprep.subr.mxu0 0.0
        %3184 = vmatpush1.msra.mxu0 0.0
        %3185 = vmatprep.subr.mxu0 0.0
        %3186 = vmatpush1.msra.mxu0 0.0
        %3187 = vmatprep.subr.mxu0 0.0
        %3188 = vmatpush1.msra.mxu0 0.0
        %3189 = vmatprep.subr.mxu0 0.0
        %3190 = vmatpush1.msra.mxu0 0.0
        %3191 = vmatprep.subr.mxu0 0.0
        %3192 = vmatpush1.msra.mxu0 0.0
        %3193 = vmatprep.subr.mxu0 0.0
        %3194 = vmatpush1.msra.mxu0 0.0
        %3195 = vmatprep.subr.mxu0 0.0
        %3196 = vmatpush1.msra.mxu0 0.0
        %3197 = vmatprep.subr.mxu0 0.0
        %3198 = vmatpush1.msra.mxu0 0.0
        %3199 = vmatprep.subr.mxu0 0.0
        %3200 = vmatpush1.msra.mxu0 0.0
        %3201 = vmatprep.subr.mxu0 0.0
        %3202 = vmatpush1.msra.mxu0 0.0
        %3203 = vmatprep.subr.mxu0 0.0
        %3204 = vmatpush1.msra.mxu0 0.0
        %3205 = vmatprep.subr.mxu0 0.0
        %3206 = vmatpush1.msra.mxu0 0.0
        %3207 = vmatprep.subr.mxu0 0.0
        %3208 = vmatpush1.msra.mxu0 0.0
        %3209 = vmatprep.subr.mxu0 0.0
        %3210 = vmatpush1.msra.mxu0 0.0
        %3211 = vmatprep.subr.mxu0 0.0
        %3212 = vmatpush1.msra.mxu0 0.0
        %3213 = vmatprep.subr.mxu0 0.0
        %3214 = vmatpush1.msra.mxu0 0.0
        %3215 = vmatprep.subr.mxu0 0.0
        %3216 = vmatpush1.msra.mxu0 0.0
        %3217 = vmatprep.subr.mxu0 0.0
        %3218 = vmatpush1.msra.mxu0 0.0
        %3219 = vmatprep.subr.mxu0 0.0
        %3220 = vmatpush1.msra.mxu0 0.0
        %3221 = vmatprep.subr.mxu0 0.0
        %3222 = vmatpush1.msra.mxu0 0.0
        %3223 = vmatprep.subr.mxu0 0.0
        %3224 = vmatpush1.msra.mxu0 0.0
        %3225 = vmatprep.subr.mxu0 0.0
        %3226 = vmatpush1.msra.mxu0 0.0
        %3227 = vmatprep.subr.mxu0 0.0
        %3228 = vmatpush1.msra.mxu0 0.0
        %3229 = vmatprep.mubr.f32.mxu0 0.0
        %3230 = vmatmul.mubr.f32.gmra.mrb[0].mxu0 %v3163
        %v3231 = vpop.f32.mrb[0].mxu0
        %v3232 = vadd.f32 %v3160, %v3231
        %v3233 = vpop.f32.mrb[0].mxu0
        %v3234 = vadd.f32 %v3160, %v3233
        %3235 = vdwg.mxu0
        %3236 = vmatprep.subr.mxu0 %v3126
        %3237 = vmatpush1.msra.mxu0 %v3125
        %3238 = vmatprep.subr.mxu0 %v3130
        %3239 = vmatpush1.msra.mxu0 %v3129
        %3240 = vmatprep.subr.mxu0 %v3134
        %3241 = vmatpush1.msra.mxu0 %v3133
        %3242 = vmatprep.subr.mxu0 %v3138
        %3243 = vmatpush1.msra.mxu0 %v3137
        %3244 = vmatprep.subr.mxu0 %v3142
        %3245 = vmatpush1.msra.mxu0 %v3141
        %3246 = vmatprep.subr.mxu0 %v3146
        %3247 = vmatpush1.msra.mxu0 %v3145
        %3248 = vmatprep.subr.mxu0 %v3150
        %3249 = vmatpush1.msra.mxu0 %v3149
        %3250 = vmatprep.subr.mxu0 %v3154
        %3251 = vmatpush1.msra.mxu0 %v3153
        %3252 = vmatprep.subr.mxu0 0.0
        %3253 = vmatpush1.msra.mxu0 0.0
        %3254 = vmatprep.subr.mxu0 0.0
        %3255 = vmatpush1.msra.mxu0 0.0
        %3256 = vmatprep.subr.mxu0 0.0
        %3257 = vmatpush1.msra.mxu0 0.0
        %3258 = vmatprep.subr.mxu0 0.0
        %3259 = vmatpush1.msra.mxu0 0.0
        %3260 = vmatprep.subr.mxu0 0.0
        %3261 = vmatpush1.msra.mxu0 0.0
        %3262 = vmatprep.subr.mxu0 0.0
        %3263 = vmatpush1.msra.mxu0 0.0
        %3264 = vmatprep.subr.mxu0 0.0
        %3265 = vmatpush1.msra.mxu0 0.0
        %3266 = vmatprep.subr.mxu0 0.0
        %3267 = vmatpush1.msra.mxu0 0.0
        %3268 = vmatprep.subr.mxu0 0.0
        %3269 = vmatpush1.msra.mxu0 0.0
        %3270 = vmatprep.subr.mxu0 0.0
        %3271 = vmatpush1.msra.mxu0 0.0
        %3272 = vmatprep.subr.mxu0 0.0
        %3273 = vmatpush1.msra.mxu0 0.0
        %3274 = vmatprep.subr.mxu0 0.0
        %3275 = vmatpush1.msra.mxu0 0.0
        %3276 = vmatprep.subr.mxu0 0.0
        %3277 = vmatpush1.msra.mxu0 0.0
        %3278 = vmatprep.subr.mxu0 0.0
        %3279 = vmatpush1.msra.mxu0 0.0
        %3280 = vmatprep.subr.mxu0 0.0
        %3281 = vmatpush1.msra.mxu0 0.0
        %3282 = vmatprep.subr.mxu0 0.0
        %3283 = vmatpush1.msra.mxu0 0.0
        %3284 = vmatprep.subr.mxu0 0.0
        %3285 = vmatpush1.msra.mxu0 0.0
        %3286 = vmatprep.subr.mxu0 0.0
        %3287 = vmatpush1.msra.mxu0 0.0
        %3288 = vmatprep.subr.mxu0 0.0
        %3289 = vmatpush1.msra.mxu0 0.0
        %3290 = vmatprep.subr.mxu0 0.0
        %3291 = vmatpush1.msra.mxu0 0.0
        %3292 = vmatprep.subr.mxu0 0.0
        %3293 = vmatpush1.msra.mxu0 0.0
        %3294 = vmatprep.subr.mxu0 0.0
        %3295 = vmatpush1.msra.mxu0 0.0
        %3296 = vmatprep.subr.mxu0 0.0
        %3297 = vmatpush1.msra.mxu0 0.0
        %3298 = vmatprep.subr.mxu0 0.0
        %3299 = vmatpush1.msra.mxu0 0.0
        %3300 = vmatprep.mubr.f32.mxu0 0.0
        %3301 = vmatmul.mubr.f32.gmra.mrb[0].mxu0 %v3163
        %v3302 = vpop.f32.mrb[0].mxu0
        %v3303 = vadd.f32 %v3160, %v3302
        %v3304 = vpop.f32.mrb[0].mxu0
        %v3305 = vadd.f32 %v3160, %v3304
        %3306 = vdwg.mxu0
        %v3307 = vxor.u32 %v3232, 2147483648
        %v3308 = vxor.u32 %v3234, 2147483648
        %v3309 = vxor.u32 %v3303, 2147483648
        %v3310 = vxor.u32 %v3305, 2147483648
        %v3311 = vmul.f32 %v3307, 1.442695
        %v3312 = vpow.pop %v3311
        %v3313 = vmul.f32 %v3308, 1.442695
        %v3314 = vpow.pop %v3313
        %v3315 = vmul.f32 %v3309, 1.442695
        %v3316 = vpow.pop %v3315
        %v3317 = vmul.f32 %v3310, 1.442695
        %v3318 = vpow.pop %v3317
        %v3319 = vadd.f32 %v3312, 1.0
        %v3320 = vadd.f32 %v3314, 1.0
        %v3321 = vadd.f32 %v3316, 1.0
        %v3322 = vadd.f32 %v3318, 1.0
        %v3323 = vrcp.pop %v3319
        %v3324 = vmul.f32 1.0, %v3323
        %v3325 = vrcp.pop %v3320
        %v3326 = vmul.f32 1.0, %v3325
        %v3327 = vrcp.pop %v3321
        %v3328 = vmul.f32 1.0, %v3327
        %v3329 = vrcp.pop %v3322
        %v3330 = vmul.f32 1.0, %v3329
        %3331 = vst [vmem:[%s216] sm:$0xff] %v3324
        %3332 = vst [vmem:[%s216 + $0x8] sm:$0xff] %v3326
        %3333 = vst [vmem:[%s216 + $0x10] sm:$0xff] %v3328
        %3334 = vst [vmem:[%s216 + $0x18] sm:$0xff] %v3330
        %s3335 = sand.u32 %s137, 1
        %s3336 = scalar_lea.sflag [#allocation3], %s3335
        %s3337 = sand.u32 %s137, 1
        %s3338 = smul.addr %s3337, 32
        %s3339 = scalar_lea.vmem [#allocation2], %s3338
        // Predicated region
        $region41: #{tpu_custom_call.1} parent=39 // pred_check
          %p3340 = pneg %p147
        $region42: #{tpu_custom_call.1} parent=39 // pred_check_branch
          %3342 = sbr.rel (%p3340) target = $region44
        $region43: #{tpu_custom_call.1} parent=39 // pred_region
          %s3343 = smul.u32 4, %s19
          %s3345 = ssub.s32 512, 512
          %3346 = vsyncadd %s3336, %s3345
          %s3347 = smul.addr %s3343, 128
          %s3348 = scalar_lea.hbm %s5, %s3347
          %s3350 = sshll.u32 %s3339, 4
          %s3351 = int_to_ptr.vmem [resolvable:$true] %s3350
          %3353 = dma.vmem_to_hbm [thread:$0]  %s3351, 512, %s3348, %s3336
        $region44: #{tpu_custom_call.1} parent=39 // pred_fallthru
          _
      $region40: #{tpu_custom_call.1} parent=5 // pred_fallthru
        _
      %p3354 = scmp.le.s32.totalorder 2, %s14
      // Predicated region
      $region45: #{tpu_custom_call.1} parent=5 // pred_check
        %p3355 = pneg %p3354
      $region46: #{tpu_custom_call.1} parent=5 // pred_check_branch
        %3357 = sbr.rel (%p3355) target = $region48
      $region47: #{tpu_custom_call.1} parent=5 // pred_region
        %s3358 = ssub.s32 %s14, 2
        // Predicated region
        $region49: #{tpu_custom_call.1} parent=47 // pred_check
          %p3359 = pneg %p153
        $region50: #{tpu_custom_call.1} parent=47 // pred_check_branch
          %3361 = sbr.rel (%p3359) target = $region52
        $region51: #{tpu_custom_call.1} parent=47 // pred_region
          %s3362 = sand.u32 %s138, 1
          %s3363 = scalar_lea.sflag [#allocation3], %s3362
          %s3364 = sand.u32 %s138, 1
          %s3365 = smul.addr %s3364, 32
          %s3366 = scalar_lea.vmem [#allocation2], %s3365
          %3367 = dma.done %s3363, 512
        $region52: #{tpu_custom_call.1} parent=47 // pred_fallthru
          _
      $region48: #{tpu_custom_call.1} parent=5 // pred_fallthru
        _
    $region6: #{tpu_custom_call.1} parent=1 // loop_footer
      %s18 = sadd.s32 1, %s14
    $region7: #{tpu_custom_call.1} parent=1 // loop_footer_branch
      %13 = sbr.rel target = $region3
    $region8: #{tpu_custom_call.1} parent=1 // loop_exit
      _
    %3368 = vsyncpa [#allocation3], 1
    %s3369 = scalar_lea.sflag [#allocation3], 1
    %3370 = vsyncpa %s3369, 1

</llo_original>
